<compile_context>
chip_gen: v7x
topology: tpu7x:2x2x1
jax: 0.10.0
libtpu: 0.0.40
codegen_flags: <defaults>
</compile_context>

<pallas_src>
import functools
import jax
import jax.numpy as jnp
import numpy as np
from jax.experimental import pallas as pl
from jax.experimental.pallas import tpu as pltpu

IN_FEATS = 74        # CanonicalAtomFeaturizer feature size
HID = 64             # NFGNN hidden size per layer
NUM_LAYERS = 3       # DeepPurpose gnn_num_layers
MAX_DEG = 10         # NFGNN max_degree
PRED_HID = 128       # predictor_hidden_size (node_to_graph out)
PRED_DIM = 256       # predictor_dim (hidden_dim_drug)
PAD = 128            # lane-padded channel width for node features / hidden
BN_EPS = 1e-5


def _round_up(x, m):
    return ((x + m - 1) // m) * m


def _full_spec(shape):
    nd = len(shape)
    return pl.BlockSpec(shape, lambda i, _nd=nd: (0,) * _nd)


# ------------------------------ fused kernel --------------------------------

def neuralfp_fused_kernel(a_ref, x_ref, dm_ref, wdeg_ref, bdeg_ref,
                          bn_s_ref, bn_t_ref, wng_ref, bng_ref,
                          pool_ref, wtr_ref, btr_ref, o_ref):
    f32 = jnp.float32
    a = a_ref[...]                                  # [Np, Np]  bf16 adjacency (dst, src), self loops
    dm = dm_ref[...]                                # [Np, MAX_DEG*PAD] f32 degree-block one-hot mask
    h = x_ref[...].astype(f32)                      # [Np, PAD]  node features (lane padded)

    # ---- NFGNN: 3 fused layers, h stays resident ----
    for l in range(NUM_LAYERS):
        # neighborhood sum (self term comes from the self-loop edge):  agg = A @ h
        agg = jnp.dot(a, h.astype(jnp.bfloat16), preferred_element_type=f32)
        # all MAX_DEG per-degree Linears in one MXU pass: [Np,128] @ [128, 10*128]
        big = jnp.dot(agg.astype(jnp.bfloat16), wdeg_ref[l], preferred_element_type=f32)
        big = (big + bdeg_ref[l]) * dm              # keep each node's own degree block (incl. its bias)
        out = big[:, :PAD]
        for d in range(1, MAX_DEG):                 # static, 128-aligned lane slices
            out = out + big[:, d * PAD:(d + 1) * PAD]
        out = jnp.maximum(out, 0.0)                 # ReLU activation; dropout(p=0) == identity
        h = out * bn_s_ref[l] + bn_t_ref[l]         # BatchNorm1d (eval) folded to scale/shift

    # ---- node_to_graph: Linear(64 -> 128) (tiny, kept f32) ----
    nf = jnp.dot(h, wng_ref[...], preferred_element_type=f32) + bng_ref[...]   # [Np, 128]

    # ---- SumAndMax readout ----
    pool = pool_ref[...]                            # [Bp, Np]  1.0 for member nodes
    gsum = jnp.dot(pool, nf, preferred_element_type=f32)                        # sum_nodes
    neg = jnp.where(pool > 0.0, 0.0, -1e30).astype(f32)
    gmax = jnp.max(nf[None, :, :] + neg[:, :, None], axis=1)                    # max_nodes

    # ---- predictor_activation (tanh) + transform Linear(256 -> 256) ----
    gs = jnp.tanh(gsum)                             # first half of concat([sum, max])
    gm = jnp.tanh(gmax)                             # second half
    o_ref[...] = (jnp.dot(gs, wtr_ref[:PRED_HID, :], preferred_element_type=f32)
                  + jnp.dot(gm, wtr_ref[PRED_HID:, :], preferred_element_type=f32)
                  + btr_ref[...])


def neuralfp_call(packed, a, x, dm, pool):
    b_pad = pool.shape[0]
    args = (a, x, dm, packed["wdeg"], packed["bdeg"], packed["bn_scale"],
            packed["bn_shift"], packed["wng"], packed["bng"], pool,
            packed["wtr"], packed["btr"])
    return pl.pallas_call(
        neuralfp_fused_kernel,
        grid=(1,),
        in_specs=[_full_spec(v.shape) for v in args],
        out_specs=_full_spec((b_pad, PRED_DIM)),
        out_shape=jax.ShapeDtypeStruct((b_pad, PRED_DIM), jnp.float32),
        compiler_params=pltpu.CompilerParams(
            dimension_semantics=("arbitrary",),
            vmem_limit_bytes=32 * 1024 * 1024),
    )(*args)


# ------------------------------ parameters ----------------------------------

def make_params(key):
    keys = iter(jax.random.split(key, 128))

    def nrm(shape, scale):
        return jax.random.normal(next(keys), shape, jnp.float32) * scale

    layers = []
    in_l = IN_FEATS
    for _ in range(NUM_LAYERS):
        layers.append(dict(
            W=nrm((MAX_DEG, in_l, HID), 1.0 / np.sqrt(in_l)),   # per-degree Linear weights
            b=nrm((MAX_DEG, HID), 0.01),                        # per-degree Linear biases
            gamma=1.0 + nrm((HID,), 0.1),
            beta=nrm((HID,), 0.1),
            mean=nrm((HID,), 0.1),
            var=1.0 + jnp.abs(nrm((HID,), 0.1)),
        ))
        in_l = HID
    return dict(
        layers=layers,
        wng=nrm((HID, PRED_HID), 1.0 / np.sqrt(HID)),            # node_to_graph
        bng=nrm((PRED_HID,), 0.01),
        wtr=nrm((2 * PRED_HID, PRED_DIM), 1.0 / np.sqrt(2 * PRED_HID)),   # transform
        btr=nrm((PRED_DIM,), 0.01),
    )


def pack_params(p):
    """Pad / stack raw params into lane-aligned, bf16-where-it-matters kernel operands."""
    wdeg = np.zeros((NUM_LAYERS, PAD, MAX_DEG * PAD), np.float32)
    bdeg = np.zeros((NUM_LAYERS, 1, MAX_DEG * PAD), np.float32)
    scale = np.zeros((NUM_LAYERS, 1, PAD), np.float32)
    shift = np.zeros((NUM_LAYERS, 1, PAD), np.float32)
    for l, lp in enumerate(p["layers"]):
        in_l = lp["W"].shape[1]
        for d in range(MAX_DEG):
            wdeg[l, :in_l, d * PAD:d * PAD + HID] = np.asarray(lp["W"][d])
            bdeg[l, 0, d * PAD:d * PAD + HID] = np.asarray(lp["b"][d])
        s = np.asarray(lp["gamma"]) / np.sqrt(np.asarray(lp["var"]) + BN_EPS)
        scale[l, 0, :HID] = s
        shift[l, 0, :HID] = np.asarray(lp["beta"]) - np.asarray(lp["mean"]) * s
    wng = np.zeros((PAD, PRED_HID), np.float32)
    wng[:HID] = np.asarray(p["wng"])
    return dict(
        wdeg=jnp.asarray(wdeg, jnp.bfloat16),                    # big operand -> bf16
        bdeg=jnp.asarray(bdeg),
        bn_scale=jnp.asarray(scale),
        bn_shift=jnp.asarray(shift),
        wng=jnp.asarray(wng),                                    # tiny head matmuls stay f32
        bng=jnp.asarray(np.asarray(p["bng"]).reshape(1, PRED_HID)),
        wtr=jnp.asarray(np.asarray(p["wtr"])),
        btr=jnp.asarray(np.asarray(p["btr"]).reshape(1, PRED_DIM)),
    )


# --------------------------- forward (Pallas) --------------------------------

def forward_pallas(packed, node_feats, src, dst, graph_id, num_graphs):
    n = node_feats.shape[0]
    n_pad = _round_up(max(n, 8), 8)
    b_pad = max(8, _round_up(num_graphs, 8))

    # dense adjacency (dst, src); 0/1/2 counts are exact in bf16
    a = (jnp.zeros((n_pad, n_pad), jnp.float32).at[dst, src].add(1.0)).astype(jnp.bfloat16)
    # lane-padded node features
    xp = (jnp.zeros((n_pad, PAD), jnp.float32).at[:n, :IN_FEATS].set(node_feats)).astype(jnp.bfloat16)

    # degree bucket (in-degree incl. self loop, clamped to [1, MAX_DEG]) -> degree-block one-hot mask
    deg = jnp.zeros((n,), jnp.int32).at[dst].add(1)
    bucket = jnp.clip(deg, 1, MAX_DEG) - 1
    dm_small = (bucket[:, None] == jnp.arange(MAX_DEG)[None, :]).astype(jnp.float32)   # [n, 10]
    dm = jnp.zeros((n_pad, MAX_DEG), jnp.float32).at[:n].set(dm_small)
    dm = jnp.repeat(dm, PAD, axis=1)                                                   # [n_pad, 10*128]

    # graph membership / sum-pooling matrix (padded graphs & nodes contribute nothing)
    pool = jnp.zeros((b_pad, n_pad), jnp.float32).at[graph_id, jnp.arange(n)].set(1.0)

    out = neuralfp_call(packed, a, xp, dm, pool)
    return out[:num_graphs]


# --------------------------- pure-JAX reference ------------------------------

def forward_ref(params, node_feats, src, dst, graph_id, num_graphs):
    n = node_feats.shape[0]
    deg = jnp.zeros((n,), jnp.int32).at[dst].add(1)
    bucket = jnp.clip(deg, 1, MAX_DEG) - 1
    h = node_feats
    for lp in params["layers"]:
        agg = jnp.zeros((n, h.shape[1]), jnp.float32).at[dst].add(h[src])
        Wn = lp["W"][bucket]                                    # [n, in_l, HID]
        out = jnp.einsum("ni,nio->no", agg, Wn) + lp["b"][bucket]
        out = jnp.maximum(out, 0.0)
        out = (out - lp["mean"]) / jnp.sqrt(lp["var"] + BN_EPS) * lp["gamma"] + lp["beta"]
        h = out
    nf = h @ params["wng"] + params["bng"]
    member = graph_id[None, :] == jnp.arange(num_graphs)[:, None]
    gsum = member.astype(jnp.float32) @ nf
    gmax = jnp.max(jnp.where(member[:, :, None], nf[None, :, :], -jnp.inf), axis=1)
    gf = jnp.tanh(jnp.concatenate([gsum, gmax], axis=1))        # SumAndMax then predictor_activation
    return gf @ params["wtr"] + params["btr"]


# ------------------------------- main ----------------------------------------

if __name__ == "__main__":
    key = jax.random.PRNGKey(0)
    k_param, k_x = jax.random.split(key, 2)

    params = make_params(k_param)
    packed = pack_params(params)

    # Batched graph: graph0 = 6-node chain, graph1 = 5-node chain, bidirected bond edges + self loops
    # (matching DeepPurpose's smiles_to_bigraph(add_self_loop=True) preprocessing).
    num_graphs = 2
    graph_id = jnp.array([0] * 6 + [1] * 5, dtype=jnp.int32)     # [11]
    n = int(graph_id.shape[0])
    chain0 = [(0, 1), (1, 2), (2, 3), (3, 4), (4, 5)]
    chain1 = [(6, 7), (7, 8), (8, 9), (9, 10)]
    src_list, dst_list = [], []
    for (u, v) in chain0 + chain1:
        src_list += [u, v]
        dst_list += [v, u]
    for v in range(n):                                            # self loops
        src_list.append(v)
        dst_list.append(v)
    src = jnp.array(src_list, dtype=jnp.int32)                    # [29]
    dst = jnp.array(dst_list, dtype=jnp.int32)                    # [29]

    # stand-in for the 74-dim CanonicalAtomFeaturizer node features
    node_feats = jax.random.uniform(k_x, (n, IN_FEATS), jnp.float32)

    out = forward_pallas(packed, node_feats, src, dst, graph_id, num_graphs)
    out = jax.block_until_ready(out)

    ref = jax.block_until_ready(
        forward_ref(params, node_feats, src, dst, graph_id, num_graphs))

    assert out.shape == (num_graphs, PRED_DIM)
    np.testing.assert_allclose(np.asarray(out), np.asarray(ref), rtol=5e-2, atol=5e-2)
    print("KERNEL_OK")
</pallas_src>

<mosaic_0001>
module attributes {stable_mosaic.version = 11 : i64} {
  func.func @neuralfp_fused_kernel(%arg0: i32, %arg1: memref<16x16xbf16, #tpu.memory_space<vmem>>, %arg2: memref<16x128xbf16, #tpu.memory_space<vmem>>, %arg3: memref<16x1280xf32, #tpu.memory_space<vmem>>, %arg4: memref<3x128x1280xbf16, #tpu.memory_space<vmem>>, %arg5: memref<3x1x1280xf32, #tpu.memory_space<vmem>>, %arg6: memref<3x1x128xf32, #tpu.memory_space<vmem>>, %arg7: memref<3x1x128xf32, #tpu.memory_space<vmem>>, %arg8: memref<128x128xf32, #tpu.memory_space<vmem>>, %arg9: memref<1x128xf32, #tpu.memory_space<vmem>>, %arg10: memref<8x16xf32, #tpu.memory_space<vmem>>, %arg11: memref<256x256xf32, #tpu.memory_space<vmem>>, %arg12: memref<1x256xf32, #tpu.memory_space<vmem>>, %arg13: memref<8x256xf32, #tpu.memory_space<vmem>>) attributes {dimension_semantics = [#tpu.dimension_semantics<arbitrary>], iteration_bounds = array<i64: 1>, scalar_prefetch = 0 : i64, scratch_operands = 0 : i64, tpu.core_type = #tpu.core_type<tc>, window_params = [{pipeline_mode = #tpu.pipeline_mode<synchronous>, transform_indices = @transform_0, window_bounds = array<i64: 16, 16>}, {pipeline_mode = #tpu.pipeline_mode<synchronous>, transform_indices = @transform_1, window_bounds = array<i64: 16, 128>}, {pipeline_mode = #tpu.pipeline_mode<synchronous>, transform_indices = @transform_2, window_bounds = array<i64: 16, 1280>}, {pipeline_mode = #tpu.pipeline_mode<synchronous>, transform_indices = @transform_3, window_bounds = array<i64: 3, 128, 1280>}, {pipeline_mode = #tpu.pipeline_mode<synchronous>, transform_indices = @transform_4, window_bounds = array<i64: 3, 1, 1280>}, {pipeline_mode = #tpu.pipeline_mode<synchronous>, transform_indices = @transform_5, window_bounds = array<i64: 3, 1, 128>}, {pipeline_mode = #tpu.pipeline_mode<synchronous>, transform_indices = @transform_6, window_bounds = array<i64: 3, 1, 128>}, {pipeline_mode = #tpu.pipeline_mode<synchronous>, transform_indices = @transform_7, window_bounds = array<i64: 128, 128>}, {pipeline_mode = #tpu.pipeline_mode<synchronous>, transform_indices = @transform_8, window_bounds = array<i64: 1, 128>}, {pipeline_mode = #tpu.pipeline_mode<synchronous>, transform_indices = @transform_9, window_bounds = array<i64: 8, 16>}, {pipeline_mode = #tpu.pipeline_mode<synchronous>, transform_indices = @transform_10, window_bounds = array<i64: 256, 256>}, {pipeline_mode = #tpu.pipeline_mode<synchronous>, transform_indices = @transform_11, window_bounds = array<i64: 1, 256>}, {pipeline_mode = #tpu.pipeline_mode<synchronous>, transform_indices = @transform_12, window_bounds = array<i64: 8, 256>}]} {
    %c0 = arith.constant 0 : index
    %c0_0 = arith.constant 0 : index
    %0 = vector.load %arg1[%c0, %c0_0] : memref<16x16xbf16, #tpu.memory_space<vmem>>, vector<16x16xbf16>
    %c0_1 = arith.constant 0 : index
    %c0_2 = arith.constant 0 : index
    %1 = vector.load %arg3[%c0_1, %c0_2] : memref<16x1280xf32, #tpu.memory_space<vmem>>, vector<16x1280xf32>
    %c0_3 = arith.constant 0 : index
    %c0_4 = arith.constant 0 : index
    %2 = vector.load %arg2[%c0_3, %c0_4] : memref<16x128xbf16, #tpu.memory_space<vmem>>, vector<16x128xbf16>
    %3 = arith.extf %2 : vector<16x128xbf16> to vector<16x128xf32>
    %4 = arith.truncf %3 : vector<16x128xf32> to vector<16x128xbf16>
    %cst = arith.constant dense<0.000000e+00> : vector<16x128xf32>
    %5 = tpu.matmul %0, %4, %cst {dimension_numbers = #tpu.dot_dimension_numbers<[1], [0], [0], [1], [0, 0, 1, 1], [], []>} : vector<16x16xbf16>, vector<16x128xbf16>, vector<16x128xf32> -> vector<16x128xf32>
    %6 = arith.truncf %5 : vector<16x128xf32> to vector<16x128xbf16>
    %c0_5 = arith.constant 0 : index
    %c0_6 = arith.constant 0 : index
    %c0_7 = arith.constant 0 : index
    %7 = vector.load %arg4[%c0_5, %c0_6, %c0_7] : memref<3x128x1280xbf16, #tpu.memory_space<vmem>>, vector<1x128x1280xbf16>
    %8 = vector.shape_cast %7 : vector<1x128x1280xbf16> to vector<128x1280xbf16>
    %cst_8 = arith.constant dense<0.000000e+00> : vector<16x1280xf32>
    %9 = tpu.matmul %6, %8, %cst_8 {dimension_numbers = #tpu.dot_dimension_numbers<[1], [0], [0], [1], [0, 0, 1, 1], [], []>} : vector<16x128xbf16>, vector<128x1280xbf16>, vector<16x1280xf32> -> vector<16x1280xf32>
    %c0_9 = arith.constant 0 : index
    %c0_10 = arith.constant 0 : index
    %c0_11 = arith.constant 0 : index
    %10 = vector.load %arg5[%c0_9, %c0_10, %c0_11] : memref<3x1x1280xf32, #tpu.memory_space<vmem>>, vector<1x1x1280xf32>
    %11 = vector.shape_cast %10 : vector<1x1x1280xf32> to vector<1x1280xf32>
    %12 = vector.broadcast %11 : vector<1x1280xf32> to vector<16x1280xf32>
    %13 = arith.addf %9, %12 : vector<16x1280xf32>
    %14 = arith.mulf %13, %1 : vector<16x1280xf32>
    %15 = vector.extract_strided_slice %14 {offsets = [0, 0], sizes = [16, 128], strides = [1, 1]} : vector<16x1280xf32> to vector<16x128xf32>
    %16 = vector.extract_strided_slice %14 {offsets = [0, 128], sizes = [16, 128], strides = [1, 1]} : vector<16x1280xf32> to vector<16x128xf32>
    %17 = arith.addf %15, %16 : vector<16x128xf32>
    %18 = vector.extract_strided_slice %14 {offsets = [0, 256], sizes = [16, 128], strides = [1, 1]} : vector<16x1280xf32> to vector<16x128xf32>
    %19 = arith.addf %17, %18 : vector<16x128xf32>
    %20 = vector.extract_strided_slice %14 {offsets = [0, 384], sizes = [16, 128], strides = [1, 1]} : vector<16x1280xf32> to vector<16x128xf32>
    %21 = arith.addf %19, %20 : vector<16x128xf32>
    %22 = vector.extract_strided_slice %14 {offsets = [0, 512], sizes = [16, 128], strides = [1, 1]} : vector<16x1280xf32> to vector<16x128xf32>
    %23 = arith.addf %21, %22 : vector<16x128xf32>
    %24 = vector.extract_strided_slice %14 {offsets = [0, 640], sizes = [16, 128], strides = [1, 1]} : vector<16x1280xf32> to vector<16x128xf32>
    %25 = arith.addf %23, %24 : vector<16x128xf32>
    %26 = vector.extract_strided_slice %14 {offsets = [0, 768], sizes = [16, 128], strides = [1, 1]} : vector<16x1280xf32> to vector<16x128xf32>
    %27 = arith.addf %25, %26 : vector<16x128xf32>
    %28 = vector.extract_strided_slice %14 {offsets = [0, 896], sizes = [16, 128], strides = [1, 1]} : vector<16x1280xf32> to vector<16x128xf32>
    %29 = arith.addf %27, %28 : vector<16x128xf32>
    %30 = vector.extract_strided_slice %14 {offsets = [0, 1024], sizes = [16, 128], strides = [1, 1]} : vector<16x1280xf32> to vector<16x128xf32>
    %31 = arith.addf %29, %30 : vector<16x128xf32>
    %32 = vector.extract_strided_slice %14 {offsets = [0, 1152], sizes = [16, 128], strides = [1, 1]} : vector<16x1280xf32> to vector<16x128xf32>
    %33 = arith.addf %31, %32 : vector<16x128xf32>
    %cst_12 = arith.constant 0.000000e+00 : f32
    %34 = vector.broadcast %cst_12 : f32 to vector<16x128xf32>
    %35 = arith.maximumf %33, %34 : vector<16x128xf32>
    %c0_13 = arith.constant 0 : index
    %c0_14 = arith.constant 0 : index
    %c0_15 = arith.constant 0 : index
    %36 = vector.load %arg6[%c0_13, %c0_14, %c0_15] : memref<3x1x128xf32, #tpu.memory_space<vmem>>, vector<1x1x128xf32>
    %37 = vector.shape_cast %36 : vector<1x1x128xf32> to vector<1x128xf32>
    %38 = vector.broadcast %37 : vector<1x128xf32> to vector<16x128xf32>
    %39 = arith.mulf %35, %38 : vector<16x128xf32>
    %c0_16 = arith.constant 0 : index
    %c0_17 = arith.constant 0 : index
    %c0_18 = arith.constant 0 : index
    %40 = vector.load %arg7[%c0_16, %c0_17, %c0_18] : memref<3x1x128xf32, #tpu.memory_space<vmem>>, vector<1x1x128xf32>
    %41 = vector.shape_cast %40 : vector<1x1x128xf32> to vector<1x128xf32>
    %42 = vector.broadcast %41 : vector<1x128xf32> to vector<16x128xf32>
    %43 = arith.addf %39, %42 : vector<16x128xf32>
    %44 = arith.truncf %43 : vector<16x128xf32> to vector<16x128xbf16>
    %cst_19 = arith.constant dense<0.000000e+00> : vector<16x128xf32>
    %45 = tpu.matmul %0, %44, %cst_19 {dimension_numbers = #tpu.dot_dimension_numbers<[1], [0], [0], [1], [0, 0, 1, 1], [], []>} : vector<16x16xbf16>, vector<16x128xbf16>, vector<16x128xf32> -> vector<16x128xf32>
    %46 = arith.truncf %45 : vector<16x128xf32> to vector<16x128xbf16>
    %c1 = arith.constant 1 : index
    %c0_20 = arith.constant 0 : index
    %c0_21 = arith.constant 0 : index
    %47 = vector.load %arg4[%c1, %c0_20, %c0_21] : memref<3x128x1280xbf16, #tpu.memory_space<vmem>>, vector<1x128x1280xbf16>
    %48 = vector.shape_cast %47 : vector<1x128x1280xbf16> to vector<128x1280xbf16>
    %cst_22 = arith.constant dense<0.000000e+00> : vector<16x1280xf32>
    %49 = tpu.matmul %46, %48, %cst_22 {dimension_numbers = #tpu.dot_dimension_numbers<[1], [0], [0], [1], [0, 0, 1, 1], [], []>} : vector<16x128xbf16>, vector<128x1280xbf16>, vector<16x1280xf32> -> vector<16x1280xf32>
    %c1_23 = arith.constant 1 : index
    %c0_24 = arith.constant 0 : index
    %c0_25 = arith.constant 0 : index
    %50 = vector.load %arg5[%c1_23, %c0_24, %c0_25] : memref<3x1x1280xf32, #tpu.memory_space<vmem>>, vector<1x1x1280xf32>
    %51 = vector.shape_cast %50 : vector<1x1x1280xf32> to vector<1x1280xf32>
    %52 = vector.broadcast %51 : vector<1x1280xf32> to vector<16x1280xf32>
    %53 = arith.addf %49, %52 : vector<16x1280xf32>
    %54 = arith.mulf %53, %1 : vector<16x1280xf32>
    %55 = vector.extract_strided_slice %54 {offsets = [0, 0], sizes = [16, 128], strides = [1, 1]} : vector<16x1280xf32> to vector<16x128xf32>
    %56 = vector.extract_strided_slice %54 {offsets = [0, 128], sizes = [16, 128], strides = [1, 1]} : vector<16x1280xf32> to vector<16x128xf32>
    %57 = arith.addf %55, %56 : vector<16x128xf32>
    %58 = vector.extract_strided_slice %54 {offsets = [0, 256], sizes = [16, 128], strides = [1, 1]} : vector<16x1280xf32> to vector<16x128xf32>
    %59 = arith.addf %57, %58 : vector<16x128xf32>
    %60 = vector.extract_strided_slice %54 {offsets = [0, 384], sizes = [16, 128], strides = [1, 1]} : vector<16x1280xf32> to vector<16x128xf32>
    %61 = arith.addf %59, %60 : vector<16x128xf32>
    %62 = vector.extract_strided_slice %54 {offsets = [0, 512], sizes = [16, 128], strides = [1, 1]} : vector<16x1280xf32> to vector<16x128xf32>
    %63 = arith.addf %61, %62 : vector<16x128xf32>
    %64 = vector.extract_strided_slice %54 {offsets = [0, 640], sizes = [16, 128], strides = [1, 1]} : vector<16x1280xf32> to vector<16x128xf32>
    %65 = arith.addf %63, %64 : vector<16x128xf32>
    %66 = vector.extract_strided_slice %54 {offsets = [0, 768], sizes = [16, 128], strides = [1, 1]} : vector<16x1280xf32> to vector<16x128xf32>
    %67 = arith.addf %65, %66 : vector<16x128xf32>
    %68 = vector.extract_strided_slice %54 {offsets = [0, 896], sizes = [16, 128], strides = [1, 1]} : vector<16x1280xf32> to vector<16x128xf32>
    %69 = arith.addf %67, %68 : vector<16x128xf32>
    %70 = vector.extract_strided_slice %54 {offsets = [0, 1024], sizes = [16, 128], strides = [1, 1]} : vector<16x1280xf32> to vector<16x128xf32>
    %71 = arith.addf %69, %70 : vector<16x128xf32>
    %72 = vector.extract_strided_slice %54 {offsets = [0, 1152], sizes = [16, 128], strides = [1, 1]} : vector<16x1280xf32> to vector<16x128xf32>
    %73 = arith.addf %71, %72 : vector<16x128xf32>
    %cst_26 = arith.constant 0.000000e+00 : f32
    %74 = vector.broadcast %cst_26 : f32 to vector<16x128xf32>
    %75 = arith.maximumf %73, %74 : vector<16x128xf32>
    %c1_27 = arith.constant 1 : index
    %c0_28 = arith.constant 0 : index
    %c0_29 = arith.constant 0 : index
    %76 = vector.load %arg6[%c1_27, %c0_28, %c0_29] : memref<3x1x128xf32, #tpu.memory_space<vmem>>, vector<1x1x128xf32>
    %77 = vector.shape_cast %76 : vector<1x1x128xf32> to vector<1x128xf32>
    %78 = vector.broadcast %77 : vector<1x128xf32> to vector<16x128xf32>
    %79 = arith.mulf %75, %78 : vector<16x128xf32>
    %c1_30 = arith.constant 1 : index
    %c0_31 = arith.constant 0 : index
    %c0_32 = arith.constant 0 : index
    %80 = vector.load %arg7[%c1_30, %c0_31, %c0_32] : memref<3x1x128xf32, #tpu.memory_space<vmem>>, vector<1x1x128xf32>
    %81 = vector.shape_cast %80 : vector<1x1x128xf32> to vector<1x128xf32>
    %82 = vector.broadcast %81 : vector<1x128xf32> to vector<16x128xf32>
    %83 = arith.addf %79, %82 : vector<16x128xf32>
    %84 = arith.truncf %83 : vector<16x128xf32> to vector<16x128xbf16>
    %cst_33 = arith.constant dense<0.000000e+00> : vector<16x128xf32>
    %85 = tpu.matmul %0, %84, %cst_33 {dimension_numbers = #tpu.dot_dimension_numbers<[1], [0], [0], [1], [0, 0, 1, 1], [], []>} : vector<16x16xbf16>, vector<16x128xbf16>, vector<16x128xf32> -> vector<16x128xf32>
    %86 = arith.truncf %85 : vector<16x128xf32> to vector<16x128xbf16>
    %c2 = arith.constant 2 : index
    %c0_34 = arith.constant 0 : index
    %c0_35 = arith.constant 0 : index
    %87 = vector.load %arg4[%c2, %c0_34, %c0_35] : memref<3x128x1280xbf16, #tpu.memory_space<vmem>>, vector<1x128x1280xbf16>
    %88 = vector.shape_cast %87 : vector<1x128x1280xbf16> to vector<128x1280xbf16>
    %cst_36 = arith.constant dense<0.000000e+00> : vector<16x1280xf32>
    %89 = tpu.matmul %86, %88, %cst_36 {dimension_numbers = #tpu.dot_dimension_numbers<[1], [0], [0], [1], [0, 0, 1, 1], [], []>} : vector<16x128xbf16>, vector<128x1280xbf16>, vector<16x1280xf32> -> vector<16x1280xf32>
    %c2_37 = arith.constant 2 : index
    %c0_38 = arith.constant 0 : index
    %c0_39 = arith.constant 0 : index
    %90 = vector.load %arg5[%c2_37, %c0_38, %c0_39] : memref<3x1x1280xf32, #tpu.memory_space<vmem>>, vector<1x1x1280xf32>
    %91 = vector.shape_cast %90 : vector<1x1x1280xf32> to vector<1x1280xf32>
    %92 = vector.broadcast %91 : vector<1x1280xf32> to vector<16x1280xf32>
    %93 = arith.addf %89, %92 : vector<16x1280xf32>
    %94 = arith.mulf %93, %1 : vector<16x1280xf32>
    %95 = vector.extract_strided_slice %94 {offsets = [0, 0], sizes = [16, 128], strides = [1, 1]} : vector<16x1280xf32> to vector<16x128xf32>
    %96 = vector.extract_strided_slice %94 {offsets = [0, 128], sizes = [16, 128], strides = [1, 1]} : vector<16x1280xf32> to vector<16x128xf32>
    %97 = arith.addf %95, %96 : vector<16x128xf32>
    %98 = vector.extract_strided_slice %94 {offsets = [0, 256], sizes = [16, 128], strides = [1, 1]} : vector<16x1280xf32> to vector<16x128xf32>
    %99 = arith.addf %97, %98 : vector<16x128xf32>
    %100 = vector.extract_strided_slice %94 {offsets = [0, 384], sizes = [16, 128], strides = [1, 1]} : vector<16x1280xf32> to vector<16x128xf32>
    %101 = arith.addf %99, %100 : vector<16x128xf32>
    %102 = vector.extract_strided_slice %94 {offsets = [0, 512], sizes = [16, 128], strides = [1, 1]} : vector<16x1280xf32> to vector<16x128xf32>
    %103 = arith.addf %101, %102 : vector<16x128xf32>
    %104 = vector.extract_strided_slice %94 {offsets = [0, 640], sizes = [16, 128], strides = [1, 1]} : vector<16x1280xf32> to vector<16x128xf32>
    %105 = arith.addf %103, %104 : vector<16x128xf32>
    %106 = vector.extract_strided_slice %94 {offsets = [0, 768], sizes = [16, 128], strides = [1, 1]} : vector<16x1280xf32> to vector<16x128xf32>
    %107 = arith.addf %105, %106 : vector<16x128xf32>
    %108 = vector.extract_strided_slice %94 {offsets = [0, 896], sizes = [16, 128], strides = [1, 1]} : vector<16x1280xf32> to vector<16x128xf32>
    %109 = arith.addf %107, %108 : vector<16x128xf32>
    %110 = vector.extract_strided_slice %94 {offsets = [0, 1024], sizes = [16, 128], strides = [1, 1]} : vector<16x1280xf32> to vector<16x128xf32>
    %111 = arith.addf %109, %110 : vector<16x128xf32>
    %112 = vector.extract_strided_slice %94 {offsets = [0, 1152], sizes = [16, 128], strides = [1, 1]} : vector<16x1280xf32> to vector<16x128xf32>
    %113 = arith.addf %111, %112 : vector<16x128xf32>
    %cst_40 = arith.constant 0.000000e+00 : f32
    %114 = vector.broadcast %cst_40 : f32 to vector<16x128xf32>
    %115 = arith.maximumf %113, %114 : vector<16x128xf32>
    %c2_41 = arith.constant 2 : index
    %c0_42 = arith.constant 0 : index
    %c0_43 = arith.constant 0 : index
    %116 = vector.load %arg6[%c2_41, %c0_42, %c0_43] : memref<3x1x128xf32, #tpu.memory_space<vmem>>, vector<1x1x128xf32>
    %117 = vector.shape_cast %116 : vector<1x1x128xf32> to vector<1x128xf32>
    %118 = vector.broadcast %117 : vector<1x128xf32> to vector<16x128xf32>
    %119 = arith.mulf %115, %118 : vector<16x128xf32>
    %c2_44 = arith.constant 2 : index
    %c0_45 = arith.constant 0 : index
    %c0_46 = arith.constant 0 : index
    %120 = vector.load %arg7[%c2_44, %c0_45, %c0_46] : memref<3x1x128xf32, #tpu.memory_space<vmem>>, vector<1x1x128xf32>
    %121 = vector.shape_cast %120 : vector<1x1x128xf32> to vector<1x128xf32>
    %122 = vector.broadcast %121 : vector<1x128xf32> to vector<16x128xf32>
    %123 = arith.addf %119, %122 : vector<16x128xf32>
    %c0_47 = arith.constant 0 : index
    %c0_48 = arith.constant 0 : index
    %124 = vector.load %arg8[%c0_47, %c0_48] : memref<128x128xf32, #tpu.memory_space<vmem>>, vector<128x128xf32>
    %cst_49 = arith.constant dense<0.000000e+00> : vector<16x128xf32>
    %125 = tpu.matmul %123, %124, %cst_49 {dimension_numbers = #tpu.dot_dimension_numbers<[1], [0], [0], [1], [0, 0, 1, 1], [], []>} : vector<16x128xf32>, vector<128x128xf32>, vector<16x128xf32> -> vector<16x128xf32>
    %c0_50 = arith.constant 0 : index
    %c0_51 = arith.constant 0 : index
    %126 = vector.load %arg9[%c0_50, %c0_51] : memref<1x128xf32, #tpu.memory_space<vmem>>, vector<1x128xf32>
    %127 = vector.broadcast %126 : vector<1x128xf32> to vector<16x128xf32>
    %128 = arith.addf %125, %127 : vector<16x128xf32>
    %c0_52 = arith.constant 0 : index
    %c0_53 = arith.constant 0 : index
    %129 = vector.load %arg10[%c0_52, %c0_53] : memref<8x16xf32, #tpu.memory_space<vmem>>, vector<8x16xf32>
    %cst_54 = arith.constant dense<0.000000e+00> : vector<8x128xf32>
    %130 = tpu.matmul %129, %128, %cst_54 {dimension_numbers = #tpu.dot_dimension_numbers<[1], [0], [0], [1], [0, 0, 1, 1], [], []>} : vector<8x16xf32>, vector<16x128xf32>, vector<8x128xf32> -> vector<8x128xf32>
    %cst_55 = arith.constant 0.000000e+00 : f32
    %131 = vector.broadcast %cst_55 : f32 to vector<8x16xf32>
    %132 = arith.cmpf ogt, %129, %131 : vector<8x16xf32>
    %cst_56 = arith.constant 0.000000e+00 : f32
    %cst_57 = arith.constant -1.000000e+30 : f32
    %133 = vector.broadcast %cst_56 : f32 to vector<8x16xf32>
    %134 = vector.broadcast %cst_57 : f32 to vector<8x16xf32>
    %135 = arith.select %132, %133, %134 : vector<8x16xi1>, vector<8x16xf32>
    %136 = vector.shape_cast %128 : vector<16x128xf32> to vector<1x16x128xf32>
    %137 = vector.shape_cast %135 : vector<8x16xf32> to vector<8x16x1xf32>
    %138 = vector.broadcast %136 : vector<1x16x128xf32> to vector<8x16x128xf32>
    %139 = vector.broadcast %137 : vector<8x16x1xf32> to vector<8x16x128xf32>
    %140 = arith.addf %138, %139 : vector<8x16x128xf32>
    %cst_58 = arith.constant dense<0xFF800000> : vector<8x128xf32>
    %141 = vector.multi_reduction <maximumf>, %140, %cst_58 [1] : vector<8x16x128xf32> to vector<8x128xf32>
    %142 = math.tanh %130 : vector<8x128xf32>
    %143 = math.tanh %141 : vector<8x128xf32>
    %c0_59 = arith.constant 0 : index
    %c0_60 = arith.constant 0 : index
    %144 = vector.load %arg11[%c0_59, %c0_60] : memref<256x256xf32, #tpu.memory_space<vmem>>, vector<128x256xf32>
    %cst_61 = arith.constant dense<0.000000e+00> : vector<8x256xf32>
    %145 = tpu.matmul %142, %144, %cst_61 {dimension_numbers = #tpu.dot_dimension_numbers<[1], [0], [0], [1], [0, 0, 1, 1], [], []>} : vector<8x128xf32>, vector<128x256xf32>, vector<8x256xf32> -> vector<8x256xf32>
    %c128 = arith.constant 128 : index
    %c0_62 = arith.constant 0 : index
    %146 = vector.load %arg11[%c128, %c0_62] : memref<256x256xf32, #tpu.memory_space<vmem>>, vector<128x256xf32>
    %cst_63 = arith.constant dense<0.000000e+00> : vector<8x256xf32>
    %147 = tpu.matmul %143, %146, %cst_63 {dimension_numbers = #tpu.dot_dimension_numbers<[1], [0], [0], [1], [0, 0, 1, 1], [], []>} : vector<8x128xf32>, vector<128x256xf32>, vector<8x256xf32> -> vector<8x256xf32>
    %148 = arith.addf %145, %147 : vector<8x256xf32>
    %c0_64 = arith.constant 0 : index
    %c0_65 = arith.constant 0 : index
    %149 = vector.load %arg12[%c0_64, %c0_65] : memref<1x256xf32, #tpu.memory_space<vmem>>, vector<1x256xf32>
    %150 = vector.broadcast %149 : vector<1x256xf32> to vector<8x256xf32>
    %151 = arith.addf %148, %150 : vector<8x256xf32>
    %c0_66 = arith.constant 0 : index
    %c0_67 = arith.constant 0 : index
    %152 = vector.load %arg13[%c0_66, %c0_67] : memref<8x256xf32, #tpu.memory_space<vmem>>, vector<8x256xf32>
    tpu.vector_store %arg13[%c0_66, %c0_67], %151 {strides = array<i32>} : memref<8x256xf32, #tpu.memory_space<vmem>>, vector<8x256xf32>,
    return
  }
  func.func @transform_0(%arg0: i32) -> (i32, i32) {
    %c0_i32 = arith.constant 0 : i32
    %c0_i32_0 = arith.constant 0 : i32
    %c0_i32_1 = arith.constant 0 : i32
    return %c0_i32, %c0_i32_0 : i32, i32
  }
  func.func @transform_1(%arg0: i32) -> (i32, i32) {
    %c0_i32 = arith.constant 0 : i32
    %c0_i32_0 = arith.constant 0 : i32
    %c0_i32_1 = arith.constant 0 : i32
    return %c0_i32, %c0_i32_0 : i32, i32
  }
  func.func @transform_2(%arg0: i32) -> (i32, i32) {
    %c0_i32 = arith.constant 0 : i32
    %c0_i32_0 = arith.constant 0 : i32
    %c0_i32_1 = arith.constant 0 : i32
    return %c0_i32, %c0_i32_0 : i32, i32
  }
  func.func @transform_3(%arg0: i32) -> (i32, i32, i32) {
    %c0_i32 = arith.constant 0 : i32
    %c0_i32_0 = arith.constant 0 : i32
    %c0_i32_1 = arith.constant 0 : i32
    %c0_i32_2 = arith.constant 0 : i32
    return %c0_i32, %c0_i32_0, %c0_i32_1 : i32, i32, i32
  }
  func.func @transform_4(%arg0: i32) -> (i32, i32, i32) {
    %c0_i32 = arith.constant 0 : i32
    %c0_i32_0 = arith.constant 0 : i32
    %c0_i32_1 = arith.constant 0 : i32
    %c0_i32_2 = arith.constant 0 : i32
    return %c0_i32, %c0_i32_0, %c0_i32_1 : i32, i32, i32
  }
  func.func @transform_5(%arg0: i32) -> (i32, i32, i32) {
    %c0_i32 = arith.constant 0 : i32
    %c0_i32_0 = arith.constant 0 : i32
    %c0_i32_1 = arith.constant 0 : i32
    %c0_i32_2 = arith.constant 0 : i32
    return %c0_i32, %c0_i32_0, %c0_i32_1 : i32, i32, i32
  }
  func.func @transform_6(%arg0: i32) -> (i32, i32, i32) {
    %c0_i32 = arith.constant 0 : i32
    %c0_i32_0 = arith.constant 0 : i32
    %c0_i32_1 = arith.constant 0 : i32
    %c0_i32_2 = arith.constant 0 : i32
    return %c0_i32, %c0_i32_0, %c0_i32_1 : i32, i32, i32
  }
  func.func @transform_7(%arg0: i32) -> (i32, i32) {
    %c0_i32 = arith.constant 0 : i32
    %c0_i32_0 = arith.constant 0 : i32
    %c0_i32_1 = arith.constant 0 : i32
    return %c0_i32, %c0_i32_0 : i32, i32
  }
  func.func @transform_8(%arg0: i32) -> (i32, i32) {
    %c0_i32 = arith.constant 0 : i32
    %c0_i32_0 = arith.constant 0 : i32
    %c0_i32_1 = arith.constant 0 : i32
    return %c0_i32, %c0_i32_0 : i32, i32
  }
  func.func @transform_9(%arg0: i32) -> (i32, i32) {
    %c0_i32 = arith.constant 0 : i32
    %c0_i32_0 = arith.constant 0 : i32
    %c0_i32_1 = arith.constant 0 : i32
    return %c0_i32, %c0_i32_0 : i32, i32
  }
  func.func @transform_10(%arg0: i32) -> (i32, i32) {
    %c0_i32 = arith.constant 0 : i32
    %c0_i32_0 = arith.constant 0 : i32
    %c0_i32_1 = arith.constant 0 : i32
    return %c0_i32, %c0_i32_0 : i32, i32
  }
  func.func @transform_11(%arg0: i32) -> (i32, i32) {
    %c0_i32 = arith.constant 0 : i32
    %c0_i32_0 = arith.constant 0 : i32
    %c0_i32_1 = arith.constant 0 : i32
    return %c0_i32, %c0_i32_0 : i32, i32
  }
  func.func @transform_12(%arg0: i32) -> (i32, i32) {
    %c0_i32 = arith.constant 0 : i32
    %c0_i32_0 = arith.constant 0 : i32
    %c0_i32_1 = arith.constant 0 : i32
    return %c0_i32, %c0_i32_0 : i32, i32
  }
}

</mosaic_0001>

<llo_original>
// kernel: tpu_custom_call.1
$region0: #{tpu_custom_call.1}
  #allocation0 [shape = 'u32[]', space=smem, size = 0x4, offset = 0x4, fixed_abs, tag = 'smem constant byte address 0x4 - core index']
  #allocation1 [shape = 'u32[144,128]{1,0:T(1,128)}', space=vmem, size = 0x12000, scoped, tag = 'internal scratch']
  %s0 = inlined_call_operand.hbm [shape: bf16[16,16], index: 0, kind: input, shape index: {}]
  %s1 = inlined_call_operand.hbm [shape: bf16[16,128], index: 1, kind: input, shape index: {}]
  %s2 = inlined_call_operand.hbm [shape: f32[16,1280], index: 2, kind: input, shape index: {}]
  %s3 = inlined_call_operand.hbm [shape: bf16[3,128,1280], index: 3, kind: input, shape index: {}]
  %s4 = inlined_call_operand.hbm [shape: f32[3,1,1280], index: 4, kind: input, shape index: {}]
  %s5 = inlined_call_operand.vmem [shape: f32[3,1,128], index: 5, kind: input, shape index: {}]
  %s6 = inlined_call_operand.vmem [shape: f32[3,1,128], index: 6, kind: input, shape index: {}]
  %s7 = inlined_call_operand.hbm [shape: f32[128,128], index: 7, kind: input, shape index: {}]
  %s8 = inlined_call_operand.vmem [shape: f32[1,128], index: 8, kind: input, shape index: {}]
  %s9 = inlined_call_operand.vmem [shape: f32[8,16], index: 9, kind: input, shape index: {}]
  %s10 = inlined_call_operand.hbm [shape: f32[256,256], index: 10, kind: input, shape index: {}]
  %s11 = inlined_call_operand.vmem [shape: f32[1,256], index: 11, kind: input, shape index: {}]
  %s12 = inlined_call_operand.hbm [shape: f32[8,256], index: 12, kind: output, shape index: {}]
  %s13 = sld [smem:[#allocation0]]
  $region86: #{tpu_custom_call.1} parent=0
    _
  %s15 = ssub.s32 1, %s13
  %s16 = scalar_select 0, %s15, %s13
  $region1: #{tpu_custom_call.1} parent=0
    #allocation2 [shape = 'u8[4096]{0}', space=vmem, size = 0x1000, scoped, tag = 'input window, operand 0, single buffered']
    #allocation3 [shape = 's32[1]{0}', space=sflag, size = 0x4, scoped, tag = 'scoped memory for tpu_custom_call.1']
    #allocation4 [shape = 's32[1]{0}', space=sflag, size = 0x4, scoped, tag = 'scoped memory for tpu_custom_call.1']
    #allocation5 [shape = 'u8[4096]{0}', space=vmem, size = 0x1000, scoped, tag = 'input window, operand 1, single buffered']
    #allocation6 [shape = 's32[1]{0}', space=sflag, size = 0x4, scoped, tag = 'scoped memory for tpu_custom_call.1']
    #allocation7 [shape = 'u8[81920]{0}', space=vmem, size = 0x14000, scoped, tag = 'input window, operand 2, single buffered']
    #allocation8 [shape = 'u8[983040]{0}', space=vmem, size = 0xf0000, scoped, tag = 'input window, operand 3, single buffered']
    #allocation9 [shape = 's32[1]{0}', space=sflag, size = 0x4, scoped, tag = 'scoped memory for tpu_custom_call.1']
    #allocation10 [shape = 'u8[15360]{0}', space=vmem, size = 0x3c00, scoped, tag = 'input window, operand 4, single buffered']
    #allocation11 [shape = 'u8[65536]{0}', space=vmem, size = 0x10000, scoped, tag = 'input window, operand 7, single buffered']
    #allocation12 [shape = 's32[1]{0}', space=sflag, size = 0x4, scoped, tag = 'scoped memory for tpu_custom_call.1']
    #allocation13 [shape = 'u8[262144]{0}', space=vmem, size = 0x40000, scoped, tag = 'input window, operand 10, single buffered']
    #allocation14 [shape = 'u8[8192]{0}', space=vmem, size = 0x2000, scoped, tag = 'output window, operand 0, single buffered']
    %17 = vsyncpa [#allocation3], 0
    %18 = vsyncpa [#allocation6], 0
    %19 = vsyncpa [#allocation9], 0
    %20 = vsyncpa [#allocation12], 0
    %21 = vsyncpa [#allocation4], 0
    // Predicated region
    $region2: #{tpu_custom_call.1} parent=1 // pred_check
      _
    $region3: #{tpu_custom_call.1} parent=1 // pred_check_branch
      %23 = sbr.rel (0) target = $region5
    $region4: #{tpu_custom_call.1} parent=1 // pred_region
      %s25 = ssub.s32 128, 128
      %26 = vsyncadd [#allocation3], %s25
      %s27 = sshll.u32 [#allocation2], 4
      %s28 = int_to_ptr.vmem [resolvable:$true] %s27
      %33 = dma.hbm_to_vmem [thread:$0]  %s0, 128, %s28, [#allocation3], 64, 64, 4
    $region5: #{tpu_custom_call.1} parent=1 // pred_fallthru
      _
    // Predicated region
    $region6: #{tpu_custom_call.1} parent=1 // pred_check
      _
    $region7: #{tpu_custom_call.1} parent=1 // pred_check_branch
      %35 = sbr.rel (0) target = $region9
    $region8: #{tpu_custom_call.1} parent=1 // pred_region
      %s37 = ssub.s32 128, 128
      %38 = vsyncadd [#allocation6], %s37
      %s39 = sshll.u32 [#allocation5], 4
      %s40 = int_to_ptr.vmem [resolvable:$true] %s39
      %45 = dma.hbm_to_vmem [thread:$0]  %s1, 128, %s40, [#allocation6], 64, 64, 4
    $region9: #{tpu_custom_call.1} parent=1 // pred_fallthru
      _
    // Predicated region
    $region10: #{tpu_custom_call.1} parent=1 // pred_check
      _
    $region11: #{tpu_custom_call.1} parent=1 // pred_check_branch
      %47 = sbr.rel (0) target = $region13
    $region12: #{tpu_custom_call.1} parent=1 // pred_region
      %s49 = ssub.s32 2560, 2560
      %50 = vsyncadd [#allocation6], %s49
      %s51 = sshll.u32 [#allocation7], 4
      %s52 = int_to_ptr.vmem [resolvable:$true] %s51
      %57 = dma.hbm_to_vmem [thread:$0]  %s2, 2560, %s52, [#allocation6], 1280, 1280, 80
    $region13: #{tpu_custom_call.1} parent=1 // pred_fallthru
      _
    // Predicated region
    $region14: #{tpu_custom_call.1} parent=1 // pred_check
      _
    $region15: #{tpu_custom_call.1} parent=1 // pred_check_branch
      %59 = sbr.rel (0) target = $region17
    $region16: #{tpu_custom_call.1} parent=1 // pred_region
      %s61 = ssub.s32 30720, 30720
      %62 = vsyncadd [#allocation9], %s61
      %s63 = sshll.u32 [#allocation8], 4
      %s64 = int_to_ptr.vmem [resolvable:$true] %s63
      %69 = dma.hbm_to_vmem [thread:$0]  %s3, 30720, %s64, [#allocation9], 640, 640, 40
    $region17: #{tpu_custom_call.1} parent=1 // pred_fallthru
      _
    // Predicated region
    $region18: #{tpu_custom_call.1} parent=1 // pred_check
      _
    $region19: #{tpu_custom_call.1} parent=1 // pred_check_branch
      %71 = sbr.rel (0) target = $region21
    $region20: #{tpu_custom_call.1} parent=1 // pred_region
      %s73 = ssub.s32 480, 480
      %74 = vsyncadd [#allocation9], %s73
      %s75 = sshll.u32 [#allocation10], 4
      %s76 = int_to_ptr.vmem [resolvable:$true] %s75
      %81 = dma.hbm_to_vmem [thread:$0]  %s4, 480, %s76, [#allocation9], 160, 160, 10
    $region21: #{tpu_custom_call.1} parent=1 // pred_fallthru
      _
    // Predicated region
    $region22: #{tpu_custom_call.1} parent=1 // pred_check
      _
    $region23: #{tpu_custom_call.1} parent=1 // pred_check_branch
      %83 = sbr.rel (0) target = $region25
    $region24: #{tpu_custom_call.1} parent=1 // pred_region
      _
    $region25: #{tpu_custom_call.1} parent=1 // pred_fallthru
      _
    // Predicated region
    $region26: #{tpu_custom_call.1} parent=1 // pred_check
      _
    $region27: #{tpu_custom_call.1} parent=1 // pred_check_branch
      %85 = sbr.rel (0) target = $region29
    $region28: #{tpu_custom_call.1} parent=1 // pred_region
      _
    $region29: #{tpu_custom_call.1} parent=1 // pred_fallthru
      _
    // Predicated region
    $region30: #{tpu_custom_call.1} parent=1 // pred_check
      _
    $region31: #{tpu_custom_call.1} parent=1 // pred_check_branch
      %87 = sbr.rel (0) target = $region33
    $region32: #{tpu_custom_call.1} parent=1 // pred_region
      %s89 = ssub.s32 2048, 2048
      %90 = vsyncadd [#allocation12], %s89
      %s91 = sshll.u32 [#allocation11], 4
      %s92 = int_to_ptr.vmem [resolvable:$true] %s91
      %97 = dma.hbm_to_vmem [thread:$0]  %s7, 2048, %s92, [#allocation12], 128, 128, 8
    $region33: #{tpu_custom_call.1} parent=1 // pred_fallthru
      _
    // Predicated region
    $region34: #{tpu_custom_call.1} parent=1 // pred_check
      _
    $region35: #{tpu_custom_call.1} parent=1 // pred_check_branch
      %99 = sbr.rel (0) target = $region37
    $region36: #{tpu_custom_call.1} parent=1 // pred_region
      _
    $region37: #{tpu_custom_call.1} parent=1 // pred_fallthru
      _
    // Predicated region
    $region38: #{tpu_custom_call.1} parent=1 // pred_check
      _
    $region39: #{tpu_custom_call.1} parent=1 // pred_check_branch
      %101 = sbr.rel (0) target = $region41
    $region40: #{tpu_custom_call.1} parent=1 // pred_region
      _
    $region41: #{tpu_custom_call.1} parent=1 // pred_fallthru
      _
    // Predicated region
    $region42: #{tpu_custom_call.1} parent=1 // pred_check
      _
    $region43: #{tpu_custom_call.1} parent=1 // pred_check_branch
      %103 = sbr.rel (0) target = $region45
    $region44: #{tpu_custom_call.1} parent=1 // pred_region
      %s105 = ssub.s32 8192, 8192
      %106 = vsyncadd [#allocation12], %s105
      %s107 = sshll.u32 [#allocation13], 4
      %s108 = int_to_ptr.vmem [resolvable:$true] %s107
      %113 = dma.hbm_to_vmem [thread:$0]  %s10, 8192, %s108, [#allocation12], 256, 256, 16
    $region45: #{tpu_custom_call.1} parent=1 // pred_fallthru
      _
    // Predicated region
    $region46: #{tpu_custom_call.1} parent=1 // pred_check
      _
    $region47: #{tpu_custom_call.1} parent=1 // pred_check_branch
      %115 = sbr.rel (0) target = $region49
    $region48: #{tpu_custom_call.1} parent=1 // pred_region
      _
    $region49: #{tpu_custom_call.1} parent=1 // pred_fallthru
      _
    // Predicated region
    $region50: #{tpu_custom_call.1} parent=1 // pred_check
      _
    $region51: #{tpu_custom_call.1} parent=1 // pred_check_branch
      %117 = sbr.rel (0) target = $region53
    $region52: #{tpu_custom_call.1} parent=1 // pred_region
      %118 = dma.done [#allocation3], 128
    $region53: #{tpu_custom_call.1} parent=1 // pred_fallthru
      _
    // Predicated region
    $region54: #{tpu_custom_call.1} parent=1 // pred_check
      _
    $region55: #{tpu_custom_call.1} parent=1 // pred_check_branch
      %120 = sbr.rel (0) target = $region57
    $region56: #{tpu_custom_call.1} parent=1 // pred_region
      %121 = dma.done [#allocation6], 128
    $region57: #{tpu_custom_call.1} parent=1 // pred_fallthru
      _
    // Predicated region
    $region58: #{tpu_custom_call.1} parent=1 // pred_check
      _
    $region59: #{tpu_custom_call.1} parent=1 // pred_check_branch
      %123 = sbr.rel (0) target = $region61
    $region60: #{tpu_custom_call.1} parent=1 // pred_region
      %124 = dma.done [#allocation6], 2560
    $region61: #{tpu_custom_call.1} parent=1 // pred_fallthru
      _
    // Predicated region
    $region62: #{tpu_custom_call.1} parent=1 // pred_check
      _
    $region63: #{tpu_custom_call.1} parent=1 // pred_check_branch
      %126 = sbr.rel (0) target = $region65
    $region64: #{tpu_custom_call.1} parent=1 // pred_region
      %127 = dma.done [#allocation9], 30720
    $region65: #{tpu_custom_call.1} parent=1 // pred_fallthru
      _
    // Predicated region
    $region66: #{tpu_custom_call.1} parent=1 // pred_check
      _
    $region67: #{tpu_custom_call.1} parent=1 // pred_check_branch
      %129 = sbr.rel (0) target = $region69
    $region68: #{tpu_custom_call.1} parent=1 // pred_region
      %130 = dma.done [#allocation9], 480
    $region69: #{tpu_custom_call.1} parent=1 // pred_fallthru
      _
    // Predicated region
    $region70: #{tpu_custom_call.1} parent=1 // pred_check
      _
    $region71: #{tpu_custom_call.1} parent=1 // pred_check_branch
      %132 = sbr.rel (0) target = $region73
    $region72: #{tpu_custom_call.1} parent=1 // pred_region
      %133 = dma.done [#allocation12], 2048
    $region73: #{tpu_custom_call.1} parent=1 // pred_fallthru
      _
    // Predicated region
    $region74: #{tpu_custom_call.1} parent=1 // pred_check
      _
    $region75: #{tpu_custom_call.1} parent=1 // pred_check_branch
      %135 = sbr.rel (0) target = $region77
    $region76: #{tpu_custom_call.1} parent=1 // pred_region
      %136 = dma.done [#allocation12], 8192
    $region77: #{tpu_custom_call.1} parent=1 // pred_fallthru
      _
    %v138 = vld [vmem:[#allocation2] sm:$0xf]
    %v139 = vld [vmem:[#allocation2 + $0x4] sm:$0xf]
    %v140 = vld [vmem:[#allocation7] sm:$0xff]
    %v141 = vld [vmem:[#allocation7 + $0x8] sm:$0xff]
    %v142 = vld [vmem:[#allocation7 + $0x10] sm:$0xff]
    %v143 = vld [vmem:[#allocation7 + $0x18] sm:$0xff]
    %v144 = vld [vmem:[#allocation7 + $0x20] sm:$0xff]
    %v145 = vld [vmem:[#allocation7 + $0x28] sm:$0xff]
    %v146 = vld [vmem:[#allocation7 + $0x30] sm:$0xff]
    %v147 = vld [vmem:[#allocation7 + $0x38] sm:$0xff]
    %v148 = vld [vmem:[#allocation7 + $0x40] sm:$0xff]
    %v149 = vld [vmem:[#allocation7 + $0x48] sm:$0xff]
    %v150 = vld [vmem:[#allocation7 + $0x50] sm:$0xff]
    %v151 = vld [vmem:[#allocation7 + $0x58] sm:$0xff]
    %v152 = vld [vmem:[#allocation7 + $0x60] sm:$0xff]
    %v153 = vld [vmem:[#allocation7 + $0x68] sm:$0xff]
    %v154 = vld [vmem:[#allocation7 + $0x70] sm:$0xff]
    %v155 = vld [vmem:[#allocation7 + $0x78] sm:$0xff]
    %v156 = vld [vmem:[#allocation7 + $0x80] sm:$0xff]
    %v157 = vld [vmem:[#allocation7 + $0x88] sm:$0xff]
    %v158 = vld [vmem:[#allocation7 + $0x90] sm:$0xff]
    %v159 = vld [vmem:[#allocation7 + $0x98] sm:$0xff]
    %v160 = vld [vmem:[#allocation5] sm:$0xf]
    %v161 = vld [vmem:[#allocation5 + $0x4] sm:$0xf]
    %v164 = vunpack.c.l.b16 %v138
    %v165 = vunpack.c.l.b16 %v139
    %v166 = vpack.c.b16 %v165, %v164
    %v169 = vunpack.c.l.b16 %v160
    %v170 = vunpack.c.l.b16 %v161
    %v171 = vpack.c.b16 %v170, %v169
    %vm173 = vcmask 130048
    %v175 = vsel %vm173, %v166, 0
    %177 = vmatprep.subr.bf16.mxu0 0
    %178 = vmatpush1.bf16.msra.mxu0 %v171
    %179 = vmatprep.subr.bf16.mxu0 0
    %180 = vmatpush1.bf16.msra.mxu0 0
    %181 = vmatprep.subr.bf16.mxu0 0
    %182 = vmatpush1.bf16.msra.mxu0 0
    %183 = vmatprep.subr.bf16.mxu0 0
    %184 = vmatpush1.bf16.msra.mxu0 0
    %185 = vmatprep.subr.bf16.mxu0 0
    %186 = vmatpush1.bf16.msra.mxu0 0
    %187 = vmatprep.subr.bf16.mxu0 0
    %188 = vmatpush1.bf16.msra.mxu0 0
    %189 = vmatprep.subr.bf16.mxu0 0
    %190 = vmatpush1.bf16.msra.mxu0 0
    %191 = vmatprep.subr.bf16.mxu0 0
    %192 = vmatpush1.bf16.msra.mxu0 0
    %193 = vmatprep.subr.bf16.mxu0 0
    %194 = vmatpush1.bf16.msra.mxu0 0
    %195 = vmatprep.subr.bf16.mxu0 0
    %196 = vmatpush1.bf16.msra.mxu0 0
    %197 = vmatprep.subr.bf16.mxu0 0
    %198 = vmatpush1.bf16.msra.mxu0 0
    %199 = vmatprep.subr.bf16.mxu0 0
    %200 = vmatpush1.bf16.msra.mxu0 0
    %201 = vmatprep.subr.bf16.mxu0 0
    %202 = vmatpush1.bf16.msra.mxu0 0
    %203 = vmatprep.subr.bf16.mxu0 0
    %204 = vmatpush1.bf16.msra.mxu0 0
    %205 = vmatprep.subr.bf16.mxu0 0
    %206 = vmatpush1.bf16.msra.mxu0 0
    %207 = vmatprep.subr.bf16.mxu0 0
    %208 = vmatpush1.bf16.msra.mxu0 0
    %209 = vmatprep.mubr.bf16.mxu0 0
    %210 = vmatmul.mubr.bf16.gmra.mrb[0].mxu0 %v175
    %v211 = vpop.f32.mrb[0].mxu0
    %v212 = vadd.f32 0.0, %v211
    %v213 = vpop.f32.mrb[0].mxu0
    %v214 = vpop.f32.mrb[0].mxu0
    %v215 = vadd.f32 0.0, %v214
    %v216 = vpop.f32.mrb[0].mxu0
    %217 = vdwg.mxu0
    %v218 = vpack.c.bf16 %v215, %v212
    %v219 = vld [vmem:[#allocation8] sm:$0xff]
    %v220 = vld [vmem:[#allocation8 + $0x8] sm:$0xff]
    %v221 = vld [vmem:[#allocation8 + $0x10] sm:$0xff]
    %v222 = vld [vmem:[#allocation8 + $0x18] sm:$0xff]
    %v223 = vld [vmem:[#allocation8 + $0x20] sm:$0xff]
    %v224 = vld [vmem:[#allocation8 + $0x28] sm:$0xff]
    %v225 = vld [vmem:[#allocation8 + $0x30] sm:$0xff]
    %v226 = vld [vmem:[#allocation8 + $0x38] sm:$0xff]
    %v227 = vld [vmem:[#allocation8 + $0x40] sm:$0xff]
    %v228 = vld [vmem:[#allocation8 + $0x48] sm:$0xff]
    %v229 = vld [vmem:[#allocation8 + $0x50] sm:$0xff]
    %v230 = vld [vmem:[#allocation8 + $0x58] sm:$0xff]
    %v231 = vld [vmem:[#allocation8 + $0x60] sm:$0xff]
    %v232 = vld [vmem:[#allocation8 + $0x68] sm:$0xff]
    %v233 = vld [vmem:[#allocation8 + $0x70] sm:$0xff]
    %v234 = vld [vmem:[#allocation8 + $0x78] sm:$0xff]
    %v235 = vld [vmem:[#allocation8 + $0x80] sm:$0xff]
    %v236 = vld [vmem:[#allocation8 + $0x88] sm:$0xff]
    %v237 = vld [vmem:[#allocation8 + $0x90] sm:$0xff]
    %v238 = vld [vmem:[#allocation8 + $0x98] sm:$0xff]
    %v239 = vld [vmem:[#allocation8 + $0xa0] sm:$0xff]
    %v240 = vld [vmem:[#allocation8 + $0xa8] sm:$0xff]
    %v241 = vld [vmem:[#allocation8 + $0xb0] sm:$0xff]
    %v242 = vld [vmem:[#allocation8 + $0xb8] sm:$0xff]
    %v243 = vld [vmem:[#allocation8 + $0xc0] sm:$0xff]
    %v244 = vld [vmem:[#allocation8 + $0xc8] sm:$0xff]
    %v245 = vld [vmem:[#allocation8 + $0xd0] sm:$0xff]
    %v246 = vld [vmem:[#allocation8 + $0xd8] sm:$0xff]
    %v247 = vld [vmem:[#allocation8 + $0xe0] sm:$0xff]
    %v248 = vld [vmem:[#allocation8 + $0xe8] sm:$0xff]
    %v249 = vld [vmem:[#allocation8 + $0xf0] sm:$0xff]
    %v250 = vld [vmem:[#allocation8 + $0xf8] sm:$0xff]
    %v251 = vld [vmem:[#allocation8 + $0x100] sm:$0xff]
    %v252 = vld [vmem:[#allocation8 + $0x108] sm:$0xff]
    %v253 = vld [vmem:[#allocation8 + $0x110] sm:$0xff]
    %v254 = vld [vmem:[#allocation8 + $0x118] sm:$0xff]
    %v255 = vld [vmem:[#allocation8 + $0x120] sm:$0xff]
    %v256 = vld [vmem:[#allocation8 + $0x128] sm:$0xff]
    %v257 = vld [vmem:[#allocation8 + $0x130] sm:$0xff]
    %v258 = vld [vmem:[#allocation8 + $0x138] sm:$0xff]
    %v259 = vld [vmem:[#allocation8 + $0x140] sm:$0xff]
    %v260 = vld [vmem:[#allocation8 + $0x148] sm:$0xff]
    %v261 = vld [vmem:[#allocation8 + $0x150] sm:$0xff]
    %v262 = vld [vmem:[#allocation8 + $0x158] sm:$0xff]
    %v263 = vld [vmem:[#allocation8 + $0x160] sm:$0xff]
    %v264 = vld [vmem:[#allocation8 + $0x168] sm:$0xff]
    %v265 = vld [vmem:[#allocation8 + $0x170] sm:$0xff]
    %v266 = vld [vmem:[#allocation8 + $0x178] sm:$0xff]
    %v267 = vld [vmem:[#allocation8 + $0x180] sm:$0xff]
    %v268 = vld [vmem:[#allocation8 + $0x188] sm:$0xff]
    %v269 = vld [vmem:[#allocation8 + $0x190] sm:$0xff]
    %v270 = vld [vmem:[#allocation8 + $0x198] sm:$0xff]
    %v271 = vld [vmem:[#allocation8 + $0x1a0] sm:$0xff]
    %v272 = vld [vmem:[#allocation8 + $0x1a8] sm:$0xff]
    %v273 = vld [vmem:[#allocation8 + $0x1b0] sm:$0xff]
    %v274 = vld [vmem:[#allocation8 + $0x1b8] sm:$0xff]
    %v275 = vld [vmem:[#allocation8 + $0x1c0] sm:$0xff]
    %v276 = vld [vmem:[#allocation8 + $0x1c8] sm:$0xff]
    %v277 = vld [vmem:[#allocation8 + $0x1d0] sm:$0xff]
    %v278 = vld [vmem:[#allocation8 + $0x1d8] sm:$0xff]
    %v279 = vld [vmem:[#allocation8 + $0x1e0] sm:$0xff]
    %v280 = vld [vmem:[#allocation8 + $0x1e8] sm:$0xff]
    %v281 = vld [vmem:[#allocation8 + $0x1f0] sm:$0xff]
    %v282 = vld [vmem:[#allocation8 + $0x1f8] sm:$0xff]
    %v283 = vld [vmem:[#allocation8 + $0x200] sm:$0xff]
    %v284 = vld [vmem:[#allocation8 + $0x208] sm:$0xff]
    %v285 = vld [vmem:[#allocation8 + $0x210] sm:$0xff]
    %v286 = vld [vmem:[#allocation8 + $0x218] sm:$0xff]
    %v287 = vld [vmem:[#allocation8 + $0x220] sm:$0xff]
    %v288 = vld [vmem:[#allocation8 + $0x228] sm:$0xff]
    %v289 = vld [vmem:[#allocation8 + $0x230] sm:$0xff]
    %v290 = vld [vmem:[#allocation8 + $0x238] sm:$0xff]
    %v291 = vld [vmem:[#allocation8 + $0x240] sm:$0xff]
    %v292 = vld [vmem:[#allocation8 + $0x248] sm:$0xff]
    %v293 = vld [vmem:[#allocation8 + $0x250] sm:$0xff]
    %v294 = vld [vmem:[#allocation8 + $0x258] sm:$0xff]
    %v295 = vld [vmem:[#allocation8 + $0x260] sm:$0xff]
    %v296 = vld [vmem:[#allocation8 + $0x268] sm:$0xff]
    %v297 = vld [vmem:[#allocation8 + $0x270] sm:$0xff]
    %v298 = vld [vmem:[#allocation8 + $0x278] sm:$0xff]
    %v299 = vld [vmem:[#allocation10] sm:$0xff]
    %v300 = vld [vmem:[#allocation10 + $0x8] sm:$0x3]
    %v303 = vlaneseq
    %v304 = vshrl.u32 %v303, 7
    %v305 = vsub.s32 0, %v304
    %v306 = vrot.slane %v299, %v305
    %v307 = vlaneseq
    %v308 = vshrl.u32 %v307, 7
    %v309 = vsub.s32 1, %v308
    %v310 = vrot.slane %v299, %v309
    %v311 = vlaneseq
    %v312 = vshrl.u32 %v311, 7
    %v313 = vsub.s32 2, %v312
    %v314 = vrot.slane %v299, %v313
    %v315 = vlaneseq
    %v316 = vshrl.u32 %v315, 7
    %v317 = vsub.s32 3, %v316
    %v318 = vrot.slane %v299, %v317
    %v319 = vlaneseq
    %v320 = vshrl.u32 %v319, 7
    %v321 = vsub.s32 4, %v320
    %v322 = vrot.slane %v299, %v321
    %v323 = vlaneseq
    %v324 = vshrl.u32 %v323, 7
    %v325 = vsub.s32 5, %v324
    %v326 = vrot.slane %v299, %v325
    %v327 = vlaneseq
    %v328 = vshrl.u32 %v327, 7
    %v329 = vsub.s32 6, %v328
    %v330 = vrot.slane %v299, %v329
    %v331 = vlaneseq
    %v332 = vshrl.u32 %v331, 7
    %v333 = vsub.s32 7, %v332
    %v334 = vrot.slane %v299, %v333
    %v335 = vlaneseq
    %v336 = vshrl.u32 %v335, 7
    %v337 = vsub.s32 0, %v336
    %v338 = vrot.slane %v300, %v337
    %v339 = vlaneseq
    %v340 = vshrl.u32 %v339, 7
    %v341 = vsub.s32 1, %v340
    %v342 = vrot.slane %v300, %v341
    %v433 = vunpack.c.l.b16 %v219
    %v434 = vunpack.c.h.b16 %v219
    %v435 = vunpack.c.l.b16 %v220
    %v436 = vunpack.c.h.b16 %v220
    %v437 = vunpack.c.l.b16 %v221
    %v438 = vunpack.c.h.b16 %v221
    %v439 = vunpack.c.l.b16 %v222
    %v440 = vunpack.c.h.b16 %v222
    %v441 = vunpack.c.l.b16 %v223
    %v442 = vunpack.c.h.b16 %v223
    %v443 = vunpack.c.l.b16 %v224
    %v444 = vunpack.c.h.b16 %v224
    %v445 = vunpack.c.l.b16 %v225
    %v446 = vunpack.c.h.b16 %v225
    %v447 = vunpack.c.l.b16 %v226
    %v448 = vunpack.c.h.b16 %v226
    %v449 = vunpack.c.l.b16 %v227
    %v450 = vunpack.c.h.b16 %v227
    %v451 = vunpack.c.l.b16 %v228
    %v452 = vunpack.c.h.b16 %v228
    %v453 = vunpack.c.l.b16 %v229
    %v454 = vunpack.c.h.b16 %v229
    %v455 = vunpack.c.l.b16 %v230
    %v456 = vunpack.c.h.b16 %v230
    %v457 = vunpack.c.l.b16 %v231
    %v458 = vunpack.c.h.b16 %v231
    %v459 = vunpack.c.l.b16 %v232
    %v460 = vunpack.c.h.b16 %v232
    %v461 = vunpack.c.l.b16 %v233
    %v462 = vunpack.c.h.b16 %v233
    %v463 = vunpack.c.l.b16 %v234
    %v464 = vunpack.c.h.b16 %v234
    %v465 = vunpack.c.l.b16 %v235
    %v466 = vunpack.c.h.b16 %v235
    %v467 = vunpack.c.l.b16 %v236
    %v468 = vunpack.c.h.b16 %v236
    %v469 = vunpack.c.l.b16 %v237
    %v470 = vunpack.c.h.b16 %v237
    %v471 = vunpack.c.l.b16 %v238
    %v472 = vunpack.c.h.b16 %v238
    %v473 = vunpack.c.l.b16 %v239
    %v474 = vunpack.c.h.b16 %v239
    %v475 = vunpack.c.l.b16 %v240
    %v476 = vunpack.c.h.b16 %v240
    %v477 = vunpack.c.l.b16 %v241
    %v478 = vunpack.c.h.b16 %v241
    %v479 = vunpack.c.l.b16 %v242
    %v480 = vunpack.c.h.b16 %v242
    %v481 = vunpack.c.l.b16 %v243
    %v482 = vunpack.c.h.b16 %v243
    %v483 = vunpack.c.l.b16 %v244
    %v484 = vunpack.c.h.b16 %v244
    %v485 = vunpack.c.l.b16 %v245
    %v486 = vunpack.c.h.b16 %v245
    %v487 = vunpack.c.l.b16 %v246
    %v488 = vunpack.c.h.b16 %v246
    %v489 = vunpack.c.l.b16 %v247
    %v490 = vunpack.c.h.b16 %v247
    %v491 = vunpack.c.l.b16 %v248
    %v492 = vunpack.c.h.b16 %v248
    %v493 = vunpack.c.l.b16 %v249
    %v494 = vunpack.c.h.b16 %v249
    %v495 = vunpack.c.l.b16 %v250
    %v496 = vunpack.c.h.b16 %v250
    %v497 = vunpack.c.l.b16 %v251
    %v498 = vunpack.c.h.b16 %v251
    %v499 = vunpack.c.l.b16 %v252
    %v500 = vunpack.c.h.b16 %v252
    %v501 = vunpack.c.l.b16 %v253
    %v502 = vunpack.c.h.b16 %v253
    %v503 = vunpack.c.l.b16 %v254
    %v504 = vunpack.c.h.b16 %v254
    %v505 = vunpack.c.l.b16 %v255
    %v506 = vunpack.c.h.b16 %v255
    %v507 = vunpack.c.l.b16 %v256
    %v508 = vunpack.c.h.b16 %v256
    %v509 = vunpack.c.l.b16 %v257
    %v510 = vunpack.c.h.b16 %v257
    %v511 = vunpack.c.l.b16 %v258
    %v512 = vunpack.c.h.b16 %v258
    %v513 = vunpack.c.l.b16 %v259
    %v514 = vunpack.c.h.b16 %v259
    %v515 = vunpack.c.l.b16 %v260
    %v516 = vunpack.c.h.b16 %v260
    %v517 = vunpack.c.l.b16 %v261
    %v518 = vunpack.c.h.b16 %v261
    %v519 = vunpack.c.l.b16 %v262
    %v520 = vunpack.c.h.b16 %v262
    %v521 = vunpack.c.l.b16 %v263
    %v522 = vunpack.c.h.b16 %v263
    %v523 = vunpack.c.l.b16 %v264
    %v524 = vunpack.c.h.b16 %v264
    %v525 = vunpack.c.l.b16 %v265
    %v526 = vunpack.c.h.b16 %v265
    %v527 = vunpack.c.l.b16 %v266
    %v528 = vunpack.c.h.b16 %v266
    %v529 = vunpack.c.l.b16 %v267
    %v530 = vunpack.c.h.b16 %v267
    %v531 = vunpack.c.l.b16 %v268
    %v532 = vunpack.c.h.b16 %v268
    %v533 = vunpack.c.l.b16 %v269
    %v534 = vunpack.c.h.b16 %v269
    %v535 = vunpack.c.l.b16 %v270
    %v536 = vunpack.c.h.b16 %v270
    %v537 = vunpack.c.l.b16 %v271
    %v538 = vunpack.c.h.b16 %v271
    %v539 = vunpack.c.l.b16 %v272
    %v540 = vunpack.c.h.b16 %v272
    %v541 = vunpack.c.l.b16 %v273
    %v542 = vunpack.c.h.b16 %v273
    %v543 = vunpack.c.l.b16 %v274
    %v544 = vunpack.c.h.b16 %v274
    %v545 = vunpack.c.l.b16 %v275
    %v546 = vunpack.c.h.b16 %v275
    %v547 = vunpack.c.l.b16 %v276
    %v548 = vunpack.c.h.b16 %v276
    %v549 = vunpack.c.l.b16 %v277
    %v550 = vunpack.c.h.b16 %v277
    %v551 = vunpack.c.l.b16 %v278
    %v552 = vunpack.c.h.b16 %v278
    %v553 = vunpack.c.l.b16 %v279
    %v554 = vunpack.c.h.b16 %v279
    %v555 = vunpack.c.l.b16 %v280
    %v556 = vunpack.c.h.b16 %v280
    %v557 = vunpack.c.l.b16 %v281
    %v558 = vunpack.c.h.b16 %v281
    %v559 = vunpack.c.l.b16 %v282
    %v560 = vunpack.c.h.b16 %v282
    %v561 = vunpack.c.l.b16 %v283
    %v562 = vunpack.c.h.b16 %v283
    %v563 = vunpack.c.l.b16 %v284
    %v564 = vunpack.c.h.b16 %v284
    %v565 = vunpack.c.l.b16 %v285
    %v566 = vunpack.c.h.b16 %v285
    %v567 = vunpack.c.l.b16 %v286
    %v568 = vunpack.c.h.b16 %v286
    %v569 = vunpack.c.l.b16 %v287
    %v570 = vunpack.c.h.b16 %v287
    %v571 = vunpack.c.l.b16 %v288
    %v572 = vunpack.c.h.b16 %v288
    %v573 = vunpack.c.l.b16 %v289
    %v574 = vunpack.c.h.b16 %v289
    %v575 = vunpack.c.l.b16 %v290
    %v576 = vunpack.c.h.b16 %v290
    %v577 = vunpack.c.l.b16 %v291
    %v578 = vunpack.c.h.b16 %v291
    %v579 = vunpack.c.l.b16 %v292
    %v580 = vunpack.c.h.b16 %v292
    %v581 = vunpack.c.l.b16 %v293
    %v582 = vunpack.c.h.b16 %v293
    %v583 = vunpack.c.l.b16 %v294
    %v584 = vunpack.c.h.b16 %v294
    %v585 = vunpack.c.l.b16 %v295
    %v586 = vunpack.c.h.b16 %v295
    %v587 = vunpack.c.l.b16 %v296
    %v588 = vunpack.c.h.b16 %v296
    %v589 = vunpack.c.l.b16 %v297
    %v590 = vunpack.c.h.b16 %v297
    %v591 = vunpack.c.l.b16 %v298
    %v592 = vunpack.c.h.b16 %v298
    %v593 = vpack.c.b16 %v443, %v433
    %v594 = vpack.c.b16 %v444, %v434
    %v595 = vpack.c.b16 %v445, %v435
    %v596 = vpack.c.b16 %v446, %v436
    %v597 = vpack.c.b16 %v447, %v437
    %v598 = vpack.c.b16 %v448, %v438
    %v599 = vpack.c.b16 %v449, %v439
    %v600 = vpack.c.b16 %v450, %v440
    %v601 = vpack.c.b16 %v451, %v441
    %v602 = vpack.c.b16 %v452, %v442
    %v603 = vpack.c.b16 %v463, %v453
    %v604 = vpack.c.b16 %v464, %v454
    %v605 = vpack.c.b16 %v465, %v455
    %v606 = vpack.c.b16 %v466, %v456
    %v607 = vpack.c.b16 %v467, %v457
    %v608 = vpack.c.b16 %v468, %v458
    %v609 = vpack.c.b16 %v469, %v459
    %v610 = vpack.c.b16 %v470, %v460
    %v611 = vpack.c.b16 %v471, %v461
    %v612 = vpack.c.b16 %v472, %v462
    %v613 = vpack.c.b16 %v483, %v473
    %v614 = vpack.c.b16 %v484, %v474
    %v615 = vpack.c.b16 %v485, %v475
    %v616 = vpack.c.b16 %v486, %v476
    %v617 = vpack.c.b16 %v487, %v477
    %v618 = vpack.c.b16 %v488, %v478
    %v619 = vpack.c.b16 %v489, %v479
    %v620 = vpack.c.b16 %v490, %v480
    %v621 = vpack.c.b16 %v491, %v481
    %v622 = vpack.c.b16 %v492, %v482
    %v623 = vpack.c.b16 %v503, %v493
    %v624 = vpack.c.b16 %v504, %v494
    %v625 = vpack.c.b16 %v505, %v495
    %v626 = vpack.c.b16 %v506, %v496
    %v627 = vpack.c.b16 %v507, %v497
    %v628 = vpack.c.b16 %v508, %v498
    %v629 = vpack.c.b16 %v509, %v499
    %v630 = vpack.c.b16 %v510, %v500
    %v631 = vpack.c.b16 %v511, %v501
    %v632 = vpack.c.b16 %v512, %v502
    %v633 = vpack.c.b16 %v523, %v513
    %v634 = vpack.c.b16 %v524, %v514
    %v635 = vpack.c.b16 %v525, %v515
    %v636 = vpack.c.b16 %v526, %v516
    %v637 = vpack.c.b16 %v527, %v517
    %v638 = vpack.c.b16 %v528, %v518
    %v639 = vpack.c.b16 %v529, %v519
    %v640 = vpack.c.b16 %v530, %v520
    %v641 = vpack.c.b16 %v531, %v521
    %v642 = vpack.c.b16 %v532, %v522
    %v643 = vpack.c.b16 %v543, %v533
    %v644 = vpack.c.b16 %v544, %v534
    %v645 = vpack.c.b16 %v545, %v535
    %v646 = vpack.c.b16 %v546, %v536
    %v647 = vpack.c.b16 %v547, %v537
    %v648 = vpack.c.b16 %v548, %v538
    %v649 = vpack.c.b16 %v549, %v539
    %v650 = vpack.c.b16 %v550, %v540
    %v651 = vpack.c.b16 %v551, %v541
    %v652 = vpack.c.b16 %v552, %v542
    %v653 = vpack.c.b16 %v563, %v553
    %v654 = vpack.c.b16 %v564, %v554
    %v655 = vpack.c.b16 %v565, %v555
    %v656 = vpack.c.b16 %v566, %v556
    %v657 = vpack.c.b16 %v567, %v557
    %v658 = vpack.c.b16 %v568, %v558
    %v659 = vpack.c.b16 %v569, %v559
    %v660 = vpack.c.b16 %v570, %v560
    %v661 = vpack.c.b16 %v571, %v561
    %v662 = vpack.c.b16 %v572, %v562
    %v663 = vpack.c.b16 %v583, %v573
    %v664 = vpack.c.b16 %v584, %v574
    %v665 = vpack.c.b16 %v585, %v575
    %v666 = vpack.c.b16 %v586, %v576
    %v667 = vpack.c.b16 %v587, %v577
    %v668 = vpack.c.b16 %v588, %v578
    %v669 = vpack.c.b16 %v589, %v579
    %v670 = vpack.c.b16 %v590, %v580
    %v671 = vpack.c.b16 %v591, %v581
    %v672 = vpack.c.b16 %v592, %v582
    %753 = vmatprep.subr.bf16.mxu0 %v594
    %754 = vmatpush1.bf16.msra.mxu0 %v593
    %755 = vmatprep.subr.bf16.mxu0 %v604
    %756 = vmatpush1.bf16.msra.mxu0 %v603
    %757 = vmatprep.subr.bf16.mxu0 %v614
    %758 = vmatpush1.bf16.msra.mxu0 %v613
    %759 = vmatprep.subr.bf16.mxu0 %v624
    %760 = vmatpush1.bf16.msra.mxu0 %v623
    %761 = vmatprep.subr.bf16.mxu0 %v634
    %762 = vmatpush1.bf16.msra.mxu0 %v633
    %763 = vmatprep.subr.bf16.mxu0 %v644
    %764 = vmatpush1.bf16.msra.mxu0 %v643
    %765 = vmatprep.subr.bf16.mxu0 %v654
    %766 = vmatpush1.bf16.msra.mxu0 %v653
    %767 = vmatprep.subr.bf16.mxu0 %v664
    %768 = vmatpush1.bf16.msra.mxu0 %v663
    %769 = vmatprep.subr.bf16.mxu0 0
    %770 = vmatpush1.bf16.msra.mxu0 0
    %771 = vmatprep.subr.bf16.mxu0 0
    %772 = vmatpush1.bf16.msra.mxu0 0
    %773 = vmatprep.subr.bf16.mxu0 0
    %774 = vmatpush1.bf16.msra.mxu0 0
    %775 = vmatprep.subr.bf16.mxu0 0
    %776 = vmatpush1.bf16.msra.mxu0 0
    %777 = vmatprep.subr.bf16.mxu0 0
    %778 = vmatpush1.bf16.msra.mxu0 0
    %779 = vmatprep.subr.bf16.mxu0 0
    %780 = vmatpush1.bf16.msra.mxu0 0
    %781 = vmatprep.subr.bf16.mxu0 0
    %782 = vmatpush1.bf16.msra.mxu0 0
    %783 = vmatprep.subr.bf16.mxu0 0
    %784 = vmatpush1.bf16.msra.mxu0 0
    %785 = vmatprep.mubr.bf16.mxu0 0
    %786 = vmatmul.mubr.bf16.gmra.mrb[0].mxu0 %v218
    %v787 = vpop.f32.mrb[0].mxu0
    %v788 = vadd.f32 %v306, %v787
    %v789 = vpop.f32.mrb[0].mxu0
    %v790 = vadd.f32 %v310, %v789
    %v791 = vpop.f32.mrb[0].mxu0
    %v792 = vadd.f32 %v306, %v791
    %v793 = vpop.f32.mrb[0].mxu0
    %v794 = vadd.f32 %v310, %v793
    %795 = vdwg.mxu0
    %796 = vmatprep.subr.bf16.mxu0 %v596
    %797 = vmatpush1.bf16.msra.mxu0 %v595
    %798 = vmatprep.subr.bf16.mxu0 %v606
    %799 = vmatpush1.bf16.msra.mxu0 %v605
    %800 = vmatprep.subr.bf16.mxu0 %v616
    %801 = vmatpush1.bf16.msra.mxu0 %v615
    %802 = vmatprep.subr.bf16.mxu0 %v626
    %803 = vmatpush1.bf16.msra.mxu0 %v625
    %804 = vmatprep.subr.bf16.mxu0 %v636
    %805 = vmatpush1.bf16.msra.mxu0 %v635
    %806 = vmatprep.subr.bf16.mxu0 %v646
    %807 = vmatpush1.bf16.msra.mxu0 %v645
    %808 = vmatprep.subr.bf16.mxu0 %v656
    %809 = vmatpush1.bf16.msra.mxu0 %v655
    %810 = vmatprep.subr.bf16.mxu0 %v666
    %811 = vmatpush1.bf16.msra.mxu0 %v665
    %812 = vmatprep.subr.bf16.mxu0 0
    %813 = vmatpush1.bf16.msra.mxu0 0
    %814 = vmatprep.subr.bf16.mxu0 0
    %815 = vmatpush1.bf16.msra.mxu0 0
    %816 = vmatprep.subr.bf16.mxu0 0
    %817 = vmatpush1.bf16.msra.mxu0 0
    %818 = vmatprep.subr.bf16.mxu0 0
    %819 = vmatpush1.bf16.msra.mxu0 0
    %820 = vmatprep.subr.bf16.mxu0 0
    %821 = vmatpush1.bf16.msra.mxu0 0
    %822 = vmatprep.subr.bf16.mxu0 0
    %823 = vmatpush1.bf16.msra.mxu0 0
    %824 = vmatprep.subr.bf16.mxu0 0
    %825 = vmatpush1.bf16.msra.mxu0 0
    %826 = vmatprep.subr.bf16.mxu0 0
    %827 = vmatpush1.bf16.msra.mxu0 0
    %828 = vmatprep.mubr.bf16.mxu0 0
    %829 = vmatmul.mubr.bf16.gmra.mrb[0].mxu0 %v218
    %v830 = vpop.f32.mrb[0].mxu0
    %v831 = vadd.f32 %v314, %v830
    %v832 = vpop.f32.mrb[0].mxu0
    %v833 = vadd.f32 %v318, %v832
    %v834 = vpop.f32.mrb[0].mxu0
    %v835 = vadd.f32 %v314, %v834
    %v836 = vpop.f32.mrb[0].mxu0
    %v837 = vadd.f32 %v318, %v836
    %838 = vdwg.mxu0
    %839 = vmatprep.subr.bf16.mxu0 %v598
    %840 = vmatpush1.bf16.msra.mxu0 %v597
    %841 = vmatprep.subr.bf16.mxu0 %v608
    %842 = vmatpush1.bf16.msra.mxu0 %v607
    %843 = vmatprep.subr.bf16.mxu0 %v618
    %844 = vmatpush1.bf16.msra.mxu0 %v617
    %845 = vmatprep.subr.bf16.mxu0 %v628
    %846 = vmatpush1.bf16.msra.mxu0 %v627
    %847 = vmatprep.subr.bf16.mxu0 %v638
    %848 = vmatpush1.bf16.msra.mxu0 %v637
    %849 = vmatprep.subr.bf16.mxu0 %v648
    %850 = vmatpush1.bf16.msra.mxu0 %v647
    %851 = vmatprep.subr.bf16.mxu0 %v658
    %852 = vmatpush1.bf16.msra.mxu0 %v657
    %853 = vmatprep.subr.bf16.mxu0 %v668
    %854 = vmatpush1.bf16.msra.mxu0 %v667
    %855 = vmatprep.subr.bf16.mxu0 0
    %856 = vmatpush1.bf16.msra.mxu0 0
    %857 = vmatprep.subr.bf16.mxu0 0
    %858 = vmatpush1.bf16.msra.mxu0 0
    %859 = vmatprep.subr.bf16.mxu0 0
    %860 = vmatpush1.bf16.msra.mxu0 0
    %861 = vmatprep.subr.bf16.mxu0 0
    %862 = vmatpush1.bf16.msra.mxu0 0
    %863 = vmatprep.subr.bf16.mxu0 0
    %864 = vmatpush1.bf16.msra.mxu0 0
    %865 = vmatprep.subr.bf16.mxu0 0
    %866 = vmatpush1.bf16.msra.mxu0 0
    %867 = vmatprep.subr.bf16.mxu0 0
    %868 = vmatpush1.bf16.msra.mxu0 0
    %869 = vmatprep.subr.bf16.mxu0 0
    %870 = vmatpush1.bf16.msra.mxu0 0
    %871 = vmatprep.mubr.bf16.mxu0 0
    %872 = vmatmul.mubr.bf16.gmra.mrb[0].mxu0 %v218
    %v873 = vpop.f32.mrb[0].mxu0
    %v874 = vadd.f32 %v322, %v873
    %v875 = vpop.f32.mrb[0].mxu0
    %v876 = vadd.f32 %v326, %v875
    %v877 = vpop.f32.mrb[0].mxu0
    %v878 = vadd.f32 %v322, %v877
    %v879 = vpop.f32.mrb[0].mxu0
    %v880 = vadd.f32 %v326, %v879
    %881 = vdwg.mxu0
    %882 = vmatprep.subr.bf16.mxu0 %v600
    %883 = vmatpush1.bf16.msra.mxu0 %v599
    %884 = vmatprep.subr.bf16.mxu0 %v610
    %885 = vmatpush1.bf16.msra.mxu0 %v609
    %886 = vmatprep.subr.bf16.mxu0 %v620
    %887 = vmatpush1.bf16.msra.mxu0 %v619
    %888 = vmatprep.subr.bf16.mxu0 %v630
    %889 = vmatpush1.bf16.msra.mxu0 %v629
    %890 = vmatprep.subr.bf16.mxu0 %v640
    %891 = vmatpush1.bf16.msra.mxu0 %v639
    %892 = vmatprep.subr.bf16.mxu0 %v650
    %893 = vmatpush1.bf16.msra.mxu0 %v649
    %894 = vmatprep.subr.bf16.mxu0 %v660
    %895 = vmatpush1.bf16.msra.mxu0 %v659
    %896 = vmatprep.subr.bf16.mxu0 %v670
    %897 = vmatpush1.bf16.msra.mxu0 %v669
    %898 = vmatprep.subr.bf16.mxu0 0
    %899 = vmatpush1.bf16.msra.mxu0 0
    %900 = vmatprep.subr.bf16.mxu0 0
    %901 = vmatpush1.bf16.msra.mxu0 0
    %902 = vmatprep.subr.bf16.mxu0 0
    %903 = vmatpush1.bf16.msra.mxu0 0
    %904 = vmatprep.subr.bf16.mxu0 0
    %905 = vmatpush1.bf16.msra.mxu0 0
    %906 = vmatprep.subr.bf16.mxu0 0
    %907 = vmatpush1.bf16.msra.mxu0 0
    %908 = vmatprep.subr.bf16.mxu0 0
    %909 = vmatpush1.bf16.msra.mxu0 0
    %910 = vmatprep.subr.bf16.mxu0 0
    %911 = vmatpush1.bf16.msra.mxu0 0
    %912 = vmatprep.subr.bf16.mxu0 0
    %913 = vmatpush1.bf16.msra.mxu0 0
    %914 = vmatprep.mubr.bf16.mxu0 0
    %915 = vmatmul.mubr.bf16.gmra.mrb[0].mxu0 %v218
    %v916 = vpop.f32.mrb[0].mxu0
    %v917 = vadd.f32 %v330, %v916
    %v918 = vpop.f32.mrb[0].mxu0
    %v919 = vadd.f32 %v334, %v918
    %v920 = vpop.f32.mrb[0].mxu0
    %v921 = vadd.f32 %v330, %v920
    %v922 = vpop.f32.mrb[0].mxu0
    %v923 = vadd.f32 %v334, %v922
    %924 = vdwg.mxu0
    %925 = vmatprep.subr.bf16.mxu0 %v602
    %926 = vmatpush1.bf16.msra.mxu0 %v601
    %927 = vmatprep.subr.bf16.mxu0 %v612
    %928 = vmatpush1.bf16.msra.mxu0 %v611
    %929 = vmatprep.subr.bf16.mxu0 %v622
    %930 = vmatpush1.bf16.msra.mxu0 %v621
    %931 = vmatprep.subr.bf16.mxu0 %v632
    %932 = vmatpush1.bf16.msra.mxu0 %v631
    %933 = vmatprep.subr.bf16.mxu0 %v642
    %934 = vmatpush1.bf16.msra.mxu0 %v641
    %935 = vmatprep.subr.bf16.mxu0 %v652
    %936 = vmatpush1.bf16.msra.mxu0 %v651
    %937 = vmatprep.subr.bf16.mxu0 %v662
    %938 = vmatpush1.bf16.msra.mxu0 %v661
    %939 = vmatprep.subr.bf16.mxu0 %v672
    %940 = vmatpush1.bf16.msra.mxu0 %v671
    %941 = vmatprep.subr.bf16.mxu0 0
    %942 = vmatpush1.bf16.msra.mxu0 0
    %943 = vmatprep.subr.bf16.mxu0 0
    %944 = vmatpush1.bf16.msra.mxu0 0
    %945 = vmatprep.subr.bf16.mxu0 0
    %946 = vmatpush1.bf16.msra.mxu0 0
    %947 = vmatprep.subr.bf16.mxu0 0
    %948 = vmatpush1.bf16.msra.mxu0 0
    %949 = vmatprep.subr.bf16.mxu0 0
    %950 = vmatpush1.bf16.msra.mxu0 0
    %951 = vmatprep.subr.bf16.mxu0 0
    %952 = vmatpush1.bf16.msra.mxu0 0
    %953 = vmatprep.subr.bf16.mxu0 0
    %954 = vmatpush1.bf16.msra.mxu0 0
    %955 = vmatprep.subr.bf16.mxu0 0
    %956 = vmatpush1.bf16.msra.mxu0 0
    %957 = vmatprep.mubr.bf16.mxu0 0
    %958 = vmatmul.mubr.bf16.gmra.mrb[0].mxu0 %v218
    %v959 = vpop.f32.mrb[0].mxu0
    %v960 = vadd.f32 %v338, %v959
    %v961 = vpop.f32.mrb[0].mxu0
    %v962 = vadd.f32 %v342, %v961
    %v963 = vpop.f32.mrb[0].mxu0
    %v964 = vadd.f32 %v338, %v963
    %v965 = vpop.f32.mrb[0].mxu0
    %v966 = vadd.f32 %v342, %v965
    %967 = vdwg.mxu0
    %v968 = vmul.f32 %v788, %v140
    %v969 = vmul.f32 %v790, %v141
    %v970 = vmul.f32 %v831, %v142
    %v971 = vmul.f32 %v833, %v143
    %v972 = vmul.f32 %v874, %v144
    %v973 = vmul.f32 %v876, %v145
    %v974 = vmul.f32 %v917, %v146
    %v975 = vmul.f32 %v919, %v147
    %v976 = vmul.f32 %v960, %v148
    %v977 = vmul.f32 %v962, %v149
    %v978 = vmul.f32 %v792, %v150
    %v979 = vmul.f32 %v794, %v151
    %v980 = vmul.f32 %v835, %v152
    %v981 = vmul.f32 %v837, %v153
    %v982 = vmul.f32 %v878, %v154
    %v983 = vmul.f32 %v880, %v155
    %v984 = vmul.f32 %v921, %v156
    %v985 = vmul.f32 %v923, %v157
    %v986 = vmul.f32 %v964, %v158
    %v987 = vmul.f32 %v966, %v159
    %v988 = vadd.f32 %v968, %v969
    %v989 = vadd.f32 %v978, %v979
    %v990 = vadd.f32 %v988, %v970
    %v991 = vadd.f32 %v989, %v980
    %v992 = vadd.f32 %v990, %v971
    %v993 = vadd.f32 %v991, %v981
    %v994 = vadd.f32 %v992, %v972
    %v995 = vadd.f32 %v993, %v982
    %v996 = vadd.f32 %v994, %v973
    %v997 = vadd.f32 %v995, %v983
    %v998 = vadd.f32 %v996, %v974
    %v999 = vadd.f32 %v997, %v984
    %v1000 = vadd.f32 %v998, %v975
    %v1001 = vadd.f32 %v999, %v985
    %v1002 = vadd.f32 %v1000, %v976
    %v1003 = vadd.f32 %v1001, %v986
    %v1004 = vadd.f32 %v1002, %v977
    %v1005 = vadd.f32 %v1003, %v987
    %v1006 = vmax.f32 %v1004, 0.0
    %v1007 = vmax.f32 %v1005, 0.0
    %v1008 = vld [vmem:[%s5] sm:$0x1]
    %v1010 = vlaneseq
    %v1011 = vshrl.u32 %v1010, 7
    %v1012 = vsub.s32 0, %v1011
    %v1013 = vrot.slane %v1008, %v1012
    %v1015 = vmul.f32 %v1006, %v1013
    %v1016 = vmul.f32 %v1007, %v1013
    %v1017 = vld [vmem:[%s6] sm:$0x1]
    %v1019 = vlaneseq
    %v1020 = vshrl.u32 %v1019, 7
    %v1021 = vsub.s32 0, %v1020
    %v1022 = vrot.slane %v1017, %v1021
    %v1024 = vadd.f32 %v1015, %v1022
    %v1025 = vadd.f32 %v1016, %v1022
    %v1026 = vpack.c.bf16 %v1025, %v1024
    %1027 = vmatprep.subr.bf16.mxu0 0
    %1028 = vmatpush1.bf16.msra.mxu0 %v1026
    %1029 = vmatprep.subr.bf16.mxu0 0
    %1030 = vmatpush1.bf16.msra.mxu0 0
    %1031 = vmatprep.subr.bf16.mxu0 0
    %1032 = vmatpush1.bf16.msra.mxu0 0
    %1033 = vmatprep.subr.bf16.mxu0 0
    %1034 = vmatpush1.bf16.msra.mxu0 0
    %1035 = vmatprep.subr.bf16.mxu0 0
    %1036 = vmatpush1.bf16.msra.mxu0 0
    %1037 = vmatprep.subr.bf16.mxu0 0
    %1038 = vmatpush1.bf16.msra.mxu0 0
    %1039 = vmatprep.subr.bf16.mxu0 0
    %1040 = vmatpush1.bf16.msra.mxu0 0
    %1041 = vmatprep.subr.bf16.mxu0 0
    %1042 = vmatpush1.bf16.msra.mxu0 0
    %1043 = vmatprep.subr.bf16.mxu0 0
    %1044 = vmatpush1.bf16.msra.mxu0 0
    %1045 = vmatprep.subr.bf16.mxu0 0
    %1046 = vmatpush1.bf16.msra.mxu0 0
    %1047 = vmatprep.subr.bf16.mxu0 0
    %1048 = vmatpush1.bf16.msra.mxu0 0
    %1049 = vmatprep.subr.bf16.mxu0 0
    %1050 = vmatpush1.bf16.msra.mxu0 0
    %1051 = vmatprep.subr.bf16.mxu0 0
    %1052 = vmatpush1.bf16.msra.mxu0 0
    %1053 = vmatprep.subr.bf16.mxu0 0
    %1054 = vmatpush1.bf16.msra.mxu0 0
    %1055 = vmatprep.subr.bf16.mxu0 0
    %1056 = vmatpush1.bf16.msra.mxu0 0
    %1057 = vmatprep.subr.bf16.mxu0 0
    %1058 = vmatpush1.bf16.msra.mxu0 0
    %1059 = vmatprep.mubr.bf16.mxu0 0
    %1060 = vmatmul.mubr.bf16.gmra.mrb[0].mxu0 %v175
    %v1061 = vpop.f32.mrb[0].mxu0
    %v1062 = vadd.f32 0.0, %v1061
    %v1063 = vpop.f32.mrb[0].mxu0
    %v1064 = vpop.f32.mrb[0].mxu0
    %v1065 = vadd.f32 0.0, %v1064
    %v1066 = vpop.f32.mrb[0].mxu0
    %1067 = vdwg.mxu0
    %v1068 = vpack.c.bf16 %v1065, %v1062
    %s1069 = scalar_lea.vmem [#allocation8], 640
    %v1070 = vld [vmem:[%s1069] sm:$0xff]
    %v1071 = vld [vmem:[%s1069 + $0x8] sm:$0xff]
    %v1072 = vld [vmem:[%s1069 + $0x10] sm:$0xff]
    %v1073 = vld [vmem:[%s1069 + $0x18] sm:$0xff]
    %v1074 = vld [vmem:[%s1069 + $0x20] sm:$0xff]
    %v1075 = vld [vmem:[%s1069 + $0x28] sm:$0xff]
    %v1076 = vld [vmem:[%s1069 + $0x30] sm:$0xff]
    %v1077 = vld [vmem:[%s1069 + $0x38] sm:$0xff]
    %v1078 = vld [vmem:[%s1069 + $0x40] sm:$0xff]
    %v1079 = vld [vmem:[%s1069 + $0x48] sm:$0xff]
    %v1080 = vld [vmem:[%s1069 + $0x50] sm:$0xff]
    %v1081 = vld [vmem:[%s1069 + $0x58] sm:$0xff]
    %v1082 = vld [vmem:[%s1069 + $0x60] sm:$0xff]
    %v1083 = vld [vmem:[%s1069 + $0x68] sm:$0xff]
    %v1084 = vld [vmem:[%s1069 + $0x70] sm:$0xff]
    %v1085 = vld [vmem:[%s1069 + $0x78] sm:$0xff]
    %v1086 = vld [vmem:[%s1069 + $0x80] sm:$0xff]
    %v1087 = vld [vmem:[%s1069 + $0x88] sm:$0xff]
    %v1088 = vld [vmem:[%s1069 + $0x90] sm:$0xff]
    %v1089 = vld [vmem:[%s1069 + $0x98] sm:$0xff]
    %v1090 = vld [vmem:[%s1069 + $0xa0] sm:$0xff]
    %v1091 = vld [vmem:[%s1069 + $0xa8] sm:$0xff]
    %v1092 = vld [vmem:[%s1069 + $0xb0] sm:$0xff]
    %v1093 = vld [vmem:[%s1069 + $0xb8] sm:$0xff]
    %v1094 = vld [vmem:[%s1069 + $0xc0] sm:$0xff]
    %v1095 = vld [vmem:[%s1069 + $0xc8] sm:$0xff]
    %v1096 = vld [vmem:[%s1069 + $0xd0] sm:$0xff]
    %v1097 = vld [vmem:[%s1069 + $0xd8] sm:$0xff]
    %v1098 = vld [vmem:[%s1069 + $0xe0] sm:$0xff]
    %v1099 = vld [vmem:[%s1069 + $0xe8] sm:$0xff]
    %v1100 = vld [vmem:[%s1069 + $0xf0] sm:$0xff]
    %v1101 = vld [vmem:[%s1069 + $0xf8] sm:$0xff]
    %v1102 = vld [vmem:[%s1069 + $0x100] sm:$0xff]
    %v1103 = vld [vmem:[%s1069 + $0x108] sm:$0xff]
    %v1104 = vld [vmem:[%s1069 + $0x110] sm:$0xff]
    %v1105 = vld [vmem:[%s1069 + $0x118] sm:$0xff]
    %v1106 = vld [vmem:[%s1069 + $0x120] sm:$0xff]
    %v1107 = vld [vmem:[%s1069 + $0x128] sm:$0xff]
    %v1108 = vld [vmem:[%s1069 + $0x130] sm:$0xff]
    %v1109 = vld [vmem:[%s1069 + $0x138] sm:$0xff]
    %v1110 = vld [vmem:[%s1069 + $0x140] sm:$0xff]
    %v1111 = vld [vmem:[%s1069 + $0x148] sm:$0xff]
    %v1112 = vld [vmem:[%s1069 + $0x150] sm:$0xff]
    %v1113 = vld [vmem:[%s1069 + $0x158] sm:$0xff]
    %v1114 = vld [vmem:[%s1069 + $0x160] sm:$0xff]
    %v1115 = vld [vmem:[%s1069 + $0x168] sm:$0xff]
    %v1116 = vld [vmem:[%s1069 + $0x170] sm:$0xff]
    %v1117 = vld [vmem:[%s1069 + $0x178] sm:$0xff]
    %v1118 = vld [vmem:[%s1069 + $0x180] sm:$0xff]
    %v1119 = vld [vmem:[%s1069 + $0x188] sm:$0xff]
    %v1120 = vld [vmem:[%s1069 + $0x190] sm:$0xff]
    %v1121 = vld [vmem:[%s1069 + $0x198] sm:$0xff]
    %v1122 = vld [vmem:[%s1069 + $0x1a0] sm:$0xff]
    %v1123 = vld [vmem:[%s1069 + $0x1a8] sm:$0xff]
    %v1124 = vld [vmem:[%s1069 + $0x1b0] sm:$0xff]
    %v1125 = vld [vmem:[%s1069 + $0x1b8] sm:$0xff]
    %v1126 = vld [vmem:[%s1069 + $0x1c0] sm:$0xff]
    %v1127 = vld [vmem:[%s1069 + $0x1c8] sm:$0xff]
    %v1128 = vld [vmem:[%s1069 + $0x1d0] sm:$0xff]
    %v1129 = vld [vmem:[%s1069 + $0x1d8] sm:$0xff]
    %v1130 = vld [vmem:[%s1069 + $0x1e0] sm:$0xff]
    %v1131 = vld [vmem:[%s1069 + $0x1e8] sm:$0xff]
    %v1132 = vld [vmem:[%s1069 + $0x1f0] sm:$0xff]
    %v1133 = vld [vmem:[%s1069 + $0x1f8] sm:$0xff]
    %v1134 = vld [vmem:[%s1069 + $0x200] sm:$0xff]
    %v1135 = vld [vmem:[%s1069 + $0x208] sm:$0xff]
    %v1136 = vld [vmem:[%s1069 + $0x210] sm:$0xff]
    %v1137 = vld [vmem:[%s1069 + $0x218] sm:$0xff]
    %v1138 = vld [vmem:[%s1069 + $0x220] sm:$0xff]
    %v1139 = vld [vmem:[%s1069 + $0x228] sm:$0xff]
    %v1140 = vld [vmem:[%s1069 + $0x230] sm:$0xff]
    %v1141 = vld [vmem:[%s1069 + $0x238] sm:$0xff]
    %v1142 = vld [vmem:[%s1069 + $0x240] sm:$0xff]
    %v1143 = vld [vmem:[%s1069 + $0x248] sm:$0xff]
    %v1144 = vld [vmem:[%s1069 + $0x250] sm:$0xff]
    %v1145 = vld [vmem:[%s1069 + $0x258] sm:$0xff]
    %v1146 = vld [vmem:[%s1069 + $0x260] sm:$0xff]
    %v1147 = vld [vmem:[%s1069 + $0x268] sm:$0xff]
    %v1148 = vld [vmem:[%s1069 + $0x270] sm:$0xff]
    %v1149 = vld [vmem:[%s1069 + $0x278] sm:$0xff]
    %s1150 = scalar_lea.vmem [#allocation10], 10
    %v1151 = vld [vmem:[%s1150] sm:$0xff]
    %v1152 = vld [vmem:[%s1150 + $0x8] sm:$0x3]
    %v1155 = vlaneseq
    %v1156 = vshrl.u32 %v1155, 7
    %v1157 = vsub.s32 0, %v1156
    %v1158 = vrot.slane %v1151, %v1157
    %v1159 = vlaneseq
    %v1160 = vshrl.u32 %v1159, 7
    %v1161 = vsub.s32 1, %v1160
    %v1162 = vrot.slane %v1151, %v1161
    %v1163 = vlaneseq
    %v1164 = vshrl.u32 %v1163, 7
    %v1165 = vsub.s32 2, %v1164
    %v1166 = vrot.slane %v1151, %v1165
    %v1167 = vlaneseq
    %v1168 = vshrl.u32 %v1167, 7
    %v1169 = vsub.s32 3, %v1168
    %v1170 = vrot.slane %v1151, %v1169
    %v1171 = vlaneseq
    %v1172 = vshrl.u32 %v1171, 7
    %v1173 = vsub.s32 4, %v1172
    %v1174 = vrot.slane %v1151, %v1173
    %v1175 = vlaneseq
    %v1176 = vshrl.u32 %v1175, 7
    %v1177 = vsub.s32 5, %v1176
    %v1178 = vrot.slane %v1151, %v1177
    %v1179 = vlaneseq
    %v1180 = vshrl.u32 %v1179, 7
    %v1181 = vsub.s32 6, %v1180
    %v1182 = vrot.slane %v1151, %v1181
    %v1183 = vlaneseq
    %v1184 = vshrl.u32 %v1183, 7
    %v1185 = vsub.s32 7, %v1184
    %v1186 = vrot.slane %v1151, %v1185
    %v1187 = vlaneseq
    %v1188 = vshrl.u32 %v1187, 7
    %v1189 = vsub.s32 0, %v1188
    %v1190 = vrot.slane %v1152, %v1189
    %v1191 = vlaneseq
    %v1192 = vshrl.u32 %v1191, 7
    %v1193 = vsub.s32 1, %v1192
    %v1194 = vrot.slane %v1152, %v1193
    %v1285 = vunpack.c.l.b16 %v1070
    %v1286 = vunpack.c.h.b16 %v1070
    %v1287 = vunpack.c.l.b16 %v1071
    %v1288 = vunpack.c.h.b16 %v1071
    %v1289 = vunpack.c.l.b16 %v1072
    %v1290 = vunpack.c.h.b16 %v1072
    %v1291 = vunpack.c.l.b16 %v1073
    %v1292 = vunpack.c.h.b16 %v1073
    %v1293 = vunpack.c.l.b16 %v1074
    %v1294 = vunpack.c.h.b16 %v1074
    %v1295 = vunpack.c.l.b16 %v1075
    %v1296 = vunpack.c.h.b16 %v1075
    %v1297 = vunpack.c.l.b16 %v1076
    %v1298 = vunpack.c.h.b16 %v1076
    %v1299 = vunpack.c.l.b16 %v1077
    %v1300 = vunpack.c.h.b16 %v1077
    %v1301 = vunpack.c.l.b16 %v1078
    %v1302 = vunpack.c.h.b16 %v1078
    %v1303 = vunpack.c.l.b16 %v1079
    %v1304 = vunpack.c.h.b16 %v1079
    %v1305 = vunpack.c.l.b16 %v1080
    %v1306 = vunpack.c.h.b16 %v1080
    %v1307 = vunpack.c.l.b16 %v1081
    %v1308 = vunpack.c.h.b16 %v1081
    %v1309 = vunpack.c.l.b16 %v1082
    %v1310 = vunpack.c.h.b16 %v1082
    %v1311 = vunpack.c.l.b16 %v1083
    %v1312 = vunpack.c.h.b16 %v1083
    %v1313 = vunpack.c.l.b16 %v1084
    %v1314 = vunpack.c.h.b16 %v1084
    %v1315 = vunpack.c.l.b16 %v1085
    %v1316 = vunpack.c.h.b16 %v1085
    %v1317 = vunpack.c.l.b16 %v1086
    %v1318 = vunpack.c.h.b16 %v1086
    %v1319 = vunpack.c.l.b16 %v1087
    %v1320 = vunpack.c.h.b16 %v1087
    %v1321 = vunpack.c.l.b16 %v1088
    %v1322 = vunpack.c.h.b16 %v1088
    %v1323 = vunpack.c.l.b16 %v1089
    %v1324 = vunpack.c.h.b16 %v1089
    %v1325 = vunpack.c.l.b16 %v1090
    %v1326 = vunpack.c.h.b16 %v1090
    %v1327 = vunpack.c.l.b16 %v1091
    %v1328 = vunpack.c.h.b16 %v1091
    %v1329 = vunpack.c.l.b16 %v1092
    %v1330 = vunpack.c.h.b16 %v1092
    %v1331 = vunpack.c.l.b16 %v1093
    %v1332 = vunpack.c.h.b16 %v1093
    %v1333 = vunpack.c.l.b16 %v1094
    %v1334 = vunpack.c.h.b16 %v1094
    %v1335 = vunpack.c.l.b16 %v1095
    %v1336 = vunpack.c.h.b16 %v1095
    %v1337 = vunpack.c.l.b16 %v1096
    %v1338 = vunpack.c.h.b16 %v1096
    %v1339 = vunpack.c.l.b16 %v1097
    %v1340 = vunpack.c.h.b16 %v1097
    %v1341 = vunpack.c.l.b16 %v1098
    %v1342 = vunpack.c.h.b16 %v1098
    %v1343 = vunpack.c.l.b16 %v1099
    %v1344 = vunpack.c.h.b16 %v1099
    %v1345 = vunpack.c.l.b16 %v1100
    %v1346 = vunpack.c.h.b16 %v1100
    %v1347 = vunpack.c.l.b16 %v1101
    %v1348 = vunpack.c.h.b16 %v1101
    %v1349 = vunpack.c.l.b16 %v1102
    %v1350 = vunpack.c.h.b16 %v1102
    %v1351 = vunpack.c.l.b16 %v1103
    %v1352 = vunpack.c.h.b16 %v1103
    %v1353 = vunpack.c.l.b16 %v1104
    %v1354 = vunpack.c.h.b16 %v1104
    %v1355 = vunpack.c.l.b16 %v1105
    %v1356 = vunpack.c.h.b16 %v1105
    %v1357 = vunpack.c.l.b16 %v1106
    %v1358 = vunpack.c.h.b16 %v1106
    %v1359 = vunpack.c.l.b16 %v1107
    %v1360 = vunpack.c.h.b16 %v1107
    %v1361 = vunpack.c.l.b16 %v1108
    %v1362 = vunpack.c.h.b16 %v1108
    %v1363 = vunpack.c.l.b16 %v1109
    %v1364 = vunpack.c.h.b16 %v1109
    %v1365 = vunpack.c.l.b16 %v1110
    %v1366 = vunpack.c.h.b16 %v1110
    %v1367 = vunpack.c.l.b16 %v1111
    %v1368 = vunpack.c.h.b16 %v1111
    %v1369 = vunpack.c.l.b16 %v1112
    %v1370 = vunpack.c.h.b16 %v1112
    %v1371 = vunpack.c.l.b16 %v1113
    %v1372 = vunpack.c.h.b16 %v1113
    %v1373 = vunpack.c.l.b16 %v1114
    %v1374 = vunpack.c.h.b16 %v1114
    %v1375 = vunpack.c.l.b16 %v1115
    %v1376 = vunpack.c.h.b16 %v1115
    %v1377 = vunpack.c.l.b16 %v1116
    %v1378 = vunpack.c.h.b16 %v1116
    %v1379 = vunpack.c.l.b16 %v1117
    %v1380 = vunpack.c.h.b16 %v1117
    %v1381 = vunpack.c.l.b16 %v1118
    %v1382 = vunpack.c.h.b16 %v1118
    %v1383 = vunpack.c.l.b16 %v1119
    %v1384 = vunpack.c.h.b16 %v1119
    %v1385 = vunpack.c.l.b16 %v1120
    %v1386 = vunpack.c.h.b16 %v1120
    %v1387 = vunpack.c.l.b16 %v1121
    %v1388 = vunpack.c.h.b16 %v1121
    %v1389 = vunpack.c.l.b16 %v1122
    %v1390 = vunpack.c.h.b16 %v1122
    %v1391 = vunpack.c.l.b16 %v1123
    %v1392 = vunpack.c.h.b16 %v1123
    %v1393 = vunpack.c.l.b16 %v1124
    %v1394 = vunpack.c.h.b16 %v1124
    %v1395 = vunpack.c.l.b16 %v1125
    %v1396 = vunpack.c.h.b16 %v1125
    %v1397 = vunpack.c.l.b16 %v1126
    %v1398 = vunpack.c.h.b16 %v1126
    %v1399 = vunpack.c.l.b16 %v1127
    %v1400 = vunpack.c.h.b16 %v1127
    %v1401 = vunpack.c.l.b16 %v1128
    %v1402 = vunpack.c.h.b16 %v1128
    %v1403 = vunpack.c.l.b16 %v1129
    %v1404 = vunpack.c.h.b16 %v1129
    %v1405 = vunpack.c.l.b16 %v1130
    %v1406 = vunpack.c.h.b16 %v1130
    %v1407 = vunpack.c.l.b16 %v1131
    %v1408 = vunpack.c.h.b16 %v1131
    %v1409 = vunpack.c.l.b16 %v1132
    %v1410 = vunpack.c.h.b16 %v1132
    %v1411 = vunpack.c.l.b16 %v1133
    %v1412 = vunpack.c.h.b16 %v1133
    %v1413 = vunpack.c.l.b16 %v1134
    %v1414 = vunpack.c.h.b16 %v1134
    %v1415 = vunpack.c.l.b16 %v1135
    %v1416 = vunpack.c.h.b16 %v1135
    %v1417 = vunpack.c.l.b16 %v1136
    %v1418 = vunpack.c.h.b16 %v1136
    %v1419 = vunpack.c.l.b16 %v1137
    %v1420 = vunpack.c.h.b16 %v1137
    %v1421 = vunpack.c.l.b16 %v1138
    %v1422 = vunpack.c.h.b16 %v1138
    %v1423 = vunpack.c.l.b16 %v1139
    %v1424 = vunpack.c.h.b16 %v1139
    %v1425 = vunpack.c.l.b16 %v1140
    %v1426 = vunpack.c.h.b16 %v1140
    %v1427 = vunpack.c.l.b16 %v1141
    %v1428 = vunpack.c.h.b16 %v1141
    %v1429 = vunpack.c.l.b16 %v1142
    %v1430 = vunpack.c.h.b16 %v1142
    %v1431 = vunpack.c.l.b16 %v1143
    %v1432 = vunpack.c.h.b16 %v1143
    %v1433 = vunpack.c.l.b16 %v1144
    %v1434 = vunpack.c.h.b16 %v1144
    %v1435 = vunpack.c.l.b16 %v1145
    %v1436 = vunpack.c.h.b16 %v1145
    %v1437 = vunpack.c.l.b16 %v1146
    %v1438 = vunpack.c.h.b16 %v1146
    %v1439 = vunpack.c.l.b16 %v1147
    %v1440 = vunpack.c.h.b16 %v1147
    %v1441 = vunpack.c.l.b16 %v1148
    %v1442 = vunpack.c.h.b16 %v1148
    %v1443 = vunpack.c.l.b16 %v1149
    %v1444 = vunpack.c.h.b16 %v1149
    %v1445 = vpack.c.b16 %v1295, %v1285
    %v1446 = vpack.c.b16 %v1296, %v1286
    %v1447 = vpack.c.b16 %v1297, %v1287
    %v1448 = vpack.c.b16 %v1298, %v1288
    %v1449 = vpack.c.b16 %v1299, %v1289
    %v1450 = vpack.c.b16 %v1300, %v1290
    %v1451 = vpack.c.b16 %v1301, %v1291
    %v1452 = vpack.c.b16 %v1302, %v1292
    %v1453 = vpack.c.b16 %v1303, %v1293
    %v1454 = vpack.c.b16 %v1304, %v1294
    %v1455 = vpack.c.b16 %v1315, %v1305
    %v1456 = vpack.c.b16 %v1316, %v1306
    %v1457 = vpack.c.b16 %v1317, %v1307
    %v1458 = vpack.c.b16 %v1318, %v1308
    %v1459 = vpack.c.b16 %v1319, %v1309
    %v1460 = vpack.c.b16 %v1320, %v1310
    %v1461 = vpack.c.b16 %v1321, %v1311
    %v1462 = vpack.c.b16 %v1322, %v1312
    %v1463 = vpack.c.b16 %v1323, %v1313
    %v1464 = vpack.c.b16 %v1324, %v1314
    %v1465 = vpack.c.b16 %v1335, %v1325
    %v1466 = vpack.c.b16 %v1336, %v1326
    %v1467 = vpack.c.b16 %v1337, %v1327
    %v1468 = vpack.c.b16 %v1338, %v1328
    %v1469 = vpack.c.b16 %v1339, %v1329
    %v1470 = vpack.c.b16 %v1340, %v1330
    %v1471 = vpack.c.b16 %v1341, %v1331
    %v1472 = vpack.c.b16 %v1342, %v1332
    %v1473 = vpack.c.b16 %v1343, %v1333
    %v1474 = vpack.c.b16 %v1344, %v1334
    %v1475 = vpack.c.b16 %v1355, %v1345
    %v1476 = vpack.c.b16 %v1356, %v1346
    %v1477 = vpack.c.b16 %v1357, %v1347
    %v1478 = vpack.c.b16 %v1358, %v1348
    %v1479 = vpack.c.b16 %v1359, %v1349
    %v1480 = vpack.c.b16 %v1360, %v1350
    %v1481 = vpack.c.b16 %v1361, %v1351
    %v1482 = vpack.c.b16 %v1362, %v1352
    %v1483 = vpack.c.b16 %v1363, %v1353
    %v1484 = vpack.c.b16 %v1364, %v1354
    %v1485 = vpack.c.b16 %v1375, %v1365
    %v1486 = vpack.c.b16 %v1376, %v1366
    %v1487 = vpack.c.b16 %v1377, %v1367
    %v1488 = vpack.c.b16 %v1378, %v1368
    %v1489 = vpack.c.b16 %v1379, %v1369
    %v1490 = vpack.c.b16 %v1380, %v1370
    %v1491 = vpack.c.b16 %v1381, %v1371
    %v1492 = vpack.c.b16 %v1382, %v1372
    %v1493 = vpack.c.b16 %v1383, %v1373
    %v1494 = vpack.c.b16 %v1384, %v1374
    %v1495 = vpack.c.b16 %v1395, %v1385
    %v1496 = vpack.c.b16 %v1396, %v1386
    %v1497 = vpack.c.b16 %v1397, %v1387
    %v1498 = vpack.c.b16 %v1398, %v1388
    %v1499 = vpack.c.b16 %v1399, %v1389
    %v1500 = vpack.c.b16 %v1400, %v1390
    %v1501 = vpack.c.b16 %v1401, %v1391
    %v1502 = vpack.c.b16 %v1402, %v1392
    %v1503 = vpack.c.b16 %v1403, %v1393
    %v1504 = vpack.c.b16 %v1404, %v1394
    %v1505 = vpack.c.b16 %v1415, %v1405
    %v1506 = vpack.c.b16 %v1416, %v1406
    %v1507 = vpack.c.b16 %v1417, %v1407
    %v1508 = vpack.c.b16 %v1418, %v1408
    %v1509 = vpack.c.b16 %v1419, %v1409
    %v1510 = vpack.c.b16 %v1420, %v1410
    %v1511 = vpack.c.b16 %v1421, %v1411
    %v1512 = vpack.c.b16 %v1422, %v1412
    %v1513 = vpack.c.b16 %v1423, %v1413
    %v1514 = vpack.c.b16 %v1424, %v1414
    %v1515 = vpack.c.b16 %v1435, %v1425
    %v1516 = vpack.c.b16 %v1436, %v1426
    %v1517 = vpack.c.b16 %v1437, %v1427
    %v1518 = vpack.c.b16 %v1438, %v1428
    %v1519 = vpack.c.b16 %v1439, %v1429
    %v1520 = vpack.c.b16 %v1440, %v1430
    %v1521 = vpack.c.b16 %v1441, %v1431
    %v1522 = vpack.c.b16 %v1442, %v1432
    %v1523 = vpack.c.b16 %v1443, %v1433
    %v1524 = vpack.c.b16 %v1444, %v1434
    %1605 = vmatprep.subr.bf16.mxu0 %v1446
    %1606 = vmatpush1.bf16.msra.mxu0 %v1445
    %1607 = vmatprep.subr.bf16.mxu0 %v1456
    %1608 = vmatpush1.bf16.msra.mxu0 %v1455
    %1609 = vmatprep.subr.bf16.mxu0 %v1466
    %1610 = vmatpush1.bf16.msra.mxu0 %v1465
    %1611 = vmatprep.subr.bf16.mxu0 %v1476
    %1612 = vmatpush1.bf16.msra.mxu0 %v1475
    %1613 = vmatprep.subr.bf16.mxu0 %v1486
    %1614 = vmatpush1.bf16.msra.mxu0 %v1485
    %1615 = vmatprep.subr.bf16.mxu0 %v1496
    %1616 = vmatpush1.bf16.msra.mxu0 %v1495
    %1617 = vmatprep.subr.bf16.mxu0 %v1506
    %1618 = vmatpush1.bf16.msra.mxu0 %v1505
    %1619 = vmatprep.subr.bf16.mxu0 %v1516
    %1620 = vmatpush1.bf16.msra.mxu0 %v1515
    %1621 = vmatprep.subr.bf16.mxu0 0
    %1622 = vmatpush1.bf16.msra.mxu0 0
    %1623 = vmatprep.subr.bf16.mxu0 0
    %1624 = vmatpush1.bf16.msra.mxu0 0
    %1625 = vmatprep.subr.bf16.mxu0 0
    %1626 = vmatpush1.bf16.msra.mxu0 0
    %1627 = vmatprep.subr.bf16.mxu0 0
    %1628 = vmatpush1.bf16.msra.mxu0 0
    %1629 = vmatprep.subr.bf16.mxu0 0
    %1630 = vmatpush1.bf16.msra.mxu0 0
    %1631 = vmatprep.subr.bf16.mxu0 0
    %1632 = vmatpush1.bf16.msra.mxu0 0
    %1633 = vmatprep.subr.bf16.mxu0 0
    %1634 = vmatpush1.bf16.msra.mxu0 0
    %1635 = vmatprep.subr.bf16.mxu0 0
    %1636 = vmatpush1.bf16.msra.mxu0 0
    %1637 = vmatprep.mubr.bf16.mxu0 0
    %1638 = vmatmul.mubr.bf16.gmra.mrb[0].mxu0 %v1068
    %v1639 = vpop.f32.mrb[0].mxu0
    %v1640 = vadd.f32 %v1158, %v1639
    %v1641 = vpop.f32.mrb[0].mxu0
    %v1642 = vadd.f32 %v1162, %v1641
    %v1643 = vpop.f32.mrb[0].mxu0
    %v1644 = vadd.f32 %v1158, %v1643
    %v1645 = vpop.f32.mrb[0].mxu0
    %v1646 = vadd.f32 %v1162, %v1645
    %1647 = vdwg.mxu0
    %1648 = vmatprep.subr.bf16.mxu0 %v1448
    %1649 = vmatpush1.bf16.msra.mxu0 %v1447
    %1650 = vmatprep.subr.bf16.mxu0 %v1458
    %1651 = vmatpush1.bf16.msra.mxu0 %v1457
    %1652 = vmatprep.subr.bf16.mxu0 %v1468
    %1653 = vmatpush1.bf16.msra.mxu0 %v1467
    %1654 = vmatprep.subr.bf16.mxu0 %v1478
    %1655 = vmatpush1.bf16.msra.mxu0 %v1477
    %1656 = vmatprep.subr.bf16.mxu0 %v1488
    %1657 = vmatpush1.bf16.msra.mxu0 %v1487
    %1658 = vmatprep.subr.bf16.mxu0 %v1498
    %1659 = vmatpush1.bf16.msra.mxu0 %v1497
    %1660 = vmatprep.subr.bf16.mxu0 %v1508
    %1661 = vmatpush1.bf16.msra.mxu0 %v1507
    %1662 = vmatprep.subr.bf16.mxu0 %v1518
    %1663 = vmatpush1.bf16.msra.mxu0 %v1517
    %1664 = vmatprep.subr.bf16.mxu0 0
    %1665 = vmatpush1.bf16.msra.mxu0 0
    %1666 = vmatprep.subr.bf16.mxu0 0
    %1667 = vmatpush1.bf16.msra.mxu0 0
    %1668 = vmatprep.subr.bf16.mxu0 0
    %1669 = vmatpush1.bf16.msra.mxu0 0
    %1670 = vmatprep.subr.bf16.mxu0 0
    %1671 = vmatpush1.bf16.msra.mxu0 0
    %1672 = vmatprep.subr.bf16.mxu0 0
    %1673 = vmatpush1.bf16.msra.mxu0 0
    %1674 = vmatprep.subr.bf16.mxu0 0
    %1675 = vmatpush1.bf16.msra.mxu0 0
    %1676 = vmatprep.subr.bf16.mxu0 0
    %1677 = vmatpush1.bf16.msra.mxu0 0
    %1678 = vmatprep.subr.bf16.mxu0 0
    %1679 = vmatpush1.bf16.msra.mxu0 0
    %1680 = vmatprep.mubr.bf16.mxu0 0
    %1681 = vmatmul.mubr.bf16.gmra.mrb[0].mxu0 %v1068
    %v1682 = vpop.f32.mrb[0].mxu0
    %v1683 = vadd.f32 %v1166, %v1682
    %v1684 = vpop.f32.mrb[0].mxu0
    %v1685 = vadd.f32 %v1170, %v1684
    %v1686 = vpop.f32.mrb[0].mxu0
    %v1687 = vadd.f32 %v1166, %v1686
    %v1688 = vpop.f32.mrb[0].mxu0
    %v1689 = vadd.f32 %v1170, %v1688
    %1690 = vdwg.mxu0
    %1691 = vmatprep.subr.bf16.mxu0 %v1450
    %1692 = vmatpush1.bf16.msra.mxu0 %v1449
    %1693 = vmatprep.subr.bf16.mxu0 %v1460
    %1694 = vmatpush1.bf16.msra.mxu0 %v1459
    %1695 = vmatprep.subr.bf16.mxu0 %v1470
    %1696 = vmatpush1.bf16.msra.mxu0 %v1469
    %1697 = vmatprep.subr.bf16.mxu0 %v1480
    %1698 = vmatpush1.bf16.msra.mxu0 %v1479
    %1699 = vmatprep.subr.bf16.mxu0 %v1490
    %1700 = vmatpush1.bf16.msra.mxu0 %v1489
    %1701 = vmatprep.subr.bf16.mxu0 %v1500
    %1702 = vmatpush1.bf16.msra.mxu0 %v1499
    %1703 = vmatprep.subr.bf16.mxu0 %v1510
    %1704 = vmatpush1.bf16.msra.mxu0 %v1509
    %1705 = vmatprep.subr.bf16.mxu0 %v1520
    %1706 = vmatpush1.bf16.msra.mxu0 %v1519
    %1707 = vmatprep.subr.bf16.mxu0 0
    %1708 = vmatpush1.bf16.msra.mxu0 0
    %1709 = vmatprep.subr.bf16.mxu0 0
    %1710 = vmatpush1.bf16.msra.mxu0 0
    %1711 = vmatprep.subr.bf16.mxu0 0
    %1712 = vmatpush1.bf16.msra.mxu0 0
    %1713 = vmatprep.subr.bf16.mxu0 0
    %1714 = vmatpush1.bf16.msra.mxu0 0
    %1715 = vmatprep.subr.bf16.mxu0 0
    %1716 = vmatpush1.bf16.msra.mxu0 0
    %1717 = vmatprep.subr.bf16.mxu0 0
    %1718 = vmatpush1.bf16.msra.mxu0 0
    %1719 = vmatprep.subr.bf16.mxu0 0
    %1720 = vmatpush1.bf16.msra.mxu0 0
    %1721 = vmatprep.subr.bf16.mxu0 0
    %1722 = vmatpush1.bf16.msra.mxu0 0
    %1723 = vmatprep.mubr.bf16.mxu0 0
    %1724 = vmatmul.mubr.bf16.gmra.mrb[0].mxu0 %v1068
    %v1725 = vpop.f32.mrb[0].mxu0
    %v1726 = vadd.f32 %v1174, %v1725
    %v1727 = vpop.f32.mrb[0].mxu0
    %v1728 = vadd.f32 %v1178, %v1727
    %v1729 = vpop.f32.mrb[0].mxu0
    %v1730 = vadd.f32 %v1174, %v1729
    %v1731 = vpop.f32.mrb[0].mxu0
    %v1732 = vadd.f32 %v1178, %v1731
    %1733 = vdwg.mxu0
    %1734 = vmatprep.subr.bf16.mxu0 %v1452
    %1735 = vmatpush1.bf16.msra.mxu0 %v1451
    %1736 = vmatprep.subr.bf16.mxu0 %v1462
    %1737 = vmatpush1.bf16.msra.mxu0 %v1461
    %1738 = vmatprep.subr.bf16.mxu0 %v1472
    %1739 = vmatpush1.bf16.msra.mxu0 %v1471
    %1740 = vmatprep.subr.bf16.mxu0 %v1482
    %1741 = vmatpush1.bf16.msra.mxu0 %v1481
    %1742 = vmatprep.subr.bf16.mxu0 %v1492
    %1743 = vmatpush1.bf16.msra.mxu0 %v1491
    %1744 = vmatprep.subr.bf16.mxu0 %v1502
    %1745 = vmatpush1.bf16.msra.mxu0 %v1501
    %1746 = vmatprep.subr.bf16.mxu0 %v1512
    %1747 = vmatpush1.bf16.msra.mxu0 %v1511
    %1748 = vmatprep.subr.bf16.mxu0 %v1522
    %1749 = vmatpush1.bf16.msra.mxu0 %v1521
    %1750 = vmatprep.subr.bf16.mxu0 0
    %1751 = vmatpush1.bf16.msra.mxu0 0
    %1752 = vmatprep.subr.bf16.mxu0 0
    %1753 = vmatpush1.bf16.msra.mxu0 0
    %1754 = vmatprep.subr.bf16.mxu0 0
    %1755 = vmatpush1.bf16.msra.mxu0 0
    %1756 = vmatprep.subr.bf16.mxu0 0
    %1757 = vmatpush1.bf16.msra.mxu0 0
    %1758 = vmatprep.subr.bf16.mxu0 0
    %1759 = vmatpush1.bf16.msra.mxu0 0
    %1760 = vmatprep.subr.bf16.mxu0 0
    %1761 = vmatpush1.bf16.msra.mxu0 0
    %1762 = vmatprep.subr.bf16.mxu0 0
    %1763 = vmatpush1.bf16.msra.mxu0 0
    %1764 = vmatprep.subr.bf16.mxu0 0
    %1765 = vmatpush1.bf16.msra.mxu0 0
    %1766 = vmatprep.mubr.bf16.mxu0 0
    %1767 = vmatmul.mubr.bf16.gmra.mrb[0].mxu0 %v1068
    %v1768 = vpop.f32.mrb[0].mxu0
    %v1769 = vadd.f32 %v1182, %v1768
    %v1770 = vpop.f32.mrb[0].mxu0
    %v1771 = vadd.f32 %v1186, %v1770
    %v1772 = vpop.f32.mrb[0].mxu0
    %v1773 = vadd.f32 %v1182, %v1772
    %v1774 = vpop.f32.mrb[0].mxu0
    %v1775 = vadd.f32 %v1186, %v1774
    %1776 = vdwg.mxu0
    %1777 = vmatprep.subr.bf16.mxu0 %v1454
    %1778 = vmatpush1.bf16.msra.mxu0 %v1453
    %1779 = vmatprep.subr.bf16.mxu0 %v1464
    %1780 = vmatpush1.bf16.msra.mxu0 %v1463
    %1781 = vmatprep.subr.bf16.mxu0 %v1474
    %1782 = vmatpush1.bf16.msra.mxu0 %v1473
    %1783 = vmatprep.subr.bf16.mxu0 %v1484
    %1784 = vmatpush1.bf16.msra.mxu0 %v1483
    %1785 = vmatprep.subr.bf16.mxu0 %v1494
    %1786 = vmatpush1.bf16.msra.mxu0 %v1493
    %1787 = vmatprep.subr.bf16.mxu0 %v1504
    %1788 = vmatpush1.bf16.msra.mxu0 %v1503
    %1789 = vmatprep.subr.bf16.mxu0 %v1514
    %1790 = vmatpush1.bf16.msra.mxu0 %v1513
    %1791 = vmatprep.subr.bf16.mxu0 %v1524
    %1792 = vmatpush1.bf16.msra.mxu0 %v1523
    %1793 = vmatprep.subr.bf16.mxu0 0
    %1794 = vmatpush1.bf16.msra.mxu0 0
    %1795 = vmatprep.subr.bf16.mxu0 0
    %1796 = vmatpush1.bf16.msra.mxu0 0
    %1797 = vmatprep.subr.bf16.mxu0 0
    %1798 = vmatpush1.bf16.msra.mxu0 0
    %1799 = vmatprep.subr.bf16.mxu0 0
    %1800 = vmatpush1.bf16.msra.mxu0 0
    %1801 = vmatprep.subr.bf16.mxu0 0
    %1802 = vmatpush1.bf16.msra.mxu0 0
    %1803 = vmatprep.subr.bf16.mxu0 0
    %1804 = vmatpush1.bf16.msra.mxu0 0
    %1805 = vmatprep.subr.bf16.mxu0 0
    %1806 = vmatpush1.bf16.msra.mxu0 0
    %1807 = vmatprep.subr.bf16.mxu0 0
    %1808 = vmatpush1.bf16.msra.mxu0 0
    %1809 = vmatprep.mubr.bf16.mxu0 0
    %1810 = vmatmul.mubr.bf16.gmra.mrb[0].mxu0 %v1068
    %v1811 = vpop.f32.mrb[0].mxu0
    %v1812 = vadd.f32 %v1190, %v1811
    %v1813 = vpop.f32.mrb[0].mxu0
    %v1814 = vadd.f32 %v1194, %v1813
    %v1815 = vpop.f32.mrb[0].mxu0
    %v1816 = vadd.f32 %v1190, %v1815
    %v1817 = vpop.f32.mrb[0].mxu0
    %v1818 = vadd.f32 %v1194, %v1817
    %1819 = vdwg.mxu0
    %v1820 = vmul.f32 %v1640, %v140
    %v1821 = vmul.f32 %v1642, %v141
    %v1822 = vmul.f32 %v1683, %v142
    %v1823 = vmul.f32 %v1685, %v143
    %v1824 = vmul.f32 %v1726, %v144
    %v1825 = vmul.f32 %v1728, %v145
    %v1826 = vmul.f32 %v1769, %v146
    %v1827 = vmul.f32 %v1771, %v147
    %v1828 = vmul.f32 %v1812, %v148
    %v1829 = vmul.f32 %v1814, %v149
    %v1830 = vmul.f32 %v1644, %v150
    %v1831 = vmul.f32 %v1646, %v151
    %v1832 = vmul.f32 %v1687, %v152
    %v1833 = vmul.f32 %v1689, %v153
    %v1834 = vmul.f32 %v1730, %v154
    %v1835 = vmul.f32 %v1732, %v155
    %v1836 = vmul.f32 %v1773, %v156
    %v1837 = vmul.f32 %v1775, %v157
    %v1838 = vmul.f32 %v1816, %v158
    %v1839 = vmul.f32 %v1818, %v159
    %v1840 = vadd.f32 %v1820, %v1821
    %v1841 = vadd.f32 %v1830, %v1831
    %v1842 = vadd.f32 %v1840, %v1822
    %v1843 = vadd.f32 %v1841, %v1832
    %v1844 = vadd.f32 %v1842, %v1823
    %v1845 = vadd.f32 %v1843, %v1833
    %v1846 = vadd.f32 %v1844, %v1824
    %v1847 = vadd.f32 %v1845, %v1834
    %v1848 = vadd.f32 %v1846, %v1825
    %v1849 = vadd.f32 %v1847, %v1835
    %v1850 = vadd.f32 %v1848, %v1826
    %v1851 = vadd.f32 %v1849, %v1836
    %v1852 = vadd.f32 %v1850, %v1827
    %v1853 = vadd.f32 %v1851, %v1837
    %v1854 = vadd.f32 %v1852, %v1828
    %v1855 = vadd.f32 %v1853, %v1838
    %v1856 = vadd.f32 %v1854, %v1829
    %v1857 = vadd.f32 %v1855, %v1839
    %v1858 = vmax.f32 %v1856, 0.0
    %v1859 = vmax.f32 %v1857, 0.0
    %s1860 = scalar_lea.vmem %s5, 1
    %v1861 = vld [vmem:[%s1860] sm:$0x1]
    %v1863 = vlaneseq
    %v1864 = vshrl.u32 %v1863, 7
    %v1865 = vsub.s32 0, %v1864
    %v1866 = vrot.slane %v1861, %v1865
    %v1868 = vmul.f32 %v1858, %v1866
    %v1869 = vmul.f32 %v1859, %v1866
    %s1870 = scalar_lea.vmem %s6, 1
    %v1871 = vld [vmem:[%s1870] sm:$0x1]
    %v1873 = vlaneseq
    %v1874 = vshrl.u32 %v1873, 7
    %v1875 = vsub.s32 0, %v1874
    %v1876 = vrot.slane %v1871, %v1875
    %v1878 = vadd.f32 %v1868, %v1876
    %v1879 = vadd.f32 %v1869, %v1876
    %v1880 = vpack.c.bf16 %v1879, %v1878
    %1881 = vmatprep.subr.bf16.mxu0 0
    %1882 = vmatpush1.bf16.msra.mxu0 %v1880
    %1883 = vmatprep.subr.bf16.mxu0 0
    %1884 = vmatpush1.bf16.msra.mxu0 0
    %1885 = vmatprep.subr.bf16.mxu0 0
    %1886 = vmatpush1.bf16.msra.mxu0 0
    %1887 = vmatprep.subr.bf16.mxu0 0
    %1888 = vmatpush1.bf16.msra.mxu0 0
    %1889 = vmatprep.subr.bf16.mxu0 0
    %1890 = vmatpush1.bf16.msra.mxu0 0
    %1891 = vmatprep.subr.bf16.mxu0 0
    %1892 = vmatpush1.bf16.msra.mxu0 0
    %1893 = vmatprep.subr.bf16.mxu0 0
    %1894 = vmatpush1.bf16.msra.mxu0 0
    %1895 = vmatprep.subr.bf16.mxu0 0
    %1896 = vmatpush1.bf16.msra.mxu0 0
    %1897 = vmatprep.subr.bf16.mxu0 0
    %1898 = vmatpush1.bf16.msra.mxu0 0
    %1899 = vmatprep.subr.bf16.mxu0 0
    %1900 = vmatpush1.bf16.msra.mxu0 0
    %1901 = vmatprep.subr.bf16.mxu0 0
    %1902 = vmatpush1.bf16.msra.mxu0 0
    %1903 = vmatprep.subr.bf16.mxu0 0
    %1904 = vmatpush1.bf16.msra.mxu0 0
    %1905 = vmatprep.subr.bf16.mxu0 0
    %1906 = vmatpush1.bf16.msra.mxu0 0
    %1907 = vmatprep.subr.bf16.mxu0 0
    %1908 = vmatpush1.bf16.msra.mxu0 0
    %1909 = vmatprep.subr.bf16.mxu0 0
    %1910 = vmatpush1.bf16.msra.mxu0 0
    %1911 = vmatprep.subr.bf16.mxu0 0
    %1912 = vmatpush1.bf16.msra.mxu0 0
    %1913 = vmatprep.mubr.bf16.mxu0 0
    %1914 = vmatmul.mubr.bf16.gmra.mrb[0].mxu0 %v175
    %v1915 = vpop.f32.mrb[0].mxu0
    %v1916 = vadd.f32 0.0, %v1915
    %v1917 = vpop.f32.mrb[0].mxu0
    %v1918 = vpop.f32.mrb[0].mxu0
    %v1919 = vadd.f32 0.0, %v1918
    %v1920 = vpop.f32.mrb[0].mxu0
    %1921 = vdwg.mxu0
    %v1922 = vpack.c.bf16 %v1919, %v1916
    %s1923 = scalar_lea.vmem [#allocation8], 1280
    %v1924 = vld [vmem:[%s1923] sm:$0xff]
    %v1925 = vld [vmem:[%s1923 + $0x8] sm:$0xff]
    %v1926 = vld [vmem:[%s1923 + $0x10] sm:$0xff]
    %v1927 = vld [vmem:[%s1923 + $0x18] sm:$0xff]
    %v1928 = vld [vmem:[%s1923 + $0x20] sm:$0xff]
    %v1929 = vld [vmem:[%s1923 + $0x28] sm:$0xff]
    %v1930 = vld [vmem:[%s1923 + $0x30] sm:$0xff]
    %v1931 = vld [vmem:[%s1923 + $0x38] sm:$0xff]
    %v1932 = vld [vmem:[%s1923 + $0x40] sm:$0xff]
    %v1933 = vld [vmem:[%s1923 + $0x48] sm:$0xff]
    %v1934 = vld [vmem:[%s1923 + $0x50] sm:$0xff]
    %v1935 = vld [vmem:[%s1923 + $0x58] sm:$0xff]
    %v1936 = vld [vmem:[%s1923 + $0x60] sm:$0xff]
    %v1937 = vld [vmem:[%s1923 + $0x68] sm:$0xff]
    %v1938 = vld [vmem:[%s1923 + $0x70] sm:$0xff]
    %v1939 = vld [vmem:[%s1923 + $0x78] sm:$0xff]
    %v1940 = vld [vmem:[%s1923 + $0x80] sm:$0xff]
    %v1941 = vld [vmem:[%s1923 + $0x88] sm:$0xff]
    %v1942 = vld [vmem:[%s1923 + $0x90] sm:$0xff]
    %v1943 = vld [vmem:[%s1923 + $0x98] sm:$0xff]
    %v1944 = vld [vmem:[%s1923 + $0xa0] sm:$0xff]
    %v1945 = vld [vmem:[%s1923 + $0xa8] sm:$0xff]
    %v1946 = vld [vmem:[%s1923 + $0xb0] sm:$0xff]
    %v1947 = vld [vmem:[%s1923 + $0xb8] sm:$0xff]
    %v1948 = vld [vmem:[%s1923 + $0xc0] sm:$0xff]
    %v1949 = vld [vmem:[%s1923 + $0xc8] sm:$0xff]
    %v1950 = vld [vmem:[%s1923 + $0xd0] sm:$0xff]
    %v1951 = vld [vmem:[%s1923 + $0xd8] sm:$0xff]
    %v1952 = vld [vmem:[%s1923 + $0xe0] sm:$0xff]
    %v1953 = vld [vmem:[%s1923 + $0xe8] sm:$0xff]
    %v1954 = vld [vmem:[%s1923 + $0xf0] sm:$0xff]
    %v1955 = vld [vmem:[%s1923 + $0xf8] sm:$0xff]
    %v1956 = vld [vmem:[%s1923 + $0x100] sm:$0xff]
    %v1957 = vld [vmem:[%s1923 + $0x108] sm:$0xff]
    %v1958 = vld [vmem:[%s1923 + $0x110] sm:$0xff]
    %v1959 = vld [vmem:[%s1923 + $0x118] sm:$0xff]
    %v1960 = vld [vmem:[%s1923 + $0x120] sm:$0xff]
    %v1961 = vld [vmem:[%s1923 + $0x128] sm:$0xff]
    %v1962 = vld [vmem:[%s1923 + $0x130] sm:$0xff]
    %v1963 = vld [vmem:[%s1923 + $0x138] sm:$0xff]
    %v1964 = vld [vmem:[%s1923 + $0x140] sm:$0xff]
    %v1965 = vld [vmem:[%s1923 + $0x148] sm:$0xff]
    %v1966 = vld [vmem:[%s1923 + $0x150] sm:$0xff]
    %v1967 = vld [vmem:[%s1923 + $0x158] sm:$0xff]
    %v1968 = vld [vmem:[%s1923 + $0x160] sm:$0xff]
    %v1969 = vld [vmem:[%s1923 + $0x168] sm:$0xff]
    %v1970 = vld [vmem:[%s1923 + $0x170] sm:$0xff]
    %v1971 = vld [vmem:[%s1923 + $0x178] sm:$0xff]
    %v1972 = vld [vmem:[%s1923 + $0x180] sm:$0xff]
    %v1973 = vld [vmem:[%s1923 + $0x188] sm:$0xff]
    %v1974 = vld [vmem:[%s1923 + $0x190] sm:$0xff]
    %v1975 = vld [vmem:[%s1923 + $0x198] sm:$0xff]
    %v1976 = vld [vmem:[%s1923 + $0x1a0] sm:$0xff]
    %v1977 = vld [vmem:[%s1923 + $0x1a8] sm:$0xff]
    %v1978 = vld [vmem:[%s1923 + $0x1b0] sm:$0xff]
    %v1979 = vld [vmem:[%s1923 + $0x1b8] sm:$0xff]
    %v1980 = vld [vmem:[%s1923 + $0x1c0] sm:$0xff]
    %v1981 = vld [vmem:[%s1923 + $0x1c8] sm:$0xff]
    %v1982 = vld [vmem:[%s1923 + $0x1d0] sm:$0xff]
    %v1983 = vld [vmem:[%s1923 + $0x1d8] sm:$0xff]
    %v1984 = vld [vmem:[%s1923 + $0x1e0] sm:$0xff]
    %v1985 = vld [vmem:[%s1923 + $0x1e8] sm:$0xff]
    %v1986 = vld [vmem:[%s1923 + $0x1f0] sm:$0xff]
    %v1987 = vld [vmem:[%s1923 + $0x1f8] sm:$0xff]
    %v1988 = vld [vmem:[%s1923 + $0x200] sm:$0xff]
    %v1989 = vld [vmem:[%s1923 + $0x208] sm:$0xff]
    %v1990 = vld [vmem:[%s1923 + $0x210] sm:$0xff]
    %v1991 = vld [vmem:[%s1923 + $0x218] sm:$0xff]
    %v1992 = vld [vmem:[%s1923 + $0x220] sm:$0xff]
    %v1993 = vld [vmem:[%s1923 + $0x228] sm:$0xff]
    %v1994 = vld [vmem:[%s1923 + $0x230] sm:$0xff]
    %v1995 = vld [vmem:[%s1923 + $0x238] sm:$0xff]
    %v1996 = vld [vmem:[%s1923 + $0x240] sm:$0xff]
    %v1997 = vld [vmem:[%s1923 + $0x248] sm:$0xff]
    %v1998 = vld [vmem:[%s1923 + $0x250] sm:$0xff]
    %v1999 = vld [vmem:[%s1923 + $0x258] sm:$0xff]
    %v2000 = vld [vmem:[%s1923 + $0x260] sm:$0xff]
    %v2001 = vld [vmem:[%s1923 + $0x268] sm:$0xff]
    %v2002 = vld [vmem:[%s1923 + $0x270] sm:$0xff]
    %v2003 = vld [vmem:[%s1923 + $0x278] sm:$0xff]
    %s2004 = scalar_lea.vmem [#allocation10], 20
    %v2005 = vld [vmem:[%s2004] sm:$0xff]
    %v2006 = vld [vmem:[%s2004 + $0x8] sm:$0x3]
    %v2009 = vlaneseq
    %v2010 = vshrl.u32 %v2009, 7
    %v2011 = vsub.s32 0, %v2010
    %v2012 = vrot.slane %v2005, %v2011
    %v2013 = vlaneseq
    %v2014 = vshrl.u32 %v2013, 7
    %v2015 = vsub.s32 1, %v2014
    %v2016 = vrot.slane %v2005, %v2015
    %v2017 = vlaneseq
    %v2018 = vshrl.u32 %v2017, 7
    %v2019 = vsub.s32 2, %v2018
    %v2020 = vrot.slane %v2005, %v2019
    %v2021 = vlaneseq
    %v2022 = vshrl.u32 %v2021, 7
    %v2023 = vsub.s32 3, %v2022
    %v2024 = vrot.slane %v2005, %v2023
    %v2025 = vlaneseq
    %v2026 = vshrl.u32 %v2025, 7
    %v2027 = vsub.s32 4, %v2026
    %v2028 = vrot.slane %v2005, %v2027
    %v2029 = vlaneseq
    %v2030 = vshrl.u32 %v2029, 7
    %v2031 = vsub.s32 5, %v2030
    %v2032 = vrot.slane %v2005, %v2031
    %v2033 = vlaneseq
    %v2034 = vshrl.u32 %v2033, 7
    %v2035 = vsub.s32 6, %v2034
    %v2036 = vrot.slane %v2005, %v2035
    %v2037 = vlaneseq
    %v2038 = vshrl.u32 %v2037, 7
    %v2039 = vsub.s32 7, %v2038
    %v2040 = vrot.slane %v2005, %v2039
    %v2041 = vlaneseq
    %v2042 = vshrl.u32 %v2041, 7
    %v2043 = vsub.s32 0, %v2042
    %v2044 = vrot.slane %v2006, %v2043
    %v2045 = vlaneseq
    %v2046 = vshrl.u32 %v2045, 7
    %v2047 = vsub.s32 1, %v2046
    %v2048 = vrot.slane %v2006, %v2047
    %v2139 = vunpack.c.l.b16 %v1924
    %v2140 = vunpack.c.h.b16 %v1924
    %v2141 = vunpack.c.l.b16 %v1925
    %v2142 = vunpack.c.h.b16 %v1925
    %v2143 = vunpack.c.l.b16 %v1926
    %v2144 = vunpack.c.h.b16 %v1926
    %v2145 = vunpack.c.l.b16 %v1927
    %v2146 = vunpack.c.h.b16 %v1927
    %v2147 = vunpack.c.l.b16 %v1928
    %v2148 = vunpack.c.h.b16 %v1928
    %v2149 = vunpack.c.l.b16 %v1929
    %v2150 = vunpack.c.h.b16 %v1929
    %v2151 = vunpack.c.l.b16 %v1930
    %v2152 = vunpack.c.h.b16 %v1930
    %v2153 = vunpack.c.l.b16 %v1931
    %v2154 = vunpack.c.h.b16 %v1931
    %v2155 = vunpack.c.l.b16 %v1932
    %v2156 = vunpack.c.h.b16 %v1932
    %v2157 = vunpack.c.l.b16 %v1933
    %v2158 = vunpack.c.h.b16 %v1933
    %v2159 = vunpack.c.l.b16 %v1934
    %v2160 = vunpack.c.h.b16 %v1934
    %v2161 = vunpack.c.l.b16 %v1935
    %v2162 = vunpack.c.h.b16 %v1935
    %v2163 = vunpack.c.l.b16 %v1936
    %v2164 = vunpack.c.h.b16 %v1936
    %v2165 = vunpack.c.l.b16 %v1937
    %v2166 = vunpack.c.h.b16 %v1937
    %v2167 = vunpack.c.l.b16 %v1938
    %v2168 = vunpack.c.h.b16 %v1938
    %v2169 = vunpack.c.l.b16 %v1939
    %v2170 = vunpack.c.h.b16 %v1939
    %v2171 = vunpack.c.l.b16 %v1940
    %v2172 = vunpack.c.h.b16 %v1940
    %v2173 = vunpack.c.l.b16 %v1941
    %v2174 = vunpack.c.h.b16 %v1941
    %v2175 = vunpack.c.l.b16 %v1942
    %v2176 = vunpack.c.h.b16 %v1942
    %v2177 = vunpack.c.l.b16 %v1943
    %v2178 = vunpack.c.h.b16 %v1943
    %v2179 = vunpack.c.l.b16 %v1944
    %v2180 = vunpack.c.h.b16 %v1944
    %v2181 = vunpack.c.l.b16 %v1945
    %v2182 = vunpack.c.h.b16 %v1945
    %v2183 = vunpack.c.l.b16 %v1946
    %v2184 = vunpack.c.h.b16 %v1946
    %v2185 = vunpack.c.l.b16 %v1947
    %v2186 = vunpack.c.h.b16 %v1947
    %v2187 = vunpack.c.l.b16 %v1948
    %v2188 = vunpack.c.h.b16 %v1948
    %v2189 = vunpack.c.l.b16 %v1949
    %v2190 = vunpack.c.h.b16 %v1949
    %v2191 = vunpack.c.l.b16 %v1950
    %v2192 = vunpack.c.h.b16 %v1950
    %v2193 = vunpack.c.l.b16 %v1951
    %v2194 = vunpack.c.h.b16 %v1951
    %v2195 = vunpack.c.l.b16 %v1952
    %v2196 = vunpack.c.h.b16 %v1952
    %v2197 = vunpack.c.l.b16 %v1953
    %v2198 = vunpack.c.h.b16 %v1953
    %v2199 = vunpack.c.l.b16 %v1954
    %v2200 = vunpack.c.h.b16 %v1954
    %v2201 = vunpack.c.l.b16 %v1955
    %v2202 = vunpack.c.h.b16 %v1955
    %v2203 = vunpack.c.l.b16 %v1956
    %v2204 = vunpack.c.h.b16 %v1956
    %v2205 = vunpack.c.l.b16 %v1957
    %v2206 = vunpack.c.h.b16 %v1957
    %v2207 = vunpack.c.l.b16 %v1958
    %v2208 = vunpack.c.h.b16 %v1958
    %v2209 = vunpack.c.l.b16 %v1959
    %v2210 = vunpack.c.h.b16 %v1959
    %v2211 = vunpack.c.l.b16 %v1960
    %v2212 = vunpack.c.h.b16 %v1960
    %v2213 = vunpack.c.l.b16 %v1961
    %v2214 = vunpack.c.h.b16 %v1961
    %v2215 = vunpack.c.l.b16 %v1962
    %v2216 = vunpack.c.h.b16 %v1962
    %v2217 = vunpack.c.l.b16 %v1963
    %v2218 = vunpack.c.h.b16 %v1963
    %v2219 = vunpack.c.l.b16 %v1964
    %v2220 = vunpack.c.h.b16 %v1964
    %v2221 = vunpack.c.l.b16 %v1965
    %v2222 = vunpack.c.h.b16 %v1965
    %v2223 = vunpack.c.l.b16 %v1966
    %v2224 = vunpack.c.h.b16 %v1966
    %v2225 = vunpack.c.l.b16 %v1967
    %v2226 = vunpack.c.h.b16 %v1967
    %v2227 = vunpack.c.l.b16 %v1968
    %v2228 = vunpack.c.h.b16 %v1968
    %v2229 = vunpack.c.l.b16 %v1969
    %v2230 = vunpack.c.h.b16 %v1969
    %v2231 = vunpack.c.l.b16 %v1970
    %v2232 = vunpack.c.h.b16 %v1970
    %v2233 = vunpack.c.l.b16 %v1971
    %v2234 = vunpack.c.h.b16 %v1971
    %v2235 = vunpack.c.l.b16 %v1972
    %v2236 = vunpack.c.h.b16 %v1972
    %v2237 = vunpack.c.l.b16 %v1973
    %v2238 = vunpack.c.h.b16 %v1973
    %v2239 = vunpack.c.l.b16 %v1974
    %v2240 = vunpack.c.h.b16 %v1974
    %v2241 = vunpack.c.l.b16 %v1975
    %v2242 = vunpack.c.h.b16 %v1975
    %v2243 = vunpack.c.l.b16 %v1976
    %v2244 = vunpack.c.h.b16 %v1976
    %v2245 = vunpack.c.l.b16 %v1977
    %v2246 = vunpack.c.h.b16 %v1977
    %v2247 = vunpack.c.l.b16 %v1978
    %v2248 = vunpack.c.h.b16 %v1978
    %v2249 = vunpack.c.l.b16 %v1979
    %v2250 = vunpack.c.h.b16 %v1979
    %v2251 = vunpack.c.l.b16 %v1980
    %v2252 = vunpack.c.h.b16 %v1980
    %v2253 = vunpack.c.l.b16 %v1981
    %v2254 = vunpack.c.h.b16 %v1981
    %v2255 = vunpack.c.l.b16 %v1982
    %v2256 = vunpack.c.h.b16 %v1982
    %v2257 = vunpack.c.l.b16 %v1983
    %v2258 = vunpack.c.h.b16 %v1983
    %v2259 = vunpack.c.l.b16 %v1984
    %v2260 = vunpack.c.h.b16 %v1984
    %v2261 = vunpack.c.l.b16 %v1985
    %v2262 = vunpack.c.h.b16 %v1985
    %v2263 = vunpack.c.l.b16 %v1986
    %v2264 = vunpack.c.h.b16 %v1986
    %v2265 = vunpack.c.l.b16 %v1987
    %v2266 = vunpack.c.h.b16 %v1987
    %v2267 = vunpack.c.l.b16 %v1988
    %v2268 = vunpack.c.h.b16 %v1988
    %v2269 = vunpack.c.l.b16 %v1989
    %v2270 = vunpack.c.h.b16 %v1989
    %v2271 = vunpack.c.l.b16 %v1990
    %v2272 = vunpack.c.h.b16 %v1990
    %v2273 = vunpack.c.l.b16 %v1991
    %v2274 = vunpack.c.h.b16 %v1991
    %v2275 = vunpack.c.l.b16 %v1992
    %v2276 = vunpack.c.h.b16 %v1992
    %v2277 = vunpack.c.l.b16 %v1993
    %v2278 = vunpack.c.h.b16 %v1993
    %v2279 = vunpack.c.l.b16 %v1994
    %v2280 = vunpack.c.h.b16 %v1994
    %v2281 = vunpack.c.l.b16 %v1995
    %v2282 = vunpack.c.h.b16 %v1995
    %v2283 = vunpack.c.l.b16 %v1996
    %v2284 = vunpack.c.h.b16 %v1996
    %v2285 = vunpack.c.l.b16 %v1997
    %v2286 = vunpack.c.h.b16 %v1997
    %v2287 = vunpack.c.l.b16 %v1998
    %v2288 = vunpack.c.h.b16 %v1998
    %v2289 = vunpack.c.l.b16 %v1999
    %v2290 = vunpack.c.h.b16 %v1999
    %v2291 = vunpack.c.l.b16 %v2000
    %v2292 = vunpack.c.h.b16 %v2000
    %v2293 = vunpack.c.l.b16 %v2001
    %v2294 = vunpack.c.h.b16 %v2001
    %v2295 = vunpack.c.l.b16 %v2002
    %v2296 = vunpack.c.h.b16 %v2002
    %v2297 = vunpack.c.l.b16 %v2003
    %v2298 = vunpack.c.h.b16 %v2003
    %v2299 = vpack.c.b16 %v2149, %v2139
    %v2300 = vpack.c.b16 %v2150, %v2140
    %v2301 = vpack.c.b16 %v2151, %v2141
    %v2302 = vpack.c.b16 %v2152, %v2142
    %v2303 = vpack.c.b16 %v2153, %v2143
    %v2304 = vpack.c.b16 %v2154, %v2144
    %v2305 = vpack.c.b16 %v2155, %v2145
    %v2306 = vpack.c.b16 %v2156, %v2146
    %v2307 = vpack.c.b16 %v2157, %v2147
    %v2308 = vpack.c.b16 %v2158, %v2148
    %v2309 = vpack.c.b16 %v2169, %v2159
    %v2310 = vpack.c.b16 %v2170, %v2160
    %v2311 = vpack.c.b16 %v2171, %v2161
    %v2312 = vpack.c.b16 %v2172, %v2162
    %v2313 = vpack.c.b16 %v2173, %v2163
    %v2314 = vpack.c.b16 %v2174, %v2164
    %v2315 = vpack.c.b16 %v2175, %v2165
    %v2316 = vpack.c.b16 %v2176, %v2166
    %v2317 = vpack.c.b16 %v2177, %v2167
    %v2318 = vpack.c.b16 %v2178, %v2168
    %v2319 = vpack.c.b16 %v2189, %v2179
    %v2320 = vpack.c.b16 %v2190, %v2180
    %v2321 = vpack.c.b16 %v2191, %v2181
    %v2322 = vpack.c.b16 %v2192, %v2182
    %v2323 = vpack.c.b16 %v2193, %v2183
    %v2324 = vpack.c.b16 %v2194, %v2184
    %v2325 = vpack.c.b16 %v2195, %v2185
    %v2326 = vpack.c.b16 %v2196, %v2186
    %v2327 = vpack.c.b16 %v2197, %v2187
    %v2328 = vpack.c.b16 %v2198, %v2188
    %v2329 = vpack.c.b16 %v2209, %v2199
    %v2330 = vpack.c.b16 %v2210, %v2200
    %v2331 = vpack.c.b16 %v2211, %v2201
    %v2332 = vpack.c.b16 %v2212, %v2202
    %v2333 = vpack.c.b16 %v2213, %v2203
    %v2334 = vpack.c.b16 %v2214, %v2204
    %v2335 = vpack.c.b16 %v2215, %v2205
    %v2336 = vpack.c.b16 %v2216, %v2206
    %v2337 = vpack.c.b16 %v2217, %v2207
    %v2338 = vpack.c.b16 %v2218, %v2208
    %v2339 = vpack.c.b16 %v2229, %v2219
    %v2340 = vpack.c.b16 %v2230, %v2220
    %v2341 = vpack.c.b16 %v2231, %v2221
    %v2342 = vpack.c.b16 %v2232, %v2222
    %v2343 = vpack.c.b16 %v2233, %v2223
    %v2344 = vpack.c.b16 %v2234, %v2224
    %v2345 = vpack.c.b16 %v2235, %v2225
    %v2346 = vpack.c.b16 %v2236, %v2226
    %v2347 = vpack.c.b16 %v2237, %v2227
    %v2348 = vpack.c.b16 %v2238, %v2228
    %v2349 = vpack.c.b16 %v2249, %v2239
    %v2350 = vpack.c.b16 %v2250, %v2240
    %v2351 = vpack.c.b16 %v2251, %v2241
    %v2352 = vpack.c.b16 %v2252, %v2242
    %v2353 = vpack.c.b16 %v2253, %v2243
    %v2354 = vpack.c.b16 %v2254, %v2244
    %v2355 = vpack.c.b16 %v2255, %v2245
    %v2356 = vpack.c.b16 %v2256, %v2246
    %v2357 = vpack.c.b16 %v2257, %v2247
    %v2358 = vpack.c.b16 %v2258, %v2248
    %v2359 = vpack.c.b16 %v2269, %v2259
    %v2360 = vpack.c.b16 %v2270, %v2260
    %v2361 = vpack.c.b16 %v2271, %v2261
    %v2362 = vpack.c.b16 %v2272, %v2262
    %v2363 = vpack.c.b16 %v2273, %v2263
    %v2364 = vpack.c.b16 %v2274, %v2264
    %v2365 = vpack.c.b16 %v2275, %v2265
    %v2366 = vpack.c.b16 %v2276, %v2266
    %v2367 = vpack.c.b16 %v2277, %v2267
    %v2368 = vpack.c.b16 %v2278, %v2268
    %v2369 = vpack.c.b16 %v2289, %v2279
    %v2370 = vpack.c.b16 %v2290, %v2280
    %v2371 = vpack.c.b16 %v2291, %v2281
    %v2372 = vpack.c.b16 %v2292, %v2282
    %v2373 = vpack.c.b16 %v2293, %v2283
    %v2374 = vpack.c.b16 %v2294, %v2284
    %v2375 = vpack.c.b16 %v2295, %v2285
    %v2376 = vpack.c.b16 %v2296, %v2286
    %v2377 = vpack.c.b16 %v2297, %v2287
    %v2378 = vpack.c.b16 %v2298, %v2288
    %2459 = vmatprep.subr.bf16.mxu0 %v2300
    %2460 = vmatpush1.bf16.msra.mxu0 %v2299
    %2461 = vmatprep.subr.bf16.mxu0 %v2310
    %2462 = vmatpush1.bf16.msra.mxu0 %v2309
    %2463 = vmatprep.subr.bf16.mxu0 %v2320
    %2464 = vmatpush1.bf16.msra.mxu0 %v2319
    %2465 = vmatprep.subr.bf16.mxu0 %v2330
    %2466 = vmatpush1.bf16.msra.mxu0 %v2329
    %2467 = vmatprep.subr.bf16.mxu0 %v2340
    %2468 = vmatpush1.bf16.msra.mxu0 %v2339
    %2469 = vmatprep.subr.bf16.mxu0 %v2350
    %2470 = vmatpush1.bf16.msra.mxu0 %v2349
    %2471 = vmatprep.subr.bf16.mxu0 %v2360
    %2472 = vmatpush1.bf16.msra.mxu0 %v2359
    %2473 = vmatprep.subr.bf16.mxu0 %v2370
    %2474 = vmatpush1.bf16.msra.mxu0 %v2369
    %2475 = vmatprep.subr.bf16.mxu0 0
    %2476 = vmatpush1.bf16.msra.mxu0 0
    %2477 = vmatprep.subr.bf16.mxu0 0
    %2478 = vmatpush1.bf16.msra.mxu0 0
    %2479 = vmatprep.subr.bf16.mxu0 0
    %2480 = vmatpush1.bf16.msra.mxu0 0
    %2481 = vmatprep.subr.bf16.mxu0 0
    %2482 = vmatpush1.bf16.msra.mxu0 0
    %2483 = vmatprep.subr.bf16.mxu0 0
    %2484 = vmatpush1.bf16.msra.mxu0 0
    %2485 = vmatprep.subr.bf16.mxu0 0
    %2486 = vmatpush1.bf16.msra.mxu0 0
    %2487 = vmatprep.subr.bf16.mxu0 0
    %2488 = vmatpush1.bf16.msra.mxu0 0
    %2489 = vmatprep.subr.bf16.mxu0 0
    %2490 = vmatpush1.bf16.msra.mxu0 0
    %2491 = vmatprep.mubr.bf16.mxu0 0
    %2492 = vmatmul.mubr.bf16.gmra.mrb[0].mxu0 %v1922
    %v2493 = vpop.f32.mrb[0].mxu0
    %v2494 = vadd.f32 %v2012, %v2493
    %v2495 = vpop.f32.mrb[0].mxu0
    %v2496 = vadd.f32 %v2016, %v2495
    %v2497 = vpop.f32.mrb[0].mxu0
    %v2498 = vadd.f32 %v2012, %v2497
    %v2499 = vpop.f32.mrb[0].mxu0
    %v2500 = vadd.f32 %v2016, %v2499
    %2501 = vdwg.mxu0
    %2502 = vmatprep.subr.bf16.mxu0 %v2302
    %2503 = vmatpush1.bf16.msra.mxu0 %v2301
    %2504 = vmatprep.subr.bf16.mxu0 %v2312
    %2505 = vmatpush1.bf16.msra.mxu0 %v2311
    %2506 = vmatprep.subr.bf16.mxu0 %v2322
    %2507 = vmatpush1.bf16.msra.mxu0 %v2321
    %2508 = vmatprep.subr.bf16.mxu0 %v2332
    %2509 = vmatpush1.bf16.msra.mxu0 %v2331
    %2510 = vmatprep.subr.bf16.mxu0 %v2342
    %2511 = vmatpush1.bf16.msra.mxu0 %v2341
    %2512 = vmatprep.subr.bf16.mxu0 %v2352
    %2513 = vmatpush1.bf16.msra.mxu0 %v2351
    %2514 = vmatprep.subr.bf16.mxu0 %v2362
    %2515 = vmatpush1.bf16.msra.mxu0 %v2361
    %2516 = vmatprep.subr.bf16.mxu0 %v2372
    %2517 = vmatpush1.bf16.msra.mxu0 %v2371
    %2518 = vmatprep.subr.bf16.mxu0 0
    %2519 = vmatpush1.bf16.msra.mxu0 0
    %2520 = vmatprep.subr.bf16.mxu0 0
    %2521 = vmatpush1.bf16.msra.mxu0 0
    %2522 = vmatprep.subr.bf16.mxu0 0
    %2523 = vmatpush1.bf16.msra.mxu0 0
    %2524 = vmatprep.subr.bf16.mxu0 0
    %2525 = vmatpush1.bf16.msra.mxu0 0
    %2526 = vmatprep.subr.bf16.mxu0 0
    %2527 = vmatpush1.bf16.msra.mxu0 0
    %2528 = vmatprep.subr.bf16.mxu0 0
    %2529 = vmatpush1.bf16.msra.mxu0 0
    %2530 = vmatprep.subr.bf16.mxu0 0
    %2531 = vmatpush1.bf16.msra.mxu0 0
    %2532 = vmatprep.subr.bf16.mxu0 0
    %2533 = vmatpush1.bf16.msra.mxu0 0
    %2534 = vmatprep.mubr.bf16.mxu0 0
    %2535 = vmatmul.mubr.bf16.gmra.mrb[0].mxu0 %v1922
    %v2536 = vpop.f32.mrb[0].mxu0
    %v2537 = vadd.f32 %v2020, %v2536
    %v2538 = vpop.f32.mrb[0].mxu0
    %v2539 = vadd.f32 %v2024, %v2538
    %v2540 = vpop.f32.mrb[0].mxu0
    %v2541 = vadd.f32 %v2020, %v2540
    %v2542 = vpop.f32.mrb[0].mxu0
    %v2543 = vadd.f32 %v2024, %v2542
    %2544 = vdwg.mxu0
    %2545 = vmatprep.subr.bf16.mxu0 %v2304
    %2546 = vmatpush1.bf16.msra.mxu0 %v2303
    %2547 = vmatprep.subr.bf16.mxu0 %v2314
    %2548 = vmatpush1.bf16.msra.mxu0 %v2313
    %2549 = vmatprep.subr.bf16.mxu0 %v2324
    %2550 = vmatpush1.bf16.msra.mxu0 %v2323
    %2551 = vmatprep.subr.bf16.mxu0 %v2334
    %2552 = vmatpush1.bf16.msra.mxu0 %v2333
    %2553 = vmatprep.subr.bf16.mxu0 %v2344
    %2554 = vmatpush1.bf16.msra.mxu0 %v2343
    %2555 = vmatprep.subr.bf16.mxu0 %v2354
    %2556 = vmatpush1.bf16.msra.mxu0 %v2353
    %2557 = vmatprep.subr.bf16.mxu0 %v2364
    %2558 = vmatpush1.bf16.msra.mxu0 %v2363
    %2559 = vmatprep.subr.bf16.mxu0 %v2374
    %2560 = vmatpush1.bf16.msra.mxu0 %v2373
    %2561 = vmatprep.subr.bf16.mxu0 0
    %2562 = vmatpush1.bf16.msra.mxu0 0
    %2563 = vmatprep.subr.bf16.mxu0 0
    %2564 = vmatpush1.bf16.msra.mxu0 0
    %2565 = vmatprep.subr.bf16.mxu0 0
    %2566 = vmatpush1.bf16.msra.mxu0 0
    %2567 = vmatprep.subr.bf16.mxu0 0
    %2568 = vmatpush1.bf16.msra.mxu0 0
    %2569 = vmatprep.subr.bf16.mxu0 0
    %2570 = vmatpush1.bf16.msra.mxu0 0
    %2571 = vmatprep.subr.bf16.mxu0 0
    %2572 = vmatpush1.bf16.msra.mxu0 0
    %2573 = vmatprep.subr.bf16.mxu0 0
    %2574 = vmatpush1.bf16.msra.mxu0 0
    %2575 = vmatprep.subr.bf16.mxu0 0
    %2576 = vmatpush1.bf16.msra.mxu0 0
    %2577 = vmatprep.mubr.bf16.mxu0 0
    %2578 = vmatmul.mubr.bf16.gmra.mrb[0].mxu0 %v1922
    %v2579 = vpop.f32.mrb[0].mxu0
    %v2580 = vadd.f32 %v2028, %v2579
    %v2581 = vpop.f32.mrb[0].mxu0
    %v2582 = vadd.f32 %v2032, %v2581
    %v2583 = vpop.f32.mrb[0].mxu0
    %v2584 = vadd.f32 %v2028, %v2583
    %v2585 = vpop.f32.mrb[0].mxu0
    %v2586 = vadd.f32 %v2032, %v2585
    %2587 = vdwg.mxu0
    %2588 = vmatprep.subr.bf16.mxu0 %v2306
    %2589 = vmatpush1.bf16.msra.mxu0 %v2305
    %2590 = vmatprep.subr.bf16.mxu0 %v2316
    %2591 = vmatpush1.bf16.msra.mxu0 %v2315
    %2592 = vmatprep.subr.bf16.mxu0 %v2326
    %2593 = vmatpush1.bf16.msra.mxu0 %v2325
    %2594 = vmatprep.subr.bf16.mxu0 %v2336
    %2595 = vmatpush1.bf16.msra.mxu0 %v2335
    %2596 = vmatprep.subr.bf16.mxu0 %v2346
    %2597 = vmatpush1.bf16.msra.mxu0 %v2345
    %2598 = vmatprep.subr.bf16.mxu0 %v2356
    %2599 = vmatpush1.bf16.msra.mxu0 %v2355
    %2600 = vmatprep.subr.bf16.mxu0 %v2366
    %2601 = vmatpush1.bf16.msra.mxu0 %v2365
    %2602 = vmatprep.subr.bf16.mxu0 %v2376
    %2603 = vmatpush1.bf16.msra.mxu0 %v2375
    %2604 = vmatprep.subr.bf16.mxu0 0
    %2605 = vmatpush1.bf16.msra.mxu0 0
    %2606 = vmatprep.subr.bf16.mxu0 0
    %2607 = vmatpush1.bf16.msra.mxu0 0
    %2608 = vmatprep.subr.bf16.mxu0 0
    %2609 = vmatpush1.bf16.msra.mxu0 0
    %2610 = vmatprep.subr.bf16.mxu0 0
    %2611 = vmatpush1.bf16.msra.mxu0 0
    %2612 = vmatprep.subr.bf16.mxu0 0
    %2613 = vmatpush1.bf16.msra.mxu0 0
    %2614 = vmatprep.subr.bf16.mxu0 0
    %2615 = vmatpush1.bf16.msra.mxu0 0
    %2616 = vmatprep.subr.bf16.mxu0 0
    %2617 = vmatpush1.bf16.msra.mxu0 0
    %2618 = vmatprep.subr.bf16.mxu0 0
    %2619 = vmatpush1.bf16.msra.mxu0 0
    %2620 = vmatprep.mubr.bf16.mxu0 0
    %2621 = vmatmul.mubr.bf16.gmra.mrb[0].mxu0 %v1922
    %v2622 = vpop.f32.mrb[0].mxu0
    %v2623 = vadd.f32 %v2036, %v2622
    %v2624 = vpop.f32.mrb[0].mxu0
    %v2625 = vadd.f32 %v2040, %v2624
    %v2626 = vpop.f32.mrb[0].mxu0
    %v2627 = vadd.f32 %v2036, %v2626
    %v2628 = vpop.f32.mrb[0].mxu0
    %v2629 = vadd.f32 %v2040, %v2628
    %2630 = vdwg.mxu0
    %2631 = vmatprep.subr.bf16.mxu0 %v2308
    %2632 = vmatpush1.bf16.msra.mxu0 %v2307
    %2633 = vmatprep.subr.bf16.mxu0 %v2318
    %2634 = vmatpush1.bf16.msra.mxu0 %v2317
    %2635 = vmatprep.subr.bf16.mxu0 %v2328
    %2636 = vmatpush1.bf16.msra.mxu0 %v2327
    %2637 = vmatprep.subr.bf16.mxu0 %v2338
    %2638 = vmatpush1.bf16.msra.mxu0 %v2337
    %2639 = vmatprep.subr.bf16.mxu0 %v2348
    %2640 = vmatpush1.bf16.msra.mxu0 %v2347
    %2641 = vmatprep.subr.bf16.mxu0 %v2358
    %2642 = vmatpush1.bf16.msra.mxu0 %v2357
    %2643 = vmatprep.subr.bf16.mxu0 %v2368
    %2644 = vmatpush1.bf16.msra.mxu0 %v2367
    %2645 = vmatprep.subr.bf16.mxu0 %v2378
    %2646 = vmatpush1.bf16.msra.mxu0 %v2377
    %2647 = vmatprep.subr.bf16.mxu0 0
    %2648 = vmatpush1.bf16.msra.mxu0 0
    %2649 = vmatprep.subr.bf16.mxu0 0
    %2650 = vmatpush1.bf16.msra.mxu0 0
    %2651 = vmatprep.subr.bf16.mxu0 0
    %2652 = vmatpush1.bf16.msra.mxu0 0
    %2653 = vmatprep.subr.bf16.mxu0 0
    %2654 = vmatpush1.bf16.msra.mxu0 0
    %2655 = vmatprep.subr.bf16.mxu0 0
    %2656 = vmatpush1.bf16.msra.mxu0 0
    %2657 = vmatprep.subr.bf16.mxu0 0
    %2658 = vmatpush1.bf16.msra.mxu0 0
    %2659 = vmatprep.subr.bf16.mxu0 0
    %2660 = vmatpush1.bf16.msra.mxu0 0
    %2661 = vmatprep.subr.bf16.mxu0 0
    %2662 = vmatpush1.bf16.msra.mxu0 0
    %2663 = vmatprep.mubr.bf16.mxu0 0
    %2664 = vmatmul.mubr.bf16.gmra.mrb[0].mxu0 %v1922
    %v2665 = vpop.f32.mrb[0].mxu0
    %v2666 = vadd.f32 %v2044, %v2665
    %v2667 = vpop.f32.mrb[0].mxu0
    %v2668 = vadd.f32 %v2048, %v2667
    %v2669 = vpop.f32.mrb[0].mxu0
    %v2670 = vadd.f32 %v2044, %v2669
    %v2671 = vpop.f32.mrb[0].mxu0
    %v2672 = vadd.f32 %v2048, %v2671
    %2673 = vdwg.mxu0
    %v2674 = vmul.f32 %v2494, %v140
    %v2675 = vmul.f32 %v2496, %v141
    %v2676 = vmul.f32 %v2537, %v142
    %v2677 = vmul.f32 %v2539, %v143
    %v2678 = vmul.f32 %v2580, %v144
    %v2679 = vmul.f32 %v2582, %v145
    %v2680 = vmul.f32 %v2623, %v146
    %v2681 = vmul.f32 %v2625, %v147
    %v2682 = vmul.f32 %v2666, %v148
    %v2683 = vmul.f32 %v2668, %v149
    %v2684 = vmul.f32 %v2498, %v150
    %v2685 = vmul.f32 %v2500, %v151
    %v2686 = vmul.f32 %v2541, %v152
    %v2687 = vmul.f32 %v2543, %v153
    %v2688 = vmul.f32 %v2584, %v154
    %v2689 = vmul.f32 %v2586, %v155
    %v2690 = vmul.f32 %v2627, %v156
    %v2691 = vmul.f32 %v2629, %v157
    %v2692 = vmul.f32 %v2670, %v158
    %v2693 = vmul.f32 %v2672, %v159
    %v2694 = vadd.f32 %v2674, %v2675
    %v2695 = vadd.f32 %v2684, %v2685
    %v2696 = vadd.f32 %v2694, %v2676
    %v2697 = vadd.f32 %v2695, %v2686
    %v2698 = vadd.f32 %v2696, %v2677
    %v2699 = vadd.f32 %v2697, %v2687
    %v2700 = vadd.f32 %v2698, %v2678
    %v2701 = vadd.f32 %v2699, %v2688
    %v2702 = vadd.f32 %v2700, %v2679
    %v2703 = vadd.f32 %v2701, %v2689
    %v2704 = vadd.f32 %v2702, %v2680
    %v2705 = vadd.f32 %v2703, %v2690
    %v2706 = vadd.f32 %v2704, %v2681
    %v2707 = vadd.f32 %v2705, %v2691
    %v2708 = vadd.f32 %v2706, %v2682
    %v2709 = vadd.f32 %v2707, %v2692
    %v2710 = vadd.f32 %v2708, %v2683
    %v2711 = vadd.f32 %v2709, %v2693
    %v2712 = vmax.f32 %v2710, 0.0
    %v2713 = vmax.f32 %v2711, 0.0
    %s2714 = scalar_lea.vmem %s5, 2
    %v2715 = vld [vmem:[%s2714] sm:$0x1]
    %v2717 = vlaneseq
    %v2718 = vshrl.u32 %v2717, 7
    %v2719 = vsub.s32 0, %v2718
    %v2720 = vrot.slane %v2715, %v2719
    %v2722 = vmul.f32 %v2712, %v2720
    %v2723 = vmul.f32 %v2713, %v2720
    %s2724 = scalar_lea.vmem %s6, 2
    %v2725 = vld [vmem:[%s2724] sm:$0x1]
    %v2727 = vlaneseq
    %v2728 = vshrl.u32 %v2727, 7
    %v2729 = vsub.s32 0, %v2728
    %v2730 = vrot.slane %v2725, %v2729
    %v2732 = vadd.f32 %v2722, %v2730
    %v2733 = vadd.f32 %v2723, %v2730
    %v2734 = vld [vmem:[#allocation11] sm:$0xff]
    %v2735 = vld [vmem:[#allocation11 + $0x8] sm:$0xff]
    %v2736 = vld [vmem:[#allocation11 + $0x10] sm:$0xff]
    %v2737 = vld [vmem:[#allocation11 + $0x18] sm:$0xff]
    %v2738 = vld [vmem:[#allocation11 + $0x20] sm:$0xff]
    %v2739 = vld [vmem:[#allocation11 + $0x28] sm:$0xff]
    %v2740 = vld [vmem:[#allocation11 + $0x30] sm:$0xff]
    %v2741 = vld [vmem:[#allocation11 + $0x38] sm:$0xff]
    %v2742 = vld [vmem:[#allocation11 + $0x40] sm:$0xff]
    %v2743 = vld [vmem:[#allocation11 + $0x48] sm:$0xff]
    %v2744 = vld [vmem:[#allocation11 + $0x50] sm:$0xff]
    %v2745 = vld [vmem:[#allocation11 + $0x58] sm:$0xff]
    %v2746 = vld [vmem:[#allocation11 + $0x60] sm:$0xff]
    %v2747 = vld [vmem:[#allocation11 + $0x68] sm:$0xff]
    %v2748 = vld [vmem:[#allocation11 + $0x70] sm:$0xff]
    %v2749 = vld [vmem:[#allocation11 + $0x78] sm:$0xff]
    %v2750 = vld [vmem:[%s8] sm:$0x1]
    %v2752 = vlaneseq
    %v2753 = vshrl.u32 %v2752, 7
    %v2754 = vsub.s32 0, %v2753
    %v2755 = vrot.slane %v2750, %v2754
    %2757 = vmatprep.subr.mxu0 0.0
    %2758 = vmatpush1.msra.mxu0 %v2734
    %2759 = vmatprep.subr.mxu0 0.0
    %2760 = vmatpush1.msra.mxu0 %v2735
    %2761 = vmatprep.subr.mxu0 0.0
    %2762 = vmatpush1.msra.mxu0 %v2736
    %2763 = vmatprep.subr.mxu0 0.0
    %2764 = vmatpush1.msra.mxu0 %v2737
    %2765 = vmatprep.subr.mxu0 0.0
    %2766 = vmatpush1.msra.mxu0 %v2738
    %2767 = vmatprep.subr.mxu0 0.0
    %2768 = vmatpush1.msra.mxu0 %v2739
    %2769 = vmatprep.subr.mxu0 0.0
    %2770 = vmatpush1.msra.mxu0 %v2740
    %2771 = vmatprep.subr.mxu0 0.0
    %2772 = vmatpush1.msra.mxu0 %v2741
    %2773 = vmatprep.subr.mxu0 0.0
    %2774 = vmatpush1.msra.mxu0 %v2742
    %2775 = vmatprep.subr.mxu0 0.0
    %2776 = vmatpush1.msra.mxu0 %v2743
    %2777 = vmatprep.subr.mxu0 0.0
    %2778 = vmatpush1.msra.mxu0 %v2744
    %2779 = vmatprep.subr.mxu0 0.0
    %2780 = vmatpush1.msra.mxu0 %v2745
    %2781 = vmatprep.subr.mxu0 0.0
    %2782 = vmatpush1.msra.mxu0 %v2746
    %2783 = vmatprep.subr.mxu0 0.0
    %2784 = vmatpush1.msra.mxu0 %v2747
    %2785 = vmatprep.subr.mxu0 0.0
    %2786 = vmatpush1.msra.mxu0 %v2748
    %2787 = vmatprep.subr.mxu0 0.0
    %2788 = vmatpush1.msra.mxu0 %v2749
    %2789 = vmatprep.subr.mxu0 0.0
    %2790 = vmatpush1.msra.mxu0 0.0
    %2791 = vmatprep.subr.mxu0 0.0
    %2792 = vmatpush1.msra.mxu0 0.0
    %2793 = vmatprep.subr.mxu0 0.0
    %2794 = vmatpush1.msra.mxu0 0.0
    %2795 = vmatprep.subr.mxu0 0.0
    %2796 = vmatpush1.msra.mxu0 0.0
    %2797 = vmatprep.subr.mxu0 0.0
    %2798 = vmatpush1.msra.mxu0 0.0
    %2799 = vmatprep.subr.mxu0 0.0
    %2800 = vmatpush1.msra.mxu0 0.0
    %2801 = vmatprep.subr.mxu0 0.0
    %2802 = vmatpush1.msra.mxu0 0.0
    %2803 = vmatprep.subr.mxu0 0.0
    %2804 = vmatpush1.msra.mxu0 0.0
    %2805 = vmatprep.subr.mxu0 0.0
    %2806 = vmatpush1.msra.mxu0 0.0
    %2807 = vmatprep.subr.mxu0 0.0
    %2808 = vmatpush1.msra.mxu0 0.0
    %2809 = vmatprep.subr.mxu0 0.0
    %2810 = vmatpush1.msra.mxu0 0.0
    %2811 = vmatprep.subr.mxu0 0.0
    %2812 = vmatpush1.msra.mxu0 0.0
    %2813 = vmatprep.subr.mxu0 0.0
    %2814 = vmatpush1.msra.mxu0 0.0
    %2815 = vmatprep.subr.mxu0 0.0
    %2816 = vmatpush1.msra.mxu0 0.0
    %2817 = vmatprep.subr.mxu0 0.0
    %2818 = vmatpush1.msra.mxu0 0.0
    %2819 = vmatprep.subr.mxu0 0.0
    %2820 = vmatpush1.msra.mxu0 0.0
    %2821 = vmatprep.mubr.f32.mxu0 0.0
    %2822 = vmatmul.mubr.f32.gmra.mrb[0].mxu0 %v2732
    %v2823 = vpop.f32.mrb[0].mxu0
    %v2824 = vadd.f32 %v2755, %v2823
    %v2825 = vpop.f32.mrb[0].mxu0
    %2826 = vmatprep.mubr.f32.mxu0 0.0
    %2827 = vmatmul.mubr.f32.gmra.mrb[0].mxu0 %v2733
    %v2828 = vpop.f32.mrb[0].mxu0
    %v2829 = vadd.f32 %v2755, %v2828
    %v2830 = vpop.f32.mrb[0].mxu0
    %2831 = vdwg.mxu0
    %v2832 = vld [vmem:[%s9] sm:$0xff]
    %v2834 = vsel %vm173, %v2832, 0
    %2836 = vmatprep.subr.mxu0 0.0
    %2837 = vmatpush1.msra.mxu0 %v2824
    %2838 = vmatprep.subr.mxu0 0.0
    %2839 = vmatpush1.msra.mxu0 %v2829
    %2840 = vmatprep.subr.mxu0 0.0
    %2841 = vmatpush1.msra.mxu0 0.0
    %2842 = vmatprep.subr.mxu0 0.0
    %2843 = vmatpush1.msra.mxu0 0.0
    %2844 = vmatprep.subr.mxu0 0.0
    %2845 = vmatpush1.msra.mxu0 0.0
    %2846 = vmatprep.subr.mxu0 0.0
    %2847 = vmatpush1.msra.mxu0 0.0
    %2848 = vmatprep.subr.mxu0 0.0
    %2849 = vmatpush1.msra.mxu0 0.0
    %2850 = vmatprep.subr.mxu0 0.0
    %2851 = vmatpush1.msra.mxu0 0.0
    %2852 = vmatprep.subr.mxu0 0.0
    %2853 = vmatpush1.msra.mxu0 0.0
    %2854 = vmatprep.subr.mxu0 0.0
    %2855 = vmatpush1.msra.mxu0 0.0
    %2856 = vmatprep.subr.mxu0 0.0
    %2857 = vmatpush1.msra.mxu0 0.0
    %2858 = vmatprep.subr.mxu0 0.0
    %2859 = vmatpush1.msra.mxu0 0.0
    %2860 = vmatprep.subr.mxu0 0.0
    %2861 = vmatpush1.msra.mxu0 0.0
    %2862 = vmatprep.subr.mxu0 0.0
    %2863 = vmatpush1.msra.mxu0 0.0
    %2864 = vmatprep.subr.mxu0 0.0
    %2865 = vmatpush1.msra.mxu0 0.0
    %2866 = vmatprep.subr.mxu0 0.0
    %2867 = vmatpush1.msra.mxu0 0.0
    %2868 = vmatprep.subr.mxu0 0.0
    %2869 = vmatpush1.msra.mxu0 0.0
    %2870 = vmatprep.subr.mxu0 0.0
    %2871 = vmatpush1.msra.mxu0 0.0
    %2872 = vmatprep.subr.mxu0 0.0
    %2873 = vmatpush1.msra.mxu0 0.0
    %2874 = vmatprep.subr.mxu0 0.0
    %2875 = vmatpush1.msra.mxu0 0.0
    %2876 = vmatprep.subr.mxu0 0.0
    %2877 = vmatpush1.msra.mxu0 0.0
    %2878 = vmatprep.subr.mxu0 0.0
    %2879 = vmatpush1.msra.mxu0 0.0
    %2880 = vmatprep.subr.mxu0 0.0
    %2881 = vmatpush1.msra.mxu0 0.0
    %2882 = vmatprep.subr.mxu0 0.0
    %2883 = vmatpush1.msra.mxu0 0.0
    %2884 = vmatprep.subr.mxu0 0.0
    %2885 = vmatpush1.msra.mxu0 0.0
    %2886 = vmatprep.subr.mxu0 0.0
    %2887 = vmatpush1.msra.mxu0 0.0
    %2888 = vmatprep.subr.mxu0 0.0
    %2889 = vmatpush1.msra.mxu0 0.0
    %2890 = vmatprep.subr.mxu0 0.0
    %2891 = vmatpush1.msra.mxu0 0.0
    %2892 = vmatprep.subr.mxu0 0.0
    %2893 = vmatpush1.msra.mxu0 0.0
    %2894 = vmatprep.subr.mxu0 0.0
    %2895 = vmatpush1.msra.mxu0 0.0
    %2896 = vmatprep.subr.mxu0 0.0
    %2897 = vmatpush1.msra.mxu0 0.0
    %2898 = vmatprep.subr.mxu0 0.0
    %2899 = vmatpush1.msra.mxu0 0.0
    %2900 = vmatprep.mubr.f32.mxu0 0.0
    %2901 = vmatmul.mubr.f32.gmra.mrb[0].mxu0 %v2834
    %v2902 = vpop.f32.mrb[0].mxu0
    %v2903 = vadd.f32 0.0, %v2902
    %v2904 = vpop.f32.mrb[0].mxu0
    %2905 = vdwg.mxu0
    %vm2906 = vcmp.gt.f32.partialorder %v2832, 0.0
    %v2907 = vsel %vm2906, 0.0, -1e+30
    %v2908 = vlaneseq
    %v2909 = vshrl.u32 %v2908, 7
    %v2910 = vsub.s32 0, %v2909
    %v2911 = vrot.slane %v2907, %v2910
    %2913 = vbcast.lane.b32.xlu0 %v2911, 256
    %v2914 = vpop.permute.xlu0 %2913
    %s2916 = sor.u32 256, 8
    %2917 = vbcast.lane.b32.xlu0 %v2911, %s2916
    %v2918 = vpop.permute.xlu0 %2917
    %v2919 = vlaneseq
    %v2920 = vshrl.u32 %v2919, 7
    %v2921 = vsub.s32 1, %v2920
    %v2922 = vrot.slane %v2907, %v2921
    %2924 = vbcast.lane.b32.xlu0 %v2922, 256
    %v2925 = vpop.permute.xlu0 %2924
    %s2927 = sor.u32 256, 8
    %2928 = vbcast.lane.b32.xlu0 %v2922, %s2927
    %v2929 = vpop.permute.xlu0 %2928
    %v2930 = vlaneseq
    %v2931 = vshrl.u32 %v2930, 7
    %v2932 = vsub.s32 2, %v2931
    %v2933 = vrot.slane %v2907, %v2932
    %2935 = vbcast.lane.b32.xlu0 %v2933, 256
    %v2936 = vpop.permute.xlu0 %2935
    %s2938 = sor.u32 256, 8
    %2939 = vbcast.lane.b32.xlu0 %v2933, %s2938
    %v2940 = vpop.permute.xlu0 %2939
    %v2941 = vlaneseq
    %v2942 = vshrl.u32 %v2941, 7
    %v2943 = vsub.s32 3, %v2942
    %v2944 = vrot.slane %v2907, %v2943
    %2946 = vbcast.lane.b32.xlu0 %v2944, 256
    %v2947 = vpop.permute.xlu0 %2946
    %s2949 = sor.u32 256, 8
    %2950 = vbcast.lane.b32.xlu0 %v2944, %s2949
    %v2951 = vpop.permute.xlu0 %2950
    %v2952 = vlaneseq
    %v2953 = vshrl.u32 %v2952, 7
    %v2954 = vsub.s32 4, %v2953
    %v2955 = vrot.slane %v2907, %v2954
    %2957 = vbcast.lane.b32.xlu0 %v2955, 256
    %v2958 = vpop.permute.xlu0 %2957
    %s2960 = sor.u32 256, 8
    %2961 = vbcast.lane.b32.xlu0 %v2955, %s2960
    %v2962 = vpop.permute.xlu0 %2961
    %v2963 = vlaneseq
    %v2964 = vshrl.u32 %v2963, 7
    %v2965 = vsub.s32 5, %v2964
    %v2966 = vrot.slane %v2907, %v2965
    %2968 = vbcast.lane.b32.xlu0 %v2966, 256
    %v2969 = vpop.permute.xlu0 %2968
    %s2971 = sor.u32 256, 8
    %2972 = vbcast.lane.b32.xlu0 %v2966, %s2971
    %v2973 = vpop.permute.xlu0 %2972
    %v2974 = vlaneseq
    %v2975 = vshrl.u32 %v2974, 7
    %v2976 = vsub.s32 6, %v2975
    %v2977 = vrot.slane %v2907, %v2976
    %2979 = vbcast.lane.b32.xlu0 %v2977, 256
    %v2980 = vpop.permute.xlu0 %2979
    %s2982 = sor.u32 256, 8
    %2983 = vbcast.lane.b32.xlu0 %v2977, %s2982
    %v2984 = vpop.permute.xlu0 %2983
    %v2985 = vlaneseq
    %v2986 = vshrl.u32 %v2985, 7
    %v2987 = vsub.s32 7, %v2986
    %v2988 = vrot.slane %v2907, %v2987
    %2990 = vbcast.lane.b32.xlu0 %v2988, 256
    %v2991 = vpop.permute.xlu0 %2990
    %s2993 = sor.u32 256, 8
    %2994 = vbcast.lane.b32.xlu0 %v2988, %s2993
    %v2995 = vpop.permute.xlu0 %2994
    %v2996 = vadd.f32 %v2824, %v2914
    %v2997 = vadd.f32 %v2829, %v2918
    %v2998 = vadd.f32 %v2824, %v2925
    %v2999 = vadd.f32 %v2829, %v2929
    %v3000 = vadd.f32 %v2824, %v2936
    %v3001 = vadd.f32 %v2829, %v2940
    %v3002 = vadd.f32 %v2824, %v2947
    %v3003 = vadd.f32 %v2829, %v2951
    %v3004 = vadd.f32 %v2824, %v2958
    %v3005 = vadd.f32 %v2829, %v2962
    %v3006 = vadd.f32 %v2824, %v2969
    %v3007 = vadd.f32 %v2829, %v2973
    %v3008 = vadd.f32 %v2824, %v2980
    %v3009 = vadd.f32 %v2829, %v2984
    %v3010 = vadd.f32 %v2824, %v2991
    %v3011 = vadd.f32 %v2829, %v2995
    %v3012 = vmax.f32 %v2996, %v2997
    %v3013 = vrot.slane %v3012, 4
    %v3014 = vmax.f32 %v3012, %v3013
    %v3015 = vrot.slane %v3014, 2
    %v3016 = vmax.f32 %v3014, %v3015
    %v3017 = vrot.slane %v3016, 1
    %v3018 = vmax.f32 %v3016, %v3017
    %v3019 = vmax.f32 %v2998, %v2999
    %v3020 = vrot.slane %v3019, 4
    %v3021 = vmax.f32 %v3019, %v3020
    %v3022 = vrot.slane %v3021, 2
    %v3023 = vmax.f32 %v3021, %v3022
    %v3024 = vrot.slane %v3023, 1
    %v3025 = vmax.f32 %v3023, %v3024
    %v3026 = vmax.f32 %v3000, %v3001
    %v3027 = vrot.slane %v3026, 4
    %v3028 = vmax.f32 %v3026, %v3027
    %v3029 = vrot.slane %v3028, 2
    %v3030 = vmax.f32 %v3028, %v3029
    %v3031 = vrot.slane %v3030, 1
    %v3032 = vmax.f32 %v3030, %v3031
    %v3033 = vmax.f32 %v3002, %v3003
    %v3034 = vrot.slane %v3033, 4
    %v3035 = vmax.f32 %v3033, %v3034
    %v3036 = vrot.slane %v3035, 2
    %v3037 = vmax.f32 %v3035, %v3036
    %v3038 = vrot.slane %v3037, 1
    %v3039 = vmax.f32 %v3037, %v3038
    %v3040 = vmax.f32 %v3004, %v3005
    %v3041 = vrot.slane %v3040, 4
    %v3042 = vmax.f32 %v3040, %v3041
    %v3043 = vrot.slane %v3042, 2
    %v3044 = vmax.f32 %v3042, %v3043
    %v3045 = vrot.slane %v3044, 1
    %v3046 = vmax.f32 %v3044, %v3045
    %v3047 = vmax.f32 %v3006, %v3007
    %v3048 = vrot.slane %v3047, 4
    %v3049 = vmax.f32 %v3047, %v3048
    %v3050 = vrot.slane %v3049, 2
    %v3051 = vmax.f32 %v3049, %v3050
    %v3052 = vrot.slane %v3051, 1
    %v3053 = vmax.f32 %v3051, %v3052
    %v3054 = vmax.f32 %v3008, %v3009
    %v3055 = vrot.slane %v3054, 4
    %v3056 = vmax.f32 %v3054, %v3055
    %v3057 = vrot.slane %v3056, 2
    %v3058 = vmax.f32 %v3056, %v3057
    %v3059 = vrot.slane %v3058, 1
    %v3060 = vmax.f32 %v3058, %v3059
    %v3061 = vmax.f32 %v3010, %v3011
    %v3062 = vrot.slane %v3061, 4
    %v3063 = vmax.f32 %v3061, %v3062
    %v3064 = vrot.slane %v3063, 2
    %v3065 = vmax.f32 %v3063, %v3064
    %v3066 = vrot.slane %v3065, 1
    %v3067 = vmax.f32 %v3065, %v3066
    %v3068 = vtanh.pop %v2903
    %v3069 = vtanh.pop %v3018
    %v3070 = vtanh.pop %v3025
    %v3071 = vtanh.pop %v3032
    %v3072 = vtanh.pop %v3039
    %v3073 = vtanh.pop %v3046
    %v3074 = vtanh.pop %v3053
    %v3075 = vtanh.pop %v3060
    %v3076 = vtanh.pop %v3067
    %v3077 = vld [vmem:[#allocation13] sm:$0xff]
    %v3078 = vld [vmem:[#allocation13 + $0x8] sm:$0xff]
    %v3079 = vld [vmem:[#allocation13 + $0x10] sm:$0xff]
    %v3080 = vld [vmem:[#allocation13 + $0x18] sm:$0xff]
    %v3081 = vld [vmem:[#allocation13 + $0x20] sm:$0xff]
    %v3082 = vld [vmem:[#allocation13 + $0x28] sm:$0xff]
    %v3083 = vld [vmem:[#allocation13 + $0x30] sm:$0xff]
    %v3084 = vld [vmem:[#allocation13 + $0x38] sm:$0xff]
    %v3085 = vld [vmem:[#allocation13 + $0x40] sm:$0xff]
    %v3086 = vld [vmem:[#allocation13 + $0x48] sm:$0xff]
    %v3087 = vld [vmem:[#allocation13 + $0x50] sm:$0xff]
    %v3088 = vld [vmem:[#allocation13 + $0x58] sm:$0xff]
    %v3089 = vld [vmem:[#allocation13 + $0x60] sm:$0xff]
    %v3090 = vld [vmem:[#allocation13 + $0x68] sm:$0xff]
    %v3091 = vld [vmem:[#allocation13 + $0x70] sm:$0xff]
    %v3092 = vld [vmem:[#allocation13 + $0x78] sm:$0xff]
    %v3093 = vld [vmem:[#allocation13 + $0x80] sm:$0xff]
    %v3094 = vld [vmem:[#allocation13 + $0x88] sm:$0xff]
    %v3095 = vld [vmem:[#allocation13 + $0x90] sm:$0xff]
    %v3096 = vld [vmem:[#allocation13 + $0x98] sm:$0xff]
    %v3097 = vld [vmem:[#allocation13 + $0xa0] sm:$0xff]
    %v3098 = vld [vmem:[#allocation13 + $0xa8] sm:$0xff]
    %v3099 = vld [vmem:[#allocation13 + $0xb0] sm:$0xff]
    %v3100 = vld [vmem:[#allocation13 + $0xb8] sm:$0xff]
    %v3101 = vld [vmem:[#allocation13 + $0xc0] sm:$0xff]
    %v3102 = vld [vmem:[#allocation13 + $0xc8] sm:$0xff]
    %v3103 = vld [vmem:[#allocation13 + $0xd0] sm:$0xff]
    %v3104 = vld [vmem:[#allocation13 + $0xd8] sm:$0xff]
    %v3105 = vld [vmem:[#allocation13 + $0xe0] sm:$0xff]
    %v3106 = vld [vmem:[#allocation13 + $0xe8] sm:$0xff]
    %v3107 = vld [vmem:[#allocation13 + $0xf0] sm:$0xff]
    %v3108 = vld [vmem:[#allocation13 + $0xf8] sm:$0xff]
    %v3109 = vld [vmem:[#allocation13 + $0x100] sm:$0xff]
    %v3110 = vld [vmem:[#allocation13 + $0x108] sm:$0xff]
    %v3111 = vld [vmem:[#allocation13 + $0x110] sm:$0xff]
    %v3112 = vld [vmem:[#allocation13 + $0x118] sm:$0xff]
    %v3113 = vld [vmem:[#allocation13 + $0x120] sm:$0xff]
    %v3114 = vld [vmem:[#allocation13 + $0x128] sm:$0xff]
    %v3115 = vld [vmem:[#allocation13 + $0x130] sm:$0xff]
    %v3116 = vld [vmem:[#allocation13 + $0x138] sm:$0xff]
    %v3117 = vld [vmem:[#allocation13 + $0x140] sm:$0xff]
    %v3118 = vld [vmem:[#allocation13 + $0x148] sm:$0xff]
    %v3119 = vld [vmem:[#allocation13 + $0x150] sm:$0xff]
    %v3120 = vld [vmem:[#allocation13 + $0x158] sm:$0xff]
    %v3121 = vld [vmem:[#allocation13 + $0x160] sm:$0xff]
    %v3122 = vld [vmem:[#allocation13 + $0x168] sm:$0xff]
    %v3123 = vld [vmem:[#allocation13 + $0x170] sm:$0xff]
    %v3124 = vld [vmem:[#allocation13 + $0x178] sm:$0xff]
    %v3125 = vld [vmem:[#allocation13 + $0x180] sm:$0xff]
    %v3126 = vld [vmem:[#allocation13 + $0x188] sm:$0xff]
    %v3127 = vld [vmem:[#allocation13 + $0x190] sm:$0xff]
    %v3128 = vld [vmem:[#allocation13 + $0x198] sm:$0xff]
    %v3129 = vld [vmem:[#allocation13 + $0x1a0] sm:$0xff]
    %v3130 = vld [vmem:[#allocation13 + $0x1a8] sm:$0xff]
    %v3131 = vld [vmem:[#allocation13 + $0x1b0] sm:$0xff]
    %v3132 = vld [vmem:[#allocation13 + $0x1b8] sm:$0xff]
    %v3133 = vld [vmem:[#allocation13 + $0x1c0] sm:$0xff]
    %v3134 = vld [vmem:[#allocation13 + $0x1c8] sm:$0xff]
    %v3135 = vld [vmem:[#allocation13 + $0x1d0] sm:$0xff]
    %v3136 = vld [vmem:[#allocation13 + $0x1d8] sm:$0xff]
    %v3137 = vld [vmem:[#allocation13 + $0x1e0] sm:$0xff]
    %v3138 = vld [vmem:[#allocation13 + $0x1e8] sm:$0xff]
    %v3139 = vld [vmem:[#allocation13 + $0x1f0] sm:$0xff]
    %v3140 = vld [vmem:[#allocation13 + $0x1f8] sm:$0xff]
    %vm3149 = vcmask 1041409
    %v3150 = vsel %vm3149, %v3070, %v3069
    %vm3151 = vcmask 1042434
    %v3152 = vsel %vm3151, %v3071, %v3150
    %vm3153 = vcmask 1043459
    %v3154 = vsel %vm3153, %v3072, %v3152
    %vm3155 = vcmask 1044484
    %v3156 = vsel %vm3155, %v3073, %v3154
    %vm3157 = vcmask 1045509
    %v3158 = vsel %vm3157, %v3074, %v3156
    %vm3159 = vcmask 1046534
    %v3160 = vsel %vm3159, %v3075, %v3158
    %vm3161 = vcmask 1047559
    %v3162 = vsel %vm3161, %v3076, %v3160
    %3164 = vmatprep.subr.mxu0 %v3110
    %3165 = vmatpush1.msra.mxu0 %v3109
    %3166 = vmatprep.subr.mxu0 %v3112
    %3167 = vmatpush1.msra.mxu0 %v3111
    %3168 = vmatprep.subr.mxu0 %v3114
    %3169 = vmatpush1.msra.mxu0 %v3113
    %3170 = vmatprep.subr.mxu0 %v3116
    %3171 = vmatpush1.msra.mxu0 %v3115
    %3172 = vmatprep.subr.mxu0 %v3118
    %3173 = vmatpush1.msra.mxu0 %v3117
    %3174 = vmatprep.subr.mxu0 %v3120
    %3175 = vmatpush1.msra.mxu0 %v3119
    %3176 = vmatprep.subr.mxu0 %v3122
    %3177 = vmatpush1.msra.mxu0 %v3121
    %3178 = vmatprep.subr.mxu0 %v3124
    %3179 = vmatpush1.msra.mxu0 %v3123
    %3180 = vmatprep.subr.mxu0 %v3126
    %3181 = vmatpush1.msra.mxu0 %v3125
    %3182 = vmatprep.subr.mxu0 %v3128
    %3183 = vmatpush1.msra.mxu0 %v3127
    %3184 = vmatprep.subr.mxu0 %v3130
    %3185 = vmatpush1.msra.mxu0 %v3129
    %3186 = vmatprep.subr.mxu0 %v3132
    %3187 = vmatpush1.msra.mxu0 %v3131
    %3188 = vmatprep.subr.mxu0 %v3134
    %3189 = vmatpush1.msra.mxu0 %v3133
    %3190 = vmatprep.subr.mxu0 %v3136
    %3191 = vmatpush1.msra.mxu0 %v3135
    %3192 = vmatprep.subr.mxu0 %v3138
    %3193 = vmatpush1.msra.mxu0 %v3137
    %3194 = vmatprep.subr.mxu0 %v3140
    %3195 = vmatpush1.msra.mxu0 %v3139
    %3196 = vmatprep.subr.mxu0 0.0
    %3197 = vmatpush1.msra.mxu0 0.0
    %3198 = vmatprep.subr.mxu0 0.0
    %3199 = vmatpush1.msra.mxu0 0.0
    %3200 = vmatprep.subr.mxu0 0.0
    %3201 = vmatpush1.msra.mxu0 0.0
    %3202 = vmatprep.subr.mxu0 0.0
    %3203 = vmatpush1.msra.mxu0 0.0
    %3204 = vmatprep.subr.mxu0 0.0
    %3205 = vmatpush1.msra.mxu0 0.0
    %3206 = vmatprep.subr.mxu0 0.0
    %3207 = vmatpush1.msra.mxu0 0.0
    %3208 = vmatprep.subr.mxu0 0.0
    %3209 = vmatpush1.msra.mxu0 0.0
    %3210 = vmatprep.subr.mxu0 0.0
    %3211 = vmatpush1.msra.mxu0 0.0
    %3212 = vmatprep.subr.mxu0 0.0
    %3213 = vmatpush1.msra.mxu0 0.0
    %3214 = vmatprep.subr.mxu0 0.0
    %3215 = vmatpush1.msra.mxu0 0.0
    %3216 = vmatprep.subr.mxu0 0.0
    %3217 = vmatpush1.msra.mxu0 0.0
    %3218 = vmatprep.subr.mxu0 0.0
    %3219 = vmatpush1.msra.mxu0 0.0
    %3220 = vmatprep.subr.mxu0 0.0
    %3221 = vmatpush1.msra.mxu0 0.0
    %3222 = vmatprep.subr.mxu0 0.0
    %3223 = vmatpush1.msra.mxu0 0.0
    %3224 = vmatprep.subr.mxu0 0.0
    %3225 = vmatpush1.msra.mxu0 0.0
    %3226 = vmatprep.subr.mxu0 0.0
    %3227 = vmatpush1.msra.mxu0 0.0
    %3228 = vmatprep.mubr.f32.mxu0 0.0
    %3229 = vmatmul.mubr.f32.gmra.mrb[0].mxu0 %v3162
    %v3230 = vpop.f32.mrb[0].mxu0
    %v3231 = vadd.f32 0.0, %v3230
    %v3232 = vpop.f32.mrb[0].mxu0
    %v3233 = vadd.f32 0.0, %v3232
    %3234 = vdwg.mxu0
    %3235 = vmatprep.subr.mxu0 %v3078
    %3236 = vmatpush1.msra.mxu0 %v3077
    %3237 = vmatprep.subr.mxu0 %v3080
    %3238 = vmatpush1.msra.mxu0 %v3079
    %3239 = vmatprep.subr.mxu0 %v3082
    %3240 = vmatpush1.msra.mxu0 %v3081
    %3241 = vmatprep.subr.mxu0 %v3084
    %3242 = vmatpush1.msra.mxu0 %v3083
    %3243 = vmatprep.subr.mxu0 %v3086
    %3244 = vmatpush1.msra.mxu0 %v3085
    %3245 = vmatprep.subr.mxu0 %v3088
    %3246 = vmatpush1.msra.mxu0 %v3087
    %3247 = vmatprep.subr.mxu0 %v3090
    %3248 = vmatpush1.msra.mxu0 %v3089
    %3249 = vmatprep.subr.mxu0 %v3092
    %3250 = vmatpush1.msra.mxu0 %v3091
    %3251 = vmatprep.subr.mxu0 %v3094
    %3252 = vmatpush1.msra.mxu0 %v3093
    %3253 = vmatprep.subr.mxu0 %v3096
    %3254 = vmatpush1.msra.mxu0 %v3095
    %3255 = vmatprep.subr.mxu0 %v3098
    %3256 = vmatpush1.msra.mxu0 %v3097
    %3257 = vmatprep.subr.mxu0 %v3100
    %3258 = vmatpush1.msra.mxu0 %v3099
    %3259 = vmatprep.subr.mxu0 %v3102
    %3260 = vmatpush1.msra.mxu0 %v3101
    %3261 = vmatprep.subr.mxu0 %v3104
    %3262 = vmatpush1.msra.mxu0 %v3103
    %3263 = vmatprep.subr.mxu0 %v3106
    %3264 = vmatpush1.msra.mxu0 %v3105
    %3265 = vmatprep.subr.mxu0 %v3108
    %3266 = vmatpush1.msra.mxu0 %v3107
    %3267 = vmatprep.subr.mxu0 0.0
    %3268 = vmatpush1.msra.mxu0 0.0
    %3269 = vmatprep.subr.mxu0 0.0
    %3270 = vmatpush1.msra.mxu0 0.0
    %3271 = vmatprep.subr.mxu0 0.0
    %3272 = vmatpush1.msra.mxu0 0.0
    %3273 = vmatprep.subr.mxu0 0.0
    %3274 = vmatpush1.msra.mxu0 0.0
    %3275 = vmatprep.subr.mxu0 0.0
    %3276 = vmatpush1.msra.mxu0 0.0
    %3277 = vmatprep.subr.mxu0 0.0
    %3278 = vmatpush1.msra.mxu0 0.0
    %3279 = vmatprep.subr.mxu0 0.0
    %3280 = vmatpush1.msra.mxu0 0.0
    %3281 = vmatprep.subr.mxu0 0.0
    %3282 = vmatpush1.msra.mxu0 0.0
    %3283 = vmatprep.subr.mxu0 0.0
    %3284 = vmatpush1.msra.mxu0 0.0
    %3285 = vmatprep.subr.mxu0 0.0
    %3286 = vmatpush1.msra.mxu0 0.0
    %3287 = vmatprep.subr.mxu0 0.0
    %3288 = vmatpush1.msra.mxu0 0.0
    %3289 = vmatprep.subr.mxu0 0.0
    %3290 = vmatpush1.msra.mxu0 0.0
    %3291 = vmatprep.subr.mxu0 0.0
    %3292 = vmatpush1.msra.mxu0 0.0
    %3293 = vmatprep.subr.mxu0 0.0
    %3294 = vmatpush1.msra.mxu0 0.0
    %3295 = vmatprep.subr.mxu0 0.0
    %3296 = vmatpush1.msra.mxu0 0.0
    %3297 = vmatprep.subr.mxu0 0.0
    %3298 = vmatpush1.msra.mxu0 0.0
    %3299 = vmatprep.mubr.f32.mxu0 0.0
    %3300 = vmatmul.mubr.f32.gmra.mrb[0].mxu0 %v3068
    %v3301 = vpop.f32.mrb[0].mxu0
    %v3302 = vadd.f32 %v3231, %v3301
    %v3303 = vpop.f32.mrb[0].mxu0
    %v3304 = vadd.f32 %v3233, %v3303
    %3305 = vdwg.mxu0
    %v3306 = vld [vmem:[%s11] sm:$0x3]
    %v3308 = vlaneseq
    %v3309 = vshrl.u32 %v3308, 7
    %v3310 = vsub.s32 0, %v3309
    %v3311 = vrot.slane %v3306, %v3310
    %v3312 = vlaneseq
    %v3313 = vshrl.u32 %v3312, 7
    %v3314 = vsub.s32 1, %v3313
    %v3315 = vrot.slane %v3306, %v3314
    %v3318 = vadd.f32 %v3302, %v3311
    %v3319 = vadd.f32 %v3304, %v3315
    %3320 = vst [vmem:[#allocation14] sm:$0xff] %v3318
    %3321 = vst [vmem:[#allocation14 + $0x8] sm:$0xff] %v3319
    // Predicated region
    $region78: #{tpu_custom_call.1} parent=1 // pred_check
      _
    $region79: #{tpu_custom_call.1} parent=1 // pred_check_branch
      %3323 = sbr.rel (0) target = $region81
    $region80: #{tpu_custom_call.1} parent=1 // pred_region
      %s3325 = ssub.s32 256, 256
      %3326 = vsyncadd [#allocation4], %s3325
      %s3328 = sshll.u32 [#allocation14], 4
      %s3329 = int_to_ptr.vmem [resolvable:$true] %s3328
      %3331 = dma.vmem_to_hbm [thread:$0]  %s3329, 256, %s12, [#allocation4]
    $region81: #{tpu_custom_call.1} parent=1 // pred_fallthru
      _
    // Predicated region
    $region82: #{tpu_custom_call.1} parent=1 // pred_check
      _
    $region83: #{tpu_custom_call.1} parent=1 // pred_check_branch
      %3333 = sbr.rel (0) target = $region85
    $region84: #{tpu_custom_call.1} parent=1 // pred_region
      %3334 = dma.done [#allocation4], 256
    $region85: #{tpu_custom_call.1} parent=1 // pred_fallthru
      _
    %3335 = vsyncpa [#allocation3], 1
    %3336 = vsyncpa [#allocation6], 1
    %3337 = vsyncpa [#allocation9], 1
    %3338 = vsyncpa [#allocation12], 1
    %3339 = vsyncpa [#allocation4], 1

</llo_original>
